<compile_context>
chip_gen: v7x
topology: tpu7x:2x2x1
jax: 0.10.0
libtpu: 0.0.40
codegen_flags: <defaults>
</compile_context>

<pallas_src>
import functools

import jax
import jax.numpy as jnp
from jax import lax
from jax.experimental import pallas as pl
from jax.experimental.pallas import tpu as pltpu


# ---------------------------------------------------------------------------
# Fused conv3x3 + BN (+shortcut) (+ReLU) kernel
# ---------------------------------------------------------------------------
def _conv_bn_kernel(*refs, stride, sc_stride, relu, pad_output, mode, Ho, Wo,
                    n_x):
    """One grid step computes a full (Ho, Wo, tn) output tile for one image.

    refs layout:
      refs[:n_x]        activation part(s): padded NHWC bf16; n_x == 1 for
                        stride 1, n_x == 4 (2x2 phase split) for stride 2 so
                        every slice below is unit-stride.
      refs[n_x:n_x+3]   w (9, Cin, tn), scale (1, tn), bias (1, tn)
      then, by `mode`:
        "none":      out_ref
        "identity":  residual_ref (padded NHWC, channels == Cout), out_ref
        "proj":      xs_ref, w_sc (Cin, tn), scale_sc (1, tn), bias_sc (1, tn),
                     out_ref   (fused 1x1 projection shortcut)
    """
    x_parts = refs[:n_x]
    w_ref, scale_ref, bias_ref = refs[n_x:n_x + 3]
    rest = refs[n_x + 3:]
    if mode == "proj":
        xs_ref, wsc_ref, ssc_ref, bsc_ref, o_ref = rest
    elif mode == "identity":
        res_ref, o_ref = rest
    else:
        (o_ref,) = rest

    M = Ho * Wo
    cin = x_parts[0].shape[-1]

    def tap(kh, kw):
        if stride == 1:
            return x_parts[0][pl.ds(kh, Ho), pl.ds(kw, Wo), :]
        # stride 2: read phase (kh%2, kw%2) sub-image with a unit-stride slice.
        p = x_parts[2 * (kh % 2) + (kw % 2)]
        return p[pl.ds(kh // 2, Ho), pl.ds(kw // 2, Wo), :]

    # 3x3 conv = 9 accumulating MXU matmuls, K = Cin per tap (no zero-padding
    # of the reduction axis), f32 accumulation.
    acc = None
    for kh in range(3):
        for kw in range(3):
            a = tap(kh, kw).reshape(M, cin)
            d = jnp.dot(a, w_ref[3 * kh + kw],
                        preferred_element_type=jnp.float32)
            acc = d if acc is None else acc + d

    out = acc * scale_ref[...] + bias_ref[...]       # folded BatchNorm (eval)

    if mode == "identity":
        res = res_ref[pl.ds(1, Ho), pl.ds(1, Wo), :]
        out = out + res.reshape(M, -1).astype(jnp.float32)
    elif mode == "proj":
        off = 1 if sc_stride == 1 else 0             # (1,1) phase already strided
        xs = xs_ref[pl.ds(off, Ho), pl.ds(off, Wo), :].reshape(M, -1)
        sc = jnp.dot(xs, wsc_ref[...], preferred_element_type=jnp.float32)
        out = out + (sc * ssc_ref[...] + bsc_ref[...])

    if relu:
        out = jnp.maximum(out, 0.0)

    out = out.reshape(Ho, Wo, out.shape[-1]).astype(o_ref.dtype)
    if pad_output:
        # Emit a spatially 1-padded output so the next 3x3 conv needs no extra
        # HBM pad round-trip: zero the border once, then write the interior.
        o_ref[...] = jnp.zeros_like(o_ref)
        o_ref[pl.ds(1, Ho), pl.ds(1, Wo), :] = out
    else:
        o_ref[...] = out


# ---------------------------------------------------------------------------
# Wrapper: BlockSpecs / grid / pallas_call
# ---------------------------------------------------------------------------
def _pick_tn(cout):
    if cout <= 512:
        return cout                      # single lane tile: each input read once
    for t in (512, 256, 128):            # 256-multiples fill the 256x256 MXU
        if cout % t == 0:
            return t
    return cout


@functools.lru_cache(maxsize=None)
def _vmem_limit_bytes():
    cap = 64 * 1024 * 1024
    try:
        info = pltpu.get_tpu_info()
        cap = getattr(info, "vmem_capacity_bytes", cap)
    except Exception:
        pass
    # ~3/4 of physical: 96 MiB on v5e/v6e (128 MiB), 48 MiB on v7x (64 MiB).
    return int(min(96 * 1024 * 1024, cap * 3 // 4))


def conv3x3_bn(x_parts, w9, scale, bias, *, stride, relu, pad_output,
               out_dtype, Ho, Wo, residual=None, proj=None, sc_stride=1):
    """y = act( conv3x3(x)*scale + bias [+ shortcut] ) as one fused pallas_call."""
    n_x = len(x_parts)
    N = x_parts[0].shape[0]
    Cin = x_parts[0].shape[-1]
    Cout = w9.shape[-1]
    tn = _pick_tn(Cout)
    nj = Cout // tn

    args = list(x_parts) + [
        w9,
        scale.astype(jnp.float32).reshape(1, Cout),
        bias.astype(jnp.float32).reshape(1, Cout),
    ]

    def _full_spec(a):
        _, h, w, c = a.shape
        return pl.BlockSpec((None, h, w, c), lambda b, j: (b, 0, 0, 0))

    in_specs = [_full_spec(a) for a in x_parts] + [
        pl.BlockSpec((9, Cin, tn), lambda b, j: (0, 0, j)),
        pl.BlockSpec((1, tn), lambda b, j: (0, j)),
        pl.BlockSpec((1, tn), lambda b, j: (0, j)),
    ]

    flops = 2 * N * Ho * Wo * 9 * Cin * Cout
    mode = "none"
    if residual is not None:
        mode = "identity"
        _, rh, rw, _ = residual.shape
        args.append(residual)
        in_specs.append(
            pl.BlockSpec((None, rh, rw, tn), lambda b, j: (b, 0, 0, j)))
    elif proj is not None:
        mode = "proj"
        xs, wsc, ssc, bsc = proj
        _, sh, sw, scin = xs.shape
        args += [xs, wsc,
                 ssc.astype(jnp.float32).reshape(1, Cout),
                 bsc.astype(jnp.float32).reshape(1, Cout)]
        in_specs += [
            pl.BlockSpec((None, sh, sw, scin), lambda b, j: (b, 0, 0, 0)),
            pl.BlockSpec((scin, tn), lambda b, j: (0, j)),
            pl.BlockSpec((1, tn), lambda b, j: (0, j)),
            pl.BlockSpec((1, tn), lambda b, j: (0, j)),
        ]
        flops += 2 * N * Ho * Wo * scin * Cout

    Hout, Wout = (Ho + 2, Wo + 2) if pad_output else (Ho, Wo)
    out_spec = pl.BlockSpec((None, Hout, Wout, tn), lambda b, j: (b, 0, 0, j))

    bytes_accessed = sum(int(a.size) * a.dtype.itemsize for a in args)
    bytes_accessed += N * Hout * Wout * Cout * jnp.dtype(out_dtype).itemsize

    kern = functools.partial(
        _conv_bn_kernel, stride=stride, sc_stride=sc_stride, relu=relu,
        pad_output=pad_output, mode=mode, Ho=Ho, Wo=Wo, n_x=n_x)

    return pl.pallas_call(
        kern,
        out_shape=jax.ShapeDtypeStruct((N, Hout, Wout, Cout), out_dtype),
        grid_spec=pltpu.PrefetchScalarGridSpec(
            num_scalar_prefetch=0,
            grid=(N, nj),
            in_specs=in_specs,
            out_specs=out_spec,
        ),
        compiler_params=pltpu.CompilerParams(
            dimension_semantics=("parallel", "parallel"),
            vmem_limit_bytes=_vmem_limit_bytes(),
        ),
        cost_estimate=pl.CostEstimate(flops=int(flops), transcendentals=0,
                                      bytes_accessed=int(bytes_accessed)),
    )(*args)


# ---------------------------------------------------------------------------
# Glue: weight layout, BN folding, full BasicBlock forward
# ---------------------------------------------------------------------------
def _weight_9ck(w_oihw):
    """PyTorch (Cout, Cin, 3, 3) -> (9, Cin, Cout) bf16, tap-major (kh*3+kw)."""
    cout, cin = w_oihw.shape[0], w_oihw.shape[1]
    return jnp.transpose(w_oihw, (2, 3, 1, 0)).reshape(9, cin, cout).astype(
        jnp.bfloat16)


def fold_bn(gamma, beta, mean, var, eps=1e-5):
    scale = gamma / jnp.sqrt(var + eps)
    return scale, beta - mean * scale


def basic_block_forward(x_nchw, params, stride):
    if stride not in (1, 2):
        raise NotImplementedError("BasicBlock kernel supports stride 1 or 2")

    x = jnp.transpose(x_nchw, (0, 2, 3, 1))          # NCHW -> NHWC once
    N, H, W, Cin = x.shape
    Cout = params["w1"].shape[0]
    Ho = (H - 1) // stride + 1
    Wo = (W - 1) // stride + 1

    # Spatial pad=1 once, in bf16 (used by conv1, the residual and the
    # projection shortcut).
    x_pad = jnp.pad(x, ((0, 0), (1, 1), (1, 1), (0, 0))).astype(jnp.bfloat16)

    if stride == 1:
        x1_parts = (x_pad,)
    else:
        # 2x2 spatial phase split (plain XLA slices) so every in-kernel tap of
        # the stride-2 conv is a unit-stride slice of one phase.
        hp, wp = x_pad.shape[1], x_pad.shape[2]
        xe = jnp.pad(x_pad, ((0, 0), (0, hp % 2), (0, wp % 2), (0, 0)))
        x1_parts = tuple(xe[:, ph::2, pw::2, :]
                         for ph in (0, 1) for pw in (0, 1))

    # conv1 (3x3, pad=1, stride) + bn1 + relu -> bf16, spatially 1-padded.
    s1, b1 = fold_bn(*params["bn1"])
    out1_pad = conv3x3_bn(x1_parts, _weight_9ck(params["w1"]), s1, b1,
                          stride=stride, relu=True, pad_output=True,
                          out_dtype=jnp.bfloat16, Ho=Ho, Wo=Wo)

    # conv2 (3x3, pad=1, stride 1) + bn2 + shortcut + relu, all fused.
    s2, b2 = fold_bn(*params["bn2"])
    w2 = _weight_9ck(params["w2"])
    if stride != 1 or Cin != Cout:
        ssc, bsc = fold_bn(*params["bn_sc"])
        wsc = params["w_sc"].reshape(Cout, Cin).T.astype(jnp.bfloat16)
        xs = x1_parts[3] if stride == 2 else x_pad     # (1,1) phase == x[::2,::2]
        out = conv3x3_bn((out1_pad,), w2, s2, b2, stride=1, relu=True,
                         pad_output=False, out_dtype=jnp.float32, Ho=Ho, Wo=Wo,
                         proj=(xs, wsc, ssc, bsc), sc_stride=stride)
    else:
        out = conv3x3_bn((out1_pad,), w2, s2, b2, stride=1, relu=True,
                         pad_output=False, out_dtype=jnp.float32, Ho=Ho, Wo=Wo,
                         residual=x_pad)

    return jnp.transpose(out, (0, 3, 1, 2))           # NHWC -> NCHW


_basic_block_jit = jax.jit(basic_block_forward, static_argnums=(2,))


# ---------------------------------------------------------------------------
# References (for sanity checking the kernels)
# ---------------------------------------------------------------------------
def _conv_ref(x, w, stride, pad, bf16):
    if bf16:
        x = x.astype(jnp.bfloat16)
        w = w.astype(jnp.bfloat16)
    return lax.conv_general_dilated(
        x, w, (stride, stride), [(pad, pad), (pad, pad)],
        dimension_numbers=("NCHW", "OIHW", "NCHW"),
        preferred_element_type=jnp.float32)


def basic_block_ref(x, params, stride, *, match_kernel_precision):
    bf = match_kernel_precision

    def bn(y, p):
        s, b = fold_bn(*p)
        return y * s.reshape(1, -1, 1, 1) + b.reshape(1, -1, 1, 1)

    out1 = jnp.maximum(
        bn(_conv_ref(x, params["w1"], stride, 1, bf), params["bn1"]), 0.0)
    if bf:
        out1 = out1.astype(jnp.bfloat16).astype(jnp.float32)
    out = bn(_conv_ref(out1, params["w2"], 1, 1, bf), params["bn2"])
    Cin, Cout = x.shape[1], params["w1"].shape[0]
    if stride != 1 or Cin != Cout:
        sc = bn(_conv_ref(x, params["w_sc"], stride, 0, bf), params["bn_sc"])
    else:
        sc = x.astype(jnp.bfloat16).astype(jnp.float32) if bf else x
    return jnp.maximum(out + sc, 0.0)


# ---------------------------------------------------------------------------
# Deterministic parameter init + run
# ---------------------------------------------------------------------------
def make_params(key, in_channels, out_channels, stride):
    ks = jax.random.split(key, 16)

    def bn_params(k0, k1, k2, k3, c):
        gamma = 0.5 + jax.random.uniform(k0, (c,), jnp.float32)
        beta = 0.1 * jax.random.normal(k1, (c,), jnp.float32)
        mean = 0.1 * jax.random.normal(k2, (c,), jnp.float32)
        var = 0.5 + jax.random.uniform(k3, (c,), jnp.float32)
        return (gamma, beta, mean, var)

    params = {
        "w1": 0.2 * jax.random.normal(
            ks[0], (out_channels, in_channels, 3, 3), jnp.float32),
        "bn1": bn_params(ks[1], ks[2], ks[3], ks[4], out_channels),
        "w2": 0.2 * jax.random.normal(
            ks[5], (out_channels, out_channels, 3, 3), jnp.float32),
        "bn2": bn_params(ks[6], ks[7], ks[8], ks[9], out_channels),
    }
    if stride != 1 or in_channels != out_channels:
        params["w_sc"] = 0.2 * jax.random.normal(
            ks[10], (out_channels, in_channels, 1, 1), jnp.float32)
        params["bn_sc"] = bn_params(ks[11], ks[12], ks[13], ks[14],
                                    out_channels)
    return params


def _run_and_check(key, N, C_in, H, W, C_out, stride):
    k_x, k_p = jax.random.split(key)
    x = jax.random.normal(k_x, (N, C_in, H, W), jnp.float32)
    params = make_params(k_p, C_in, C_out, stride)

    out = jax.block_until_ready(_basic_block_jit(x, params, stride))

    Ho, Wo = H // stride, W // stride
    assert out.shape == (N, C_out, Ho, Wo), out.shape

    # Tight check vs a reference using the same bf16-operand / f32-accumulate
    # precision as the kernels.
    ref_m = basic_block_ref(x, params, stride, match_kernel_precision=True)
    assert jnp.allclose(out, ref_m, rtol=3e-3, atol=3e-3), (
        float(jnp.max(jnp.abs(out - ref_m))))

    # Loose semantic check vs the full-f32 reference.
    ref_f = basic_block_ref(x, params, stride, match_kernel_precision=False)
    assert jnp.allclose(out, ref_f, rtol=5e-2, atol=5e-2), (
        float(jnp.max(jnp.abs(out - ref_f))))


if __name__ == "__main__":
    key = jax.random.PRNGKey(0)
    k1, k2 = jax.random.split(key)

    # Projection-shortcut path (stride=2, channel change) -> fused 1x1 shortcut.
    _run_and_check(k1, N=2, C_in=4, H=16, W=16, C_out=8, stride=2)
    # Identity-shortcut path (stride=1, same channels) -> fused residual add.
    _run_and_check(k2, N=2, C_in=8, H=16, W=16, C_out=8, stride=1)

    print("KERNEL_OK")
</pallas_src>

<mosaic_0001>
module attributes {stable_mosaic.version = 11 : i64} {
  func.func @_conv_bn_kernel(%arg0: i32, %arg1: i32, %arg2: memref<1x9x9x4xbf16, #tpu.memory_space<vmem>>, %arg3: memref<1x9x9x4xbf16, #tpu.memory_space<vmem>>, %arg4: memref<1x9x9x4xbf16, #tpu.memory_space<vmem>>, %arg5: memref<1x9x9x4xbf16, #tpu.memory_space<vmem>>, %arg6: memref<9x4x8xbf16, #tpu.memory_space<vmem>>, %arg7: memref<1x8xf32, #tpu.memory_space<vmem>>, %arg8: memref<1x8xf32, #tpu.memory_space<vmem>>, %arg9: memref<1x10x10x8xbf16, #tpu.memory_space<vmem>>) attributes {dimension_semantics = [#tpu.dimension_semantics<parallel>, #tpu.dimension_semantics<parallel>], iteration_bounds = array<i64: 2, 1>, scalar_prefetch = 0 : i64, scratch_operands = 0 : i64, tpu.core_type = #tpu.core_type<tc>, window_params = [{transform_indices = @transform_0, window_bounds = array<i64: 1, 9, 9, 4>}, {transform_indices = @transform_1, window_bounds = array<i64: 1, 9, 9, 4>}, {transform_indices = @transform_2, window_bounds = array<i64: 1, 9, 9, 4>}, {transform_indices = @transform_3, window_bounds = array<i64: 1, 9, 9, 4>}, {transform_indices = @transform_4, window_bounds = array<i64: 9, 4, 8>}, {transform_indices = @transform_5, window_bounds = array<i64: 1, 8>}, {transform_indices = @transform_6, window_bounds = array<i64: 1, 8>}, {transform_indices = @transform_7, window_bounds = array<i64: 1, 10, 10, 8>}]} {
    %c0 = arith.constant 0 : index
    %c0_0 = arith.constant 0 : index
    %c0_1 = arith.constant 0 : index
    %c0_2 = arith.constant 0 : index
    %0 = vector.load %arg2[%c0, %c0_0, %c0_1, %c0_2] : memref<1x9x9x4xbf16, #tpu.memory_space<vmem>>, vector<1x8x8x4xbf16>
    %1 = vector.shape_cast %0 : vector<1x8x8x4xbf16> to vector<8x8x4xbf16>
    %2 = vector.shape_cast %1 : vector<8x8x4xbf16> to vector<64x4xbf16>
    %c0_3 = arith.constant 0 : index
    %c0_4 = arith.constant 0 : index
    %c0_5 = arith.constant 0 : index
    %3 = vector.load %arg6[%c0_3, %c0_4, %c0_5] : memref<9x4x8xbf16, #tpu.memory_space<vmem>>, vector<1x4x8xbf16>
    %4 = vector.shape_cast %3 : vector<1x4x8xbf16> to vector<4x8xbf16>
    %cst = arith.constant dense<0.000000e+00> : vector<64x8xf32>
    %5 = tpu.matmul %2, %4, %cst {dimension_numbers = #tpu.dot_dimension_numbers<[1], [0], [0], [1], [0, 0, 1, 1], [], []>} : vector<64x4xbf16>, vector<4x8xbf16>, vector<64x8xf32> -> vector<64x8xf32>
    %c0_6 = arith.constant 0 : index
    %c0_7 = arith.constant 0 : index
    %c0_8 = arith.constant 0 : index
    %c0_9 = arith.constant 0 : index
    %6 = vector.load %arg3[%c0_6, %c0_7, %c0_8, %c0_9] : memref<1x9x9x4xbf16, #tpu.memory_space<vmem>>, vector<1x8x8x4xbf16>
    %7 = vector.shape_cast %6 : vector<1x8x8x4xbf16> to vector<8x8x4xbf16>
    %8 = vector.shape_cast %7 : vector<8x8x4xbf16> to vector<64x4xbf16>
    %c1 = arith.constant 1 : index
    %c0_10 = arith.constant 0 : index
    %c0_11 = arith.constant 0 : index
    %9 = vector.load %arg6[%c1, %c0_10, %c0_11] : memref<9x4x8xbf16, #tpu.memory_space<vmem>>, vector<1x4x8xbf16>
    %10 = vector.shape_cast %9 : vector<1x4x8xbf16> to vector<4x8xbf16>
    %cst_12 = arith.constant dense<0.000000e+00> : vector<64x8xf32>
    %11 = tpu.matmul %8, %10, %cst_12 {dimension_numbers = #tpu.dot_dimension_numbers<[1], [0], [0], [1], [0, 0, 1, 1], [], []>} : vector<64x4xbf16>, vector<4x8xbf16>, vector<64x8xf32> -> vector<64x8xf32>
    %12 = arith.addf %5, %11 : vector<64x8xf32>
    %c0_13 = arith.constant 0 : index
    %c0_14 = arith.constant 0 : index
    %c1_15 = arith.constant 1 : index
    %c0_16 = arith.constant 0 : index
    %13 = vector.load %arg2[%c0_13, %c0_14, %c1_15, %c0_16] : memref<1x9x9x4xbf16, #tpu.memory_space<vmem>>, vector<1x8x8x4xbf16>
    %14 = vector.shape_cast %13 : vector<1x8x8x4xbf16> to vector<8x8x4xbf16>
    %15 = vector.shape_cast %14 : vector<8x8x4xbf16> to vector<64x4xbf16>
    %c2 = arith.constant 2 : index
    %c0_17 = arith.constant 0 : index
    %c0_18 = arith.constant 0 : index
    %16 = vector.load %arg6[%c2, %c0_17, %c0_18] : memref<9x4x8xbf16, #tpu.memory_space<vmem>>, vector<1x4x8xbf16>
    %17 = vector.shape_cast %16 : vector<1x4x8xbf16> to vector<4x8xbf16>
    %cst_19 = arith.constant dense<0.000000e+00> : vector<64x8xf32>
    %18 = tpu.matmul %15, %17, %cst_19 {dimension_numbers = #tpu.dot_dimension_numbers<[1], [0], [0], [1], [0, 0, 1, 1], [], []>} : vector<64x4xbf16>, vector<4x8xbf16>, vector<64x8xf32> -> vector<64x8xf32>
    %19 = arith.addf %12, %18 : vector<64x8xf32>
    %c0_20 = arith.constant 0 : index
    %c0_21 = arith.constant 0 : index
    %c0_22 = arith.constant 0 : index
    %c0_23 = arith.constant 0 : index
    %20 = vector.load %arg4[%c0_20, %c0_21, %c0_22, %c0_23] : memref<1x9x9x4xbf16, #tpu.memory_space<vmem>>, vector<1x8x8x4xbf16>
    %21 = vector.shape_cast %20 : vector<1x8x8x4xbf16> to vector<8x8x4xbf16>
    %22 = vector.shape_cast %21 : vector<8x8x4xbf16> to vector<64x4xbf16>
    %c3 = arith.constant 3 : index
    %c0_24 = arith.constant 0 : index
    %c0_25 = arith.constant 0 : index
    %23 = vector.load %arg6[%c3, %c0_24, %c0_25] : memref<9x4x8xbf16, #tpu.memory_space<vmem>>, vector<1x4x8xbf16>
    %24 = vector.shape_cast %23 : vector<1x4x8xbf16> to vector<4x8xbf16>
    %cst_26 = arith.constant dense<0.000000e+00> : vector<64x8xf32>
    %25 = tpu.matmul %22, %24, %cst_26 {dimension_numbers = #tpu.dot_dimension_numbers<[1], [0], [0], [1], [0, 0, 1, 1], [], []>} : vector<64x4xbf16>, vector<4x8xbf16>, vector<64x8xf32> -> vector<64x8xf32>
    %26 = arith.addf %19, %25 : vector<64x8xf32>
    %c0_27 = arith.constant 0 : index
    %c0_28 = arith.constant 0 : index
    %c0_29 = arith.constant 0 : index
    %c0_30 = arith.constant 0 : index
    %27 = vector.load %arg5[%c0_27, %c0_28, %c0_29, %c0_30] : memref<1x9x9x4xbf16, #tpu.memory_space<vmem>>, vector<1x8x8x4xbf16>
    %28 = vector.shape_cast %27 : vector<1x8x8x4xbf16> to vector<8x8x4xbf16>
    %29 = vector.shape_cast %28 : vector<8x8x4xbf16> to vector<64x4xbf16>
    %c4 = arith.constant 4 : index
    %c0_31 = arith.constant 0 : index
    %c0_32 = arith.constant 0 : index
    %30 = vector.load %arg6[%c4, %c0_31, %c0_32] : memref<9x4x8xbf16, #tpu.memory_space<vmem>>, vector<1x4x8xbf16>
    %31 = vector.shape_cast %30 : vector<1x4x8xbf16> to vector<4x8xbf16>
    %cst_33 = arith.constant dense<0.000000e+00> : vector<64x8xf32>
    %32 = tpu.matmul %29, %31, %cst_33 {dimension_numbers = #tpu.dot_dimension_numbers<[1], [0], [0], [1], [0, 0, 1, 1], [], []>} : vector<64x4xbf16>, vector<4x8xbf16>, vector<64x8xf32> -> vector<64x8xf32>
    %33 = arith.addf %26, %32 : vector<64x8xf32>
    %c0_34 = arith.constant 0 : index
    %c0_35 = arith.constant 0 : index
    %c1_36 = arith.constant 1 : index
    %c0_37 = arith.constant 0 : index
    %34 = vector.load %arg4[%c0_34, %c0_35, %c1_36, %c0_37] : memref<1x9x9x4xbf16, #tpu.memory_space<vmem>>, vector<1x8x8x4xbf16>
    %35 = vector.shape_cast %34 : vector<1x8x8x4xbf16> to vector<8x8x4xbf16>
    %36 = vector.shape_cast %35 : vector<8x8x4xbf16> to vector<64x4xbf16>
    %c5 = arith.constant 5 : index
    %c0_38 = arith.constant 0 : index
    %c0_39 = arith.constant 0 : index
    %37 = vector.load %arg6[%c5, %c0_38, %c0_39] : memref<9x4x8xbf16, #tpu.memory_space<vmem>>, vector<1x4x8xbf16>
    %38 = vector.shape_cast %37 : vector<1x4x8xbf16> to vector<4x8xbf16>
    %cst_40 = arith.constant dense<0.000000e+00> : vector<64x8xf32>
    %39 = tpu.matmul %36, %38, %cst_40 {dimension_numbers = #tpu.dot_dimension_numbers<[1], [0], [0], [1], [0, 0, 1, 1], [], []>} : vector<64x4xbf16>, vector<4x8xbf16>, vector<64x8xf32> -> vector<64x8xf32>
    %40 = arith.addf %33, %39 : vector<64x8xf32>
    %c0_41 = arith.constant 0 : index
    %c1_42 = arith.constant 1 : index
    %c0_43 = arith.constant 0 : index
    %c0_44 = arith.constant 0 : index
    %41 = vector.load %arg2[%c0_41, %c1_42, %c0_43, %c0_44] : memref<1x9x9x4xbf16, #tpu.memory_space<vmem>>, vector<1x8x8x4xbf16>
    %42 = vector.shape_cast %41 : vector<1x8x8x4xbf16> to vector<8x8x4xbf16>
    %43 = vector.shape_cast %42 : vector<8x8x4xbf16> to vector<64x4xbf16>
    %c6 = arith.constant 6 : index
    %c0_45 = arith.constant 0 : index
    %c0_46 = arith.constant 0 : index
    %44 = vector.load %arg6[%c6, %c0_45, %c0_46] : memref<9x4x8xbf16, #tpu.memory_space<vmem>>, vector<1x4x8xbf16>
    %45 = vector.shape_cast %44 : vector<1x4x8xbf16> to vector<4x8xbf16>
    %cst_47 = arith.constant dense<0.000000e+00> : vector<64x8xf32>
    %46 = tpu.matmul %43, %45, %cst_47 {dimension_numbers = #tpu.dot_dimension_numbers<[1], [0], [0], [1], [0, 0, 1, 1], [], []>} : vector<64x4xbf16>, vector<4x8xbf16>, vector<64x8xf32> -> vector<64x8xf32>
    %47 = arith.addf %40, %46 : vector<64x8xf32>
    %c0_48 = arith.constant 0 : index
    %c1_49 = arith.constant 1 : index
    %c0_50 = arith.constant 0 : index
    %c0_51 = arith.constant 0 : index
    %48 = vector.load %arg3[%c0_48, %c1_49, %c0_50, %c0_51] : memref<1x9x9x4xbf16, #tpu.memory_space<vmem>>, vector<1x8x8x4xbf16>
    %49 = vector.shape_cast %48 : vector<1x8x8x4xbf16> to vector<8x8x4xbf16>
    %50 = vector.shape_cast %49 : vector<8x8x4xbf16> to vector<64x4xbf16>
    %c7 = arith.constant 7 : index
    %c0_52 = arith.constant 0 : index
    %c0_53 = arith.constant 0 : index
    %51 = vector.load %arg6[%c7, %c0_52, %c0_53] : memref<9x4x8xbf16, #tpu.memory_space<vmem>>, vector<1x4x8xbf16>
    %52 = vector.shape_cast %51 : vector<1x4x8xbf16> to vector<4x8xbf16>
    %cst_54 = arith.constant dense<0.000000e+00> : vector<64x8xf32>
    %53 = tpu.matmul %50, %52, %cst_54 {dimension_numbers = #tpu.dot_dimension_numbers<[1], [0], [0], [1], [0, 0, 1, 1], [], []>} : vector<64x4xbf16>, vector<4x8xbf16>, vector<64x8xf32> -> vector<64x8xf32>
    %54 = arith.addf %47, %53 : vector<64x8xf32>
    %c0_55 = arith.constant 0 : index
    %c1_56 = arith.constant 1 : index
    %c1_57 = arith.constant 1 : index
    %c0_58 = arith.constant 0 : index
    %55 = vector.load %arg2[%c0_55, %c1_56, %c1_57, %c0_58] : memref<1x9x9x4xbf16, #tpu.memory_space<vmem>>, vector<1x8x8x4xbf16>
    %56 = vector.shape_cast %55 : vector<1x8x8x4xbf16> to vector<8x8x4xbf16>
    %57 = vector.shape_cast %56 : vector<8x8x4xbf16> to vector<64x4xbf16>
    %c8 = arith.constant 8 : index
    %c0_59 = arith.constant 0 : index
    %c0_60 = arith.constant 0 : index
    %58 = vector.load %arg6[%c8, %c0_59, %c0_60] : memref<9x4x8xbf16, #tpu.memory_space<vmem>>, vector<1x4x8xbf16>
    %59 = vector.shape_cast %58 : vector<1x4x8xbf16> to vector<4x8xbf16>
    %cst_61 = arith.constant dense<0.000000e+00> : vector<64x8xf32>
    %60 = tpu.matmul %57, %59, %cst_61 {dimension_numbers = #tpu.dot_dimension_numbers<[1], [0], [0], [1], [0, 0, 1, 1], [], []>} : vector<64x4xbf16>, vector<4x8xbf16>, vector<64x8xf32> -> vector<64x8xf32>
    %61 = arith.addf %54, %60 : vector<64x8xf32>
    %c0_62 = arith.constant 0 : index
    %c0_63 = arith.constant 0 : index
    %62 = vector.load %arg7[%c0_62, %c0_63] : memref<1x8xf32, #tpu.memory_space<vmem>>, vector<1x8xf32>
    %63 = vector.broadcast %62 : vector<1x8xf32> to vector<64x8xf32>
    %64 = arith.mulf %61, %63 : vector<64x8xf32>
    %c0_64 = arith.constant 0 : index
    %c0_65 = arith.constant 0 : index
    %65 = vector.load %arg8[%c0_64, %c0_65] : memref<1x8xf32, #tpu.memory_space<vmem>>, vector<1x8xf32>
    %66 = vector.broadcast %65 : vector<1x8xf32> to vector<64x8xf32>
    %67 = arith.addf %64, %66 : vector<64x8xf32>
    %cst_66 = arith.constant 0.000000e+00 : f32
    %68 = vector.broadcast %cst_66 : f32 to vector<64x8xf32>
    %69 = arith.maximumf %67, %68 : vector<64x8xf32>
    %70 = vector.shape_cast %69 : vector<64x8xf32> to vector<8x8x8xf32>
    %71 = arith.truncf %70 : vector<8x8x8xf32> to vector<8x8x8xbf16>
    %cst_67 = arith.constant 0.000000e+00 : bf16
    %72 = vector.broadcast %cst_67 : bf16 to vector<10x10x8xbf16>
    %c0_68 = arith.constant 0 : index
    %c0_69 = arith.constant 0 : index
    %c0_70 = arith.constant 0 : index
    %c0_71 = arith.constant 0 : index
    %73 = vector.load %arg9[%c0_68, %c0_69, %c0_70, %c0_71] : memref<1x10x10x8xbf16, #tpu.memory_space<vmem>>, vector<1x10x10x8xbf16>
    %74 = vector.shape_cast %73 : vector<1x10x10x8xbf16> to vector<10x10x8xbf16>
    %75 = vector.shape_cast %72 : vector<10x10x8xbf16> to vector<1x10x10x8xbf16>
    tpu.vector_store %arg9[%c0_68, %c0_69, %c0_70, %c0_71], %75 {strides = array<i32>} : memref<1x10x10x8xbf16, #tpu.memory_space<vmem>>, vector<1x10x10x8xbf16>,
    %c0_72 = arith.constant 0 : index
    %c1_73 = arith.constant 1 : index
    %c1_74 = arith.constant 1 : index
    %c0_75 = arith.constant 0 : index
    %76 = vector.load %arg9[%c0_72, %c1_73, %c1_74, %c0_75] : memref<1x10x10x8xbf16, #tpu.memory_space<vmem>>, vector<1x8x8x8xbf16>
    %77 = vector.shape_cast %76 : vector<1x8x8x8xbf16> to vector<8x8x8xbf16>
    %78 = vector.shape_cast %71 : vector<8x8x8xbf16> to vector<1x8x8x8xbf16>
    tpu.vector_store %arg9[%c0_72, %c1_73, %c1_74, %c0_75], %78 {strides = array<i32>} : memref<1x10x10x8xbf16, #tpu.memory_space<vmem>>, vector<1x8x8x8xbf16>,
    return
  }
  func.func @transform_0(%arg0: i32, %arg1: i32) -> (i32, i32, i32, i32) {
    %c0_i32 = arith.constant 0 : i32
    %c0_i32_0 = arith.constant 0 : i32
    %c0_i32_1 = arith.constant 0 : i32
    %c0_i32_2 = arith.constant 0 : i32
    return %arg0, %c0_i32, %c0_i32_0, %c0_i32_1 : i32, i32, i32, i32
  }
  func.func @transform_1(%arg0: i32, %arg1: i32) -> (i32, i32, i32, i32) {
    %c0_i32 = arith.constant 0 : i32
    %c0_i32_0 = arith.constant 0 : i32
    %c0_i32_1 = arith.constant 0 : i32
    %c0_i32_2 = arith.constant 0 : i32
    return %arg0, %c0_i32, %c0_i32_0, %c0_i32_1 : i32, i32, i32, i32
  }
  func.func @transform_2(%arg0: i32, %arg1: i32) -> (i32, i32, i32, i32) {
    %c0_i32 = arith.constant 0 : i32
    %c0_i32_0 = arith.constant 0 : i32
    %c0_i32_1 = arith.constant 0 : i32
    %c0_i32_2 = arith.constant 0 : i32
    return %arg0, %c0_i32, %c0_i32_0, %c0_i32_1 : i32, i32, i32, i32
  }
  func.func @transform_3(%arg0: i32, %arg1: i32) -> (i32, i32, i32, i32) {
    %c0_i32 = arith.constant 0 : i32
    %c0_i32_0 = arith.constant 0 : i32
    %c0_i32_1 = arith.constant 0 : i32
    %c0_i32_2 = arith.constant 0 : i32
    return %arg0, %c0_i32, %c0_i32_0, %c0_i32_1 : i32, i32, i32, i32
  }
  func.func @transform_4(%arg0: i32, %arg1: i32) -> (i32, i32, i32) {
    %c0_i32 = arith.constant 0 : i32
    %c0_i32_0 = arith.constant 0 : i32
    %c0_i32_1 = arith.constant 0 : i32
    return %c0_i32, %c0_i32_0, %arg1 : i32, i32, i32
  }
  func.func @transform_5(%arg0: i32, %arg1: i32) -> (i32, i32) {
    %c0_i32 = arith.constant 0 : i32
    %c0_i32_0 = arith.constant 0 : i32
    return %c0_i32, %arg1 : i32, i32
  }
  func.func @transform_6(%arg0: i32, %arg1: i32) -> (i32, i32) {
    %c0_i32 = arith.constant 0 : i32
    %c0_i32_0 = arith.constant 0 : i32
    return %c0_i32, %arg1 : i32, i32
  }
  func.func @transform_7(%arg0: i32, %arg1: i32) -> (i32, i32, i32, i32) {
    %c0_i32 = arith.constant 0 : i32
    %c0_i32_0 = arith.constant 0 : i32
    %c0_i32_1 = arith.constant 0 : i32
    return %arg0, %c0_i32, %c0_i32_0, %arg1 : i32, i32, i32, i32
  }
}

module attributes {stable_mosaic.version = 11 : i64} {
  func.func @_conv_bn_kernel(%arg0: i32, %arg1: i32, %arg2: memref<1x10x10x8xbf16, #tpu.memory_space<vmem>>, %arg3: memref<9x8x8xbf16, #tpu.memory_space<vmem>>, %arg4: memref<1x8xf32, #tpu.memory_space<vmem>>, %arg5: memref<1x8xf32, #tpu.memory_space<vmem>>, %arg6: memref<1x9x9x4xbf16, #tpu.memory_space<vmem>>, %arg7: memref<4x8xbf16, #tpu.memory_space<vmem>>, %arg8: memref<1x8xf32, #tpu.memory_space<vmem>>, %arg9: memref<1x8xf32, #tpu.memory_space<vmem>>, %arg10: memref<1x8x8x8xf32, #tpu.memory_space<vmem>>) attributes {dimension_semantics = [#tpu.dimension_semantics<parallel>, #tpu.dimension_semantics<parallel>], iteration_bounds = array<i64: 2, 1>, scalar_prefetch = 0 : i64, scratch_operands = 0 : i64, tpu.core_type = #tpu.core_type<tc>, window_params = [{transform_indices = @transform_0, window_bounds = array<i64: 1, 10, 10, 8>}, {transform_indices = @transform_1, window_bounds = array<i64: 9, 8, 8>}, {transform_indices = @transform_2, window_bounds = array<i64: 1, 8>}, {transform_indices = @transform_3, window_bounds = array<i64: 1, 8>}, {transform_indices = @transform_4, window_bounds = array<i64: 1, 9, 9, 4>}, {transform_indices = @transform_5, window_bounds = array<i64: 4, 8>}, {transform_indices = @transform_6, window_bounds = array<i64: 1, 8>}, {transform_indices = @transform_7, window_bounds = array<i64: 1, 8>}, {transform_indices = @transform_8, window_bounds = array<i64: 1, 8, 8, 8>}]} {
    %c0 = arith.constant 0 : index
    %c0_0 = arith.constant 0 : index
    %c0_1 = arith.constant 0 : index
    %c0_2 = arith.constant 0 : index
    %0 = vector.load %arg2[%c0, %c0_0, %c0_1, %c0_2] : memref<1x10x10x8xbf16, #tpu.memory_space<vmem>>, vector<1x8x8x8xbf16>
    %1 = vector.shape_cast %0 : vector<1x8x8x8xbf16> to vector<8x8x8xbf16>
    %2 = vector.shape_cast %1 : vector<8x8x8xbf16> to vector<64x8xbf16>
    %c0_3 = arith.constant 0 : index
    %c0_4 = arith.constant 0 : index
    %c0_5 = arith.constant 0 : index
    %3 = vector.load %arg3[%c0_3, %c0_4, %c0_5] : memref<9x8x8xbf16, #tpu.memory_space<vmem>>, vector<1x8x8xbf16>
    %4 = vector.shape_cast %3 : vector<1x8x8xbf16> to vector<8x8xbf16>
    %cst = arith.constant dense<0.000000e+00> : vector<64x8xf32>
    %5 = tpu.matmul %2, %4, %cst {dimension_numbers = #tpu.dot_dimension_numbers<[1], [0], [0], [1], [0, 0, 1, 1], [], []>} : vector<64x8xbf16>, vector<8x8xbf16>, vector<64x8xf32> -> vector<64x8xf32>
    %c0_6 = arith.constant 0 : index
    %c0_7 = arith.constant 0 : index
    %c1 = arith.constant 1 : index
    %c0_8 = arith.constant 0 : index
    %6 = vector.load %arg2[%c0_6, %c0_7, %c1, %c0_8] : memref<1x10x10x8xbf16, #tpu.memory_space<vmem>>, vector<1x8x8x8xbf16>
    %7 = vector.shape_cast %6 : vector<1x8x8x8xbf16> to vector<8x8x8xbf16>
    %8 = vector.shape_cast %7 : vector<8x8x8xbf16> to vector<64x8xbf16>
    %c1_9 = arith.constant 1 : index
    %c0_10 = arith.constant 0 : index
    %c0_11 = arith.constant 0 : index
    %9 = vector.load %arg3[%c1_9, %c0_10, %c0_11] : memref<9x8x8xbf16, #tpu.memory_space<vmem>>, vector<1x8x8xbf16>
    %10 = vector.shape_cast %9 : vector<1x8x8xbf16> to vector<8x8xbf16>
    %cst_12 = arith.constant dense<0.000000e+00> : vector<64x8xf32>
    %11 = tpu.matmul %8, %10, %cst_12 {dimension_numbers = #tpu.dot_dimension_numbers<[1], [0], [0], [1], [0, 0, 1, 1], [], []>} : vector<64x8xbf16>, vector<8x8xbf16>, vector<64x8xf32> -> vector<64x8xf32>
    %12 = arith.addf %5, %11 : vector<64x8xf32>
    %c0_13 = arith.constant 0 : index
    %c0_14 = arith.constant 0 : index
    %c2 = arith.constant 2 : index
    %c0_15 = arith.constant 0 : index
    %13 = vector.load %arg2[%c0_13, %c0_14, %c2, %c0_15] : memref<1x10x10x8xbf16, #tpu.memory_space<vmem>>, vector<1x8x8x8xbf16>
    %14 = vector.shape_cast %13 : vector<1x8x8x8xbf16> to vector<8x8x8xbf16>
    %15 = vector.shape_cast %14 : vector<8x8x8xbf16> to vector<64x8xbf16>
    %c2_16 = arith.constant 2 : index
    %c0_17 = arith.constant 0 : index
    %c0_18 = arith.constant 0 : index
    %16 = vector.load %arg3[%c2_16, %c0_17, %c0_18] : memref<9x8x8xbf16, #tpu.memory_space<vmem>>, vector<1x8x8xbf16>
    %17 = vector.shape_cast %16 : vector<1x8x8xbf16> to vector<8x8xbf16>
    %cst_19 = arith.constant dense<0.000000e+00> : vector<64x8xf32>
    %18 = tpu.matmul %15, %17, %cst_19 {dimension_numbers = #tpu.dot_dimension_numbers<[1], [0], [0], [1], [0, 0, 1, 1], [], []>} : vector<64x8xbf16>, vector<8x8xbf16>, vector<64x8xf32> -> vector<64x8xf32>
    %19 = arith.addf %12, %18 : vector<64x8xf32>
    %c0_20 = arith.constant 0 : index
    %c1_21 = arith.constant 1 : index
    %c0_22 = arith.constant 0 : index
    %c0_23 = arith.constant 0 : index
    %20 = vector.load %arg2[%c0_20, %c1_21, %c0_22, %c0_23] : memref<1x10x10x8xbf16, #tpu.memory_space<vmem>>, vector<1x8x8x8xbf16>
    %21 = vector.shape_cast %20 : vector<1x8x8x8xbf16> to vector<8x8x8xbf16>
    %22 = vector.shape_cast %21 : vector<8x8x8xbf16> to vector<64x8xbf16>
    %c3 = arith.constant 3 : index
    %c0_24 = arith.constant 0 : index
    %c0_25 = arith.constant 0 : index
    %23 = vector.load %arg3[%c3, %c0_24, %c0_25] : memref<9x8x8xbf16, #tpu.memory_space<vmem>>, vector<1x8x8xbf16>
    %24 = vector.shape_cast %23 : vector<1x8x8xbf16> to vector<8x8xbf16>
    %cst_26 = arith.constant dense<0.000000e+00> : vector<64x8xf32>
    %25 = tpu.matmul %22, %24, %cst_26 {dimension_numbers = #tpu.dot_dimension_numbers<[1], [0], [0], [1], [0, 0, 1, 1], [], []>} : vector<64x8xbf16>, vector<8x8xbf16>, vector<64x8xf32> -> vector<64x8xf32>
    %26 = arith.addf %19, %25 : vector<64x8xf32>
    %c0_27 = arith.constant 0 : index
    %c1_28 = arith.constant 1 : index
    %c1_29 = arith.constant 1 : index
    %c0_30 = arith.constant 0 : index
    %27 = vector.load %arg2[%c0_27, %c1_28, %c1_29, %c0_30] : memref<1x10x10x8xbf16, #tpu.memory_space<vmem>>, vector<1x8x8x8xbf16>
    %28 = vector.shape_cast %27 : vector<1x8x8x8xbf16> to vector<8x8x8xbf16>
    %29 = vector.shape_cast %28 : vector<8x8x8xbf16> to vector<64x8xbf16>
    %c4 = arith.constant 4 : index
    %c0_31 = arith.constant 0 : index
    %c0_32 = arith.constant 0 : index
    %30 = vector.load %arg3[%c4, %c0_31, %c0_32] : memref<9x8x8xbf16, #tpu.memory_space<vmem>>, vector<1x8x8xbf16>
    %31 = vector.shape_cast %30 : vector<1x8x8xbf16> to vector<8x8xbf16>
    %cst_33 = arith.constant dense<0.000000e+00> : vector<64x8xf32>
    %32 = tpu.matmul %29, %31, %cst_33 {dimension_numbers = #tpu.dot_dimension_numbers<[1], [0], [0], [1], [0, 0, 1, 1], [], []>} : vector<64x8xbf16>, vector<8x8xbf16>, vector<64x8xf32> -> vector<64x8xf32>
    %33 = arith.addf %26, %32 : vector<64x8xf32>
    %c0_34 = arith.constant 0 : index
    %c1_35 = arith.constant 1 : index
    %c2_36 = arith.constant 2 : index
    %c0_37 = arith.constant 0 : index
    %34 = vector.load %arg2[%c0_34, %c1_35, %c2_36, %c0_37] : memref<1x10x10x8xbf16, #tpu.memory_space<vmem>>, vector<1x8x8x8xbf16>
    %35 = vector.shape_cast %34 : vector<1x8x8x8xbf16> to vector<8x8x8xbf16>
    %36 = vector.shape_cast %35 : vector<8x8x8xbf16> to vector<64x8xbf16>
    %c5 = arith.constant 5 : index
    %c0_38 = arith.constant 0 : index
    %c0_39 = arith.constant 0 : index
    %37 = vector.load %arg3[%c5, %c0_38, %c0_39] : memref<9x8x8xbf16, #tpu.memory_space<vmem>>, vector<1x8x8xbf16>
    %38 = vector.shape_cast %37 : vector<1x8x8xbf16> to vector<8x8xbf16>
    %cst_40 = arith.constant dense<0.000000e+00> : vector<64x8xf32>
    %39 = tpu.matmul %36, %38, %cst_40 {dimension_numbers = #tpu.dot_dimension_numbers<[1], [0], [0], [1], [0, 0, 1, 1], [], []>} : vector<64x8xbf16>, vector<8x8xbf16>, vector<64x8xf32> -> vector<64x8xf32>
    %40 = arith.addf %33, %39 : vector<64x8xf32>
    %c0_41 = arith.constant 0 : index
    %c2_42 = arith.constant 2 : index
    %c0_43 = arith.constant 0 : index
    %c0_44 = arith.constant 0 : index
    %41 = vector.load %arg2[%c0_41, %c2_42, %c0_43, %c0_44] : memref<1x10x10x8xbf16, #tpu.memory_space<vmem>>, vector<1x8x8x8xbf16>
    %42 = vector.shape_cast %41 : vector<1x8x8x8xbf16> to vector<8x8x8xbf16>
    %43 = vector.shape_cast %42 : vector<8x8x8xbf16> to vector<64x8xbf16>
    %c6 = arith.constant 6 : index
    %c0_45 = arith.constant 0 : index
    %c0_46 = arith.constant 0 : index
    %44 = vector.load %arg3[%c6, %c0_45, %c0_46] : memref<9x8x8xbf16, #tpu.memory_space<vmem>>, vector<1x8x8xbf16>
    %45 = vector.shape_cast %44 : vector<1x8x8xbf16> to vector<8x8xbf16>
    %cst_47 = arith.constant dense<0.000000e+00> : vector<64x8xf32>
    %46 = tpu.matmul %43, %45, %cst_47 {dimension_numbers = #tpu.dot_dimension_numbers<[1], [0], [0], [1], [0, 0, 1, 1], [], []>} : vector<64x8xbf16>, vector<8x8xbf16>, vector<64x8xf32> -> vector<64x8xf32>
    %47 = arith.addf %40, %46 : vector<64x8xf32>
    %c0_48 = arith.constant 0 : index
    %c2_49 = arith.constant 2 : index
    %c1_50 = arith.constant 1 : index
    %c0_51 = arith.constant 0 : index
    %48 = vector.load %arg2[%c0_48, %c2_49, %c1_50, %c0_51] : memref<1x10x10x8xbf16, #tpu.memory_space<vmem>>, vector<1x8x8x8xbf16>
    %49 = vector.shape_cast %48 : vector<1x8x8x8xbf16> to vector<8x8x8xbf16>
    %50 = vector.shape_cast %49 : vector<8x8x8xbf16> to vector<64x8xbf16>
    %c7 = arith.constant 7 : index
    %c0_52 = arith.constant 0 : index
    %c0_53 = arith.constant 0 : index
    %51 = vector.load %arg3[%c7, %c0_52, %c0_53] : memref<9x8x8xbf16, #tpu.memory_space<vmem>>, vector<1x8x8xbf16>
    %52 = vector.shape_cast %51 : vector<1x8x8xbf16> to vector<8x8xbf16>
    %cst_54 = arith.constant dense<0.000000e+00> : vector<64x8xf32>
    %53 = tpu.matmul %50, %52, %cst_54 {dimension_numbers = #tpu.dot_dimension_numbers<[1], [0], [0], [1], [0, 0, 1, 1], [], []>} : vector<64x8xbf16>, vector<8x8xbf16>, vector<64x8xf32> -> vector<64x8xf32>
    %54 = arith.addf %47, %53 : vector<64x8xf32>
    %c0_55 = arith.constant 0 : index
    %c2_56 = arith.constant 2 : index
    %c2_57 = arith.constant 2 : index
    %c0_58 = arith.constant 0 : index
    %55 = vector.load %arg2[%c0_55, %c2_56, %c2_57, %c0_58] : memref<1x10x10x8xbf16, #tpu.memory_space<vmem>>, vector<1x8x8x8xbf16>
    %56 = vector.shape_cast %55 : vector<1x8x8x8xbf16> to vector<8x8x8xbf16>
    %57 = vector.shape_cast %56 : vector<8x8x8xbf16> to vector<64x8xbf16>
    %c8 = arith.constant 8 : index
    %c0_59 = arith.constant 0 : index
    %c0_60 = arith.constant 0 : index
    %58 = vector.load %arg3[%c8, %c0_59, %c0_60] : memref<9x8x8xbf16, #tpu.memory_space<vmem>>, vector<1x8x8xbf16>
    %59 = vector.shape_cast %58 : vector<1x8x8xbf16> to vector<8x8xbf16>
    %cst_61 = arith.constant dense<0.000000e+00> : vector<64x8xf32>
    %60 = tpu.matmul %57, %59, %cst_61 {dimension_numbers = #tpu.dot_dimension_numbers<[1], [0], [0], [1], [0, 0, 1, 1], [], []>} : vector<64x8xbf16>, vector<8x8xbf16>, vector<64x8xf32> -> vector<64x8xf32>
    %61 = arith.addf %54, %60 : vector<64x8xf32>
    %c0_62 = arith.constant 0 : index
    %c0_63 = arith.constant 0 : index
    %62 = vector.load %arg4[%c0_62, %c0_63] : memref<1x8xf32, #tpu.memory_space<vmem>>, vector<1x8xf32>
    %63 = vector.broadcast %62 : vector<1x8xf32> to vector<64x8xf32>
    %64 = arith.mulf %61, %63 : vector<64x8xf32>
    %c0_64 = arith.constant 0 : index
    %c0_65 = arith.constant 0 : index
    %65 = vector.load %arg5[%c0_64, %c0_65] : memref<1x8xf32, #tpu.memory_space<vmem>>, vector<1x8xf32>
    %66 = vector.broadcast %65 : vector<1x8xf32> to vector<64x8xf32>
    %67 = arith.addf %64, %66 : vector<64x8xf32>
    %c0_66 = arith.constant 0 : index
    %c0_67 = arith.constant 0 : index
    %c0_68 = arith.constant 0 : index
    %c0_69 = arith.constant 0 : index
    %68 = vector.load %arg6[%c0_66, %c0_67, %c0_68, %c0_69] : memref<1x9x9x4xbf16, #tpu.memory_space<vmem>>, vector<1x8x8x4xbf16>
    %69 = vector.shape_cast %68 : vector<1x8x8x4xbf16> to vector<8x8x4xbf16>
    %70 = vector.shape_cast %69 : vector<8x8x4xbf16> to vector<64x4xbf16>
    %c0_70 = arith.constant 0 : index
    %c0_71 = arith.constant 0 : index
    %71 = vector.load %arg7[%c0_70, %c0_71] : memref<4x8xbf16, #tpu.memory_space<vmem>>, vector<4x8xbf16>
    %cst_72 = arith.constant dense<0.000000e+00> : vector<64x8xf32>
    %72 = tpu.matmul %70, %71, %cst_72 {dimension_numbers = #tpu.dot_dimension_numbers<[1], [0], [0], [1], [0, 0, 1, 1], [], []>} : vector<64x4xbf16>, vector<4x8xbf16>, vector<64x8xf32> -> vector<64x8xf32>
    %c0_73 = arith.constant 0 : index
    %c0_74 = arith.constant 0 : index
    %73 = vector.load %arg8[%c0_73, %c0_74] : memref<1x8xf32, #tpu.memory_space<vmem>>, vector<1x8xf32>
    %74 = vector.broadcast %73 : vector<1x8xf32> to vector<64x8xf32>
    %75 = arith.mulf %72, %74 : vector<64x8xf32>
    %c0_75 = arith.constant 0 : index
    %c0_76 = arith.constant 0 : index
    %76 = vector.load %arg9[%c0_75, %c0_76] : memref<1x8xf32, #tpu.memory_space<vmem>>, vector<1x8xf32>
    %77 = vector.broadcast %76 : vector<1x8xf32> to vector<64x8xf32>
    %78 = arith.addf %75, %77 : vector<64x8xf32>
    %79 = arith.addf %67, %78 : vector<64x8xf32>
    %cst_77 = arith.constant 0.000000e+00 : f32
    %80 = vector.broadcast %cst_77 : f32 to vector<64x8xf32>
    %81 = arith.maximumf %79, %80 : vector<64x8xf32>
    %82 = vector.shape_cast %81 : vector<64x8xf32> to vector<8x8x8xf32>
    %c0_78 = arith.constant 0 : index
    %c0_79 = arith.constant 0 : index
    %c0_80 = arith.constant 0 : index
    %c0_81 = arith.constant 0 : index
    %83 = vector.load %arg10[%c0_78, %c0_79, %c0_80, %c0_81] : memref<1x8x8x8xf32, #tpu.memory_space<vmem>>, vector<1x8x8x8xf32>
    %84 = vector.shape_cast %83 : vector<1x8x8x8xf32> to vector<8x8x8xf32>
    %85 = vector.shape_cast %82 : vector<8x8x8xf32> to vector<1x8x8x8xf32>
    tpu.vector_store %arg10[%c0_78, %c0_79, %c0_80, %c0_81], %85 {strides = array<i32>} : memref<1x8x8x8xf32, #tpu.memory_space<vmem>>, vector<1x8x8x8xf32>,
    return
  }
  func.func @transform_0(%arg0: i32, %arg1: i32) -> (i32, i32, i32, i32) {
    %c0_i32 = arith.constant 0 : i32
    %c0_i32_0 = arith.constant 0 : i32
    %c0_i32_1 = arith.constant 0 : i32
    %c0_i32_2 = arith.constant 0 : i32
    return %arg0, %c0_i32, %c0_i32_0, %c0_i32_1 : i32, i32, i32, i32
  }
  func.func @transform_1(%arg0: i32, %arg1: i32) -> (i32, i32, i32) {
    %c0_i32 = arith.constant 0 : i32
    %c0_i32_0 = arith.constant 0 : i32
    %c0_i32_1 = arith.constant 0 : i32
    return %c0_i32, %c0_i32_0, %arg1 : i32, i32, i32
  }
  func.func @transform_2(%arg0: i32, %arg1: i32) -> (i32, i32) {
    %c0_i32 = arith.constant 0 : i32
    %c0_i32_0 = arith.constant 0 : i32
    return %c0_i32, %arg1 : i32, i32
  }
  func.func @transform_3(%arg0: i32, %arg1: i32) -> (i32, i32) {
    %c0_i32 = arith.constant 0 : i32
    %c0_i32_0 = arith.constant 0 : i32
    return %c0_i32, %arg1 : i32, i32
  }
  func.func @transform_4(%arg0: i32, %arg1: i32) -> (i32, i32, i32, i32) {
    %c0_i32 = arith.constant 0 : i32
    %c0_i32_0 = arith.constant 0 : i32
    %c0_i32_1 = arith.constant 0 : i32
    %c0_i32_2 = arith.constant 0 : i32
    return %arg0, %c0_i32, %c0_i32_0, %c0_i32_1 : i32, i32, i32, i32
  }
  func.func @transform_5(%arg0: i32, %arg1: i32) -> (i32, i32) {
    %c0_i32 = arith.constant 0 : i32
    %c0_i32_0 = arith.constant 0 : i32
    return %c0_i32, %arg1 : i32, i32
  }
  func.func @transform_6(%arg0: i32, %arg1: i32) -> (i32, i32) {
    %c0_i32 = arith.constant 0 : i32
    %c0_i32_0 = arith.constant 0 : i32
    return %c0_i32, %arg1 : i32, i32
  }
  func.func @transform_7(%arg0: i32, %arg1: i32) -> (i32, i32) {
    %c0_i32 = arith.constant 0 : i32
    %c0_i32_0 = arith.constant 0 : i32
    return %c0_i32, %arg1 : i32, i32
  }
  func.func @transform_8(%arg0: i32, %arg1: i32) -> (i32, i32, i32, i32) {
    %c0_i32 = arith.constant 0 : i32
    %c0_i32_0 = arith.constant 0 : i32
    %c0_i32_1 = arith.constant 0 : i32
    return %arg0, %c0_i32, %c0_i32_0, %arg1 : i32, i32, i32, i32
  }
}

</mosaic_0001>

<llo_original>
// kernel: basic_block_forward.2
$region0: #{basic_block_forward.2}
  #allocation0 [shape = 'u32[]', space=smem, size = 0x4, offset = 0x4, fixed_abs, tag = 'smem constant byte address 0x4 - core index']
  #allocation1 [shape = 'u32[144,128]{1,0:T(1,128)}', space=vmem, size = 0x12000, scoped, tag = 'internal scratch']
  %s0 = inlined_call_operand.vmem [shape: bf16[2,9,9,4], index: 0, kind: input, shape index: {}]
  %s1 = inlined_call_operand.vmem [shape: bf16[2,9,9,4], index: 1, kind: input, shape index: {}]
  %s2 = inlined_call_operand.vmem [shape: bf16[2,9,9,4], index: 2, kind: input, shape index: {}]
  %s3 = inlined_call_operand.vmem [shape: bf16[2,9,9,4], index: 3, kind: input, shape index: {}]
  %s4 = inlined_call_operand.vmem [shape: bf16[9,4,8], index: 4, kind: input, shape index: {}]
  %s5 = inlined_call_operand.vmem [shape: f32[1,8], index: 5, kind: input, shape index: {}]
  %s6 = inlined_call_operand.vmem [shape: f32[1,8], index: 6, kind: input, shape index: {}]
  %s7 = inlined_call_operand.vmem [shape: bf16[2,10,10,8], index: 7, kind: output, shape index: {}]
  %s8 = sld [smem:[#allocation0]]
  $region61: #{basic_block_forward.2} parent=0
    _
  %s10 = ssub.s32 1, %s8
  %s11 = scalar_select 0, %s10, %s8
  loop: start=0, step=1, limit=4
  $region2: #{basic_block_forward.2} parent=0 // loop_pre_header
    _
  $region3: #{basic_block_forward.2} parent=0 // loop_header
    %s13 = sphi 0, %s17
    %p14 = scmp.ge.s32.totalorder %s13, 4
    %s20 = sphi 0, %s32
    %s21 = sphi 0, %s28
    %s22 = sphi 0, %s20
    %s23 = sphi 0, %s21
    %s24 = sphi 0, %s22
    %s25 = sphi 0, %s23
    %s35 = sphi 0, %s37
    %s38 = sphi 0, %s35
    %s39 = sphi 0, %s38
    %s55 = sphi 0, %s39
    %s61 = sphi 0, %s63
    %s64 = sphi 0, %s61
    %s65 = sphi 0, %s64
    %s81 = sphi 0, %s65
    %s87 = sphi 0, %s89
    %s90 = sphi 0, %s87
    %s91 = sphi 0, %s90
    %s107 = sphi 0, %s91
    %s113 = sphi 0, %s115
    %s116 = sphi 0, %s113
    %s117 = sphi 0, %s116
    %s133 = sphi 0, %s117
    %s139 = sphi 0, %s141
    %s142 = sphi 0, %s139
    %s143 = sphi 0, %s142
    %s159 = sphi 0, %s143
    %s165 = sphi 0, %s167
    %s168 = sphi 0, %s165
    %s169 = sphi 0, %s168
    %s185 = sphi 0, %s169
    %s191 = sphi 0, %s193
    %s194 = sphi 0, %s191
    %s195 = sphi 0, %s194
    %s211 = sphi 0, %s195
    %s219 = sphi 0, %s221
    %s222 = sphi 0, %s219
    %s223 = sphi 0, %s222
    %s239 = sphi 0, %s223
  $region4: #{basic_block_forward.2} parent=0 // loop_header_branch
    %16 = sbr.rel (%p14) target = $region8
  $region5: #{basic_block_forward.2} parent=0 // loop_body
    %s18 = ssub.s32 %s13, 1
    %s19 = ssub.s32 %s13, 2
    %s26 = sadd.s32 1, %s21
    %p27 = scmp.ge.s32.totalorder %s26, 1
    %s28 = scalar_select %p27, 0, %s26
    %s29 = sadd.s32 1, %s20
    %s30 = scalar_select %p27, %s29, %s20
    %p31 = scmp.ge.s32.totalorder %s30, 2
    %s32 = scalar_select %p31, 0, %s30
    %s33 = ssub.s32 %s20, %s32
    %p34 = scmp.eq.s32.totalorder %s33, 0
    %s36 = sadd.s32 %s35, 1
    %s37 = scalar_select %p34, %s35, %s36
    %p40 = pneg %p34
    %p41 = scmp.eq.s32.totalorder %s13, 1
    %p42 = por %p40, %p41
    %p43 = scmp.ne.s32.totalorder %s35, %s38
    %p44 = scmp.eq.s32.totalorder %s13, 0
    %p45 = por %p43, %p44
    %p46 = scmp.ne.s32.totalorder %s35, %s38
    %p47 = scmp.eq.s32.totalorder %s18, 1
    %p48 = por %p46, %p47
    %p49 = scmp.ne.s32.totalorder %s38, %s39
    %p50 = scmp.eq.s32.totalorder %s18, 0
    %p51 = por %p49, %p50
    %p52 = scmp.ne.s32.totalorder %s38, %s39
    %p53 = scmp.eq.s32.totalorder %s19, 1
    %p54 = por %p52, %p53
    %p56 = scmp.ne.s32.totalorder %s39, %s55
    %p57 = scmp.eq.s32.totalorder %s19, 0
    %p58 = por %p56, %p57
    %s59 = ssub.s32 %s20, %s32
    %p60 = scmp.eq.s32.totalorder %s59, 0
    %s62 = sadd.s32 %s61, 1
    %s63 = scalar_select %p60, %s61, %s62
    %p66 = pneg %p60
    %p67 = scmp.eq.s32.totalorder %s13, 1
    %p68 = por %p66, %p67
    %p69 = scmp.ne.s32.totalorder %s61, %s64
    %p70 = scmp.eq.s32.totalorder %s13, 0
    %p71 = por %p69, %p70
    %p72 = scmp.ne.s32.totalorder %s61, %s64
    %p73 = scmp.eq.s32.totalorder %s18, 1
    %p74 = por %p72, %p73
    %p75 = scmp.ne.s32.totalorder %s64, %s65
    %p76 = scmp.eq.s32.totalorder %s18, 0
    %p77 = por %p75, %p76
    %p78 = scmp.ne.s32.totalorder %s64, %s65
    %p79 = scmp.eq.s32.totalorder %s19, 1
    %p80 = por %p78, %p79
    %p82 = scmp.ne.s32.totalorder %s65, %s81
    %p83 = scmp.eq.s32.totalorder %s19, 0
    %p84 = por %p82, %p83
    %s85 = ssub.s32 %s20, %s32
    %p86 = scmp.eq.s32.totalorder %s85, 0
    %s88 = sadd.s32 %s87, 1
    %s89 = scalar_select %p86, %s87, %s88
    %p92 = pneg %p86
    %p93 = scmp.eq.s32.totalorder %s13, 1
    %p94 = por %p92, %p93
    %p95 = scmp.ne.s32.totalorder %s87, %s90
    %p96 = scmp.eq.s32.totalorder %s13, 0
    %p97 = por %p95, %p96
    %p98 = scmp.ne.s32.totalorder %s87, %s90
    %p99 = scmp.eq.s32.totalorder %s18, 1
    %p100 = por %p98, %p99
    %p101 = scmp.ne.s32.totalorder %s90, %s91
    %p102 = scmp.eq.s32.totalorder %s18, 0
    %p103 = por %p101, %p102
    %p104 = scmp.ne.s32.totalorder %s90, %s91
    %p105 = scmp.eq.s32.totalorder %s19, 1
    %p106 = por %p104, %p105
    %p108 = scmp.ne.s32.totalorder %s91, %s107
    %p109 = scmp.eq.s32.totalorder %s19, 0
    %p110 = por %p108, %p109
    %s111 = ssub.s32 %s20, %s32
    %p112 = scmp.eq.s32.totalorder %s111, 0
    %s114 = sadd.s32 %s113, 1
    %s115 = scalar_select %p112, %s113, %s114
    %p118 = pneg %p112
    %p119 = scmp.eq.s32.totalorder %s13, 1
    %p120 = por %p118, %p119
    %p121 = scmp.ne.s32.totalorder %s113, %s116
    %p122 = scmp.eq.s32.totalorder %s13, 0
    %p123 = por %p121, %p122
    %p124 = scmp.ne.s32.totalorder %s113, %s116
    %p125 = scmp.eq.s32.totalorder %s18, 1
    %p126 = por %p124, %p125
    %p127 = scmp.ne.s32.totalorder %s116, %s117
    %p128 = scmp.eq.s32.totalorder %s18, 0
    %p129 = por %p127, %p128
    %p130 = scmp.ne.s32.totalorder %s116, %s117
    %p131 = scmp.eq.s32.totalorder %s19, 1
    %p132 = por %p130, %p131
    %p134 = scmp.ne.s32.totalorder %s117, %s133
    %p135 = scmp.eq.s32.totalorder %s19, 0
    %p136 = por %p134, %p135
    %s137 = ssub.s32 %s21, %s28
    %p138 = scmp.eq.s32.totalorder %s137, 0
    %s140 = sadd.s32 %s139, 1
    %s141 = scalar_select %p138, %s139, %s140
    %p144 = pneg %p138
    %p145 = scmp.eq.s32.totalorder %s13, 1
    %p146 = por %p144, %p145
    %p147 = scmp.ne.s32.totalorder %s139, %s142
    %p148 = scmp.eq.s32.totalorder %s13, 0
    %p149 = por %p147, %p148
    %p150 = scmp.ne.s32.totalorder %s139, %s142
    %p151 = scmp.eq.s32.totalorder %s18, 1
    %p152 = por %p150, %p151
    %p153 = scmp.ne.s32.totalorder %s142, %s143
    %p154 = scmp.eq.s32.totalorder %s18, 0
    %p155 = por %p153, %p154
    %p156 = scmp.ne.s32.totalorder %s142, %s143
    %p157 = scmp.eq.s32.totalorder %s19, 1
    %p158 = por %p156, %p157
    %p160 = scmp.ne.s32.totalorder %s143, %s159
    %p161 = scmp.eq.s32.totalorder %s19, 0
    %p162 = por %p160, %p161
    %s163 = ssub.s32 %s21, %s28
    %p164 = scmp.eq.s32.totalorder %s163, 0
    %s166 = sadd.s32 %s165, 1
    %s167 = scalar_select %p164, %s165, %s166
    %p170 = pneg %p164
    %p171 = scmp.eq.s32.totalorder %s13, 1
    %p172 = por %p170, %p171
    %p173 = scmp.ne.s32.totalorder %s165, %s168
    %p174 = scmp.eq.s32.totalorder %s13, 0
    %p175 = por %p173, %p174
    %p176 = scmp.ne.s32.totalorder %s165, %s168
    %p177 = scmp.eq.s32.totalorder %s18, 1
    %p178 = por %p176, %p177
    %p179 = scmp.ne.s32.totalorder %s168, %s169
    %p180 = scmp.eq.s32.totalorder %s18, 0
    %p181 = por %p179, %p180
    %p182 = scmp.ne.s32.totalorder %s168, %s169
    %p183 = scmp.eq.s32.totalorder %s19, 1
    %p184 = por %p182, %p183
    %p186 = scmp.ne.s32.totalorder %s169, %s185
    %p187 = scmp.eq.s32.totalorder %s19, 0
    %p188 = por %p186, %p187
    %s189 = ssub.s32 %s21, %s28
    %p190 = scmp.eq.s32.totalorder %s189, 0
    %s192 = sadd.s32 %s191, 1
    %s193 = scalar_select %p190, %s191, %s192
    %p196 = pneg %p190
    %p197 = scmp.eq.s32.totalorder %s13, 1
    %p198 = por %p196, %p197
    %p199 = scmp.ne.s32.totalorder %s191, %s194
    %p200 = scmp.eq.s32.totalorder %s13, 0
    %p201 = por %p199, %p200
    %p202 = scmp.ne.s32.totalorder %s191, %s194
    %p203 = scmp.eq.s32.totalorder %s18, 1
    %p204 = por %p202, %p203
    %p205 = scmp.ne.s32.totalorder %s194, %s195
    %p206 = scmp.eq.s32.totalorder %s18, 0
    %p207 = por %p205, %p206
    %p208 = scmp.ne.s32.totalorder %s194, %s195
    %p209 = scmp.eq.s32.totalorder %s19, 1
    %p210 = por %p208, %p209
    %p212 = scmp.ne.s32.totalorder %s195, %s211
    %p213 = scmp.eq.s32.totalorder %s19, 0
    %p214 = por %p212, %p213
    %s215 = ssub.s32 %s20, %s32
    %s216 = ssub.s32 %s21, %s28
    %s217 = sor.u32 %s215, %s216
    %p218 = scmp.eq.s32.totalorder %s217, 0
    %s220 = sadd.s32 %s219, 1
    %s221 = scalar_select %p218, %s219, %s220
    %p224 = pneg %p218
    %p225 = scmp.eq.s32.totalorder %s13, 1
    %p226 = por %p224, %p225
    %p227 = scmp.ne.s32.totalorder %s219, %s222
    %p228 = scmp.eq.s32.totalorder %s13, 0
    %p229 = por %p227, %p228
    %p230 = scmp.ne.s32.totalorder %s219, %s222
    %p231 = scmp.eq.s32.totalorder %s18, 1
    %p232 = por %p230, %p231
    %p233 = scmp.ne.s32.totalorder %s222, %s223
    %p234 = scmp.eq.s32.totalorder %s18, 0
    %p235 = por %p233, %p234
    %p236 = scmp.ne.s32.totalorder %s222, %s223
    %p237 = scmp.eq.s32.totalorder %s19, 1
    %p238 = por %p236, %p237
    %p240 = scmp.ne.s32.totalorder %s223, %s239
    %p241 = scmp.eq.s32.totalorder %s19, 0
    %p242 = por %p240, %p241
    %p243 = scmp.le.s32.totalorder 1, %s13
    %p244 = scmp.lt.s32.totalorder %s13, 3
    %p245 = pnand %p243, %p244
    %p246 = pneg %p245
    // Predicated region
    $region9: #{basic_block_forward.2} parent=5 // pred_check
      _
    $region10: #{basic_block_forward.2} parent=5 // pred_check_branch
      %248 = sbr.rel (%p245) target = $region12
    $region11: #{basic_block_forward.2} parent=5 // pred_region
      %s249 = ssub.s32 %s13, 1
      // Predicated region
      $region13: #{basic_block_forward.2} parent=11 // pred_check
        %p250 = pneg %p155
      $region14: #{basic_block_forward.2} parent=11 // pred_check_branch
        %252 = sbr.rel (%p250) target = $region16
      $region15: #{basic_block_forward.2} parent=11 // pred_region
        %p253 = scmp.lt.s32.totalorder %s23, 0
        %s254 = scalar_select %p253, %s23, 0
        %s255 = smul.addr %s254, 2
        %s256 = scalar_lea.vmem %s4, %s255
      $region16: #{basic_block_forward.2} parent=11 // pred_fallthru
        _
      // Predicated region
      $region17: #{basic_block_forward.2} parent=11 // pred_check
        %p257 = pneg %p181
      $region18: #{basic_block_forward.2} parent=11 // pred_check_branch
        %259 = sbr.rel (%p257) target = $region20
      $region19: #{basic_block_forward.2} parent=11 // pred_region
        %p260 = scmp.lt.s32.totalorder %s23, 0
        %s261 = scalar_select %p260, %s23, 0
        %s262 = scalar_lea.vmem %s5, %s261
      $region20: #{basic_block_forward.2} parent=11 // pred_fallthru
        _
      // Predicated region
      $region21: #{basic_block_forward.2} parent=11 // pred_check
        %p263 = pneg %p207
      $region22: #{basic_block_forward.2} parent=11 // pred_check_branch
        %265 = sbr.rel (%p263) target = $region24
      $region23: #{basic_block_forward.2} parent=11 // pred_region
        %p266 = scmp.lt.s32.totalorder %s23, 0
        %s267 = scalar_select %p266, %s23, 0
        %s268 = scalar_lea.vmem %s6, %s267
      $region24: #{basic_block_forward.2} parent=11 // pred_fallthru
        _
    $region12: #{basic_block_forward.2} parent=5 // pred_fallthru
      _
    %p269 = scmp.lt.s32.totalorder %s13, 2
    // Predicated region
    $region25: #{basic_block_forward.2} parent=5 // pred_check
      %p270 = pneg %p269
    $region26: #{basic_block_forward.2} parent=5 // pred_check_branch
      %272 = sbr.rel (%p270) target = $region28
    $region27: #{basic_block_forward.2} parent=5 // pred_region
      // Predicated region
      $region29: #{basic_block_forward.2} parent=27 // pred_check
        %p273 = pneg %p45
      $region30: #{basic_block_forward.2} parent=27 // pred_check_branch
        %275 = sbr.rel (%p273) target = $region32
      $region31: #{basic_block_forward.2} parent=27 // pred_region
        %p276 = scmp.lt.s32.totalorder %s20, 1
        %s277 = scalar_select %p276, %s20, 1
        %s278 = smul.addr %s277, 18
        %s279 = smul.addr %s278, 4
        %s280 = scalar_lea.vmem %s0, %s279
      $region32: #{basic_block_forward.2} parent=27 // pred_fallthru
        _
      // Predicated region
      $region33: #{basic_block_forward.2} parent=27 // pred_check
        %p281 = pneg %p71
      $region34: #{basic_block_forward.2} parent=27 // pred_check_branch
        %283 = sbr.rel (%p281) target = $region36
      $region35: #{basic_block_forward.2} parent=27 // pred_region
        %p284 = scmp.lt.s32.totalorder %s20, 1
        %s285 = scalar_select %p284, %s20, 1
        %s286 = smul.addr %s285, 18
        %s287 = smul.addr %s286, 4
        %s288 = scalar_lea.vmem %s1, %s287
      $region36: #{basic_block_forward.2} parent=27 // pred_fallthru
        _
      // Predicated region
      $region37: #{basic_block_forward.2} parent=27 // pred_check
        %p289 = pneg %p97
      $region38: #{basic_block_forward.2} parent=27 // pred_check_branch
        %291 = sbr.rel (%p289) target = $region40
      $region39: #{basic_block_forward.2} parent=27 // pred_region
        %p292 = scmp.lt.s32.totalorder %s20, 1
        %s293 = scalar_select %p292, %s20, 1
        %s294 = smul.addr %s293, 18
        %s295 = smul.addr %s294, 4
        %s296 = scalar_lea.vmem %s2, %s295
      $region40: #{basic_block_forward.2} parent=27 // pred_fallthru
        _
      // Predicated region
      $region41: #{basic_block_forward.2} parent=27 // pred_check
        %p297 = pneg %p123
      $region42: #{basic_block_forward.2} parent=27 // pred_check_branch
        %299 = sbr.rel (%p297) target = $region44
      $region43: #{basic_block_forward.2} parent=27 // pred_region
        %p300 = scmp.lt.s32.totalorder %s20, 1
        %s301 = scalar_select %p300, %s20, 1
        %s302 = smul.addr %s301, 18
        %s303 = smul.addr %s302, 4
        %s304 = scalar_lea.vmem %s3, %s303
      $region44: #{basic_block_forward.2} parent=27 // pred_fallthru
        _
    $region28: #{basic_block_forward.2} parent=5 // pred_fallthru
      _
    %p305 = scmp.le.s32.totalorder 1, %s13
    %p306 = scmp.lt.s32.totalorder %s13, 3
    %p307 = pnand %p305, %p306
    %p308 = pneg %p307
    // Predicated region
    $region45: #{basic_block_forward.2} parent=5 // pred_check
      _
    $region46: #{basic_block_forward.2} parent=5 // pred_check_branch
      %310 = sbr.rel (%p307) target = $region48
    $region47: #{basic_block_forward.2} parent=5 // pred_region
      %s311 = ssub.s32 %s13, 1
      %p312 = scmp.lt.s32.totalorder %s22, 1
      %s313 = scalar_select %p312, %s22, 1
      %s314 = smul.addr %s313, 18
      %s315 = smul.addr %s314, 4
      %s316 = scalar_lea.vmem %s0, %s315
      %p317 = pneg %p51
      %p318 = pneg %p48
      %p319 = scmp.lt.s32.totalorder %s22, 1
      %s320 = scalar_select %p319, %s22, 1
      %s321 = smul.addr %s320, 18
      %s322 = smul.addr %s321, 4
      %s323 = scalar_lea.vmem %s1, %s322
      %p324 = pneg %p77
      %p325 = pneg %p74
      %p326 = scmp.lt.s32.totalorder %s22, 1
      %s327 = scalar_select %p326, %s22, 1
      %s328 = smul.addr %s327, 18
      %s329 = smul.addr %s328, 4
      %s330 = scalar_lea.vmem %s2, %s329
      %p331 = pneg %p103
      %p332 = pneg %p100
      %p333 = scmp.lt.s32.totalorder %s22, 1
      %s334 = scalar_select %p333, %s22, 1
      %s335 = smul.addr %s334, 18
      %s336 = smul.addr %s335, 4
      %s337 = scalar_lea.vmem %s3, %s336
      %p338 = pneg %p129
      %p339 = pneg %p126
      %p340 = scmp.lt.s32.totalorder %s23, 0
      %s341 = scalar_select %p340, %s23, 0
      %s342 = smul.addr %s341, 2
      %s343 = scalar_lea.vmem %s4, %s342
      %p344 = pneg %p155
      %p345 = pneg %p152
      %p346 = scmp.lt.s32.totalorder %s23, 0
      %s347 = scalar_select %p346, %s23, 0
      %s348 = scalar_lea.vmem %s5, %s347
      %p349 = pneg %p181
      %p350 = pneg %p178
      %p351 = scmp.lt.s32.totalorder %s23, 0
      %s352 = scalar_select %p351, %s23, 0
      %s353 = scalar_lea.vmem %s6, %s352
      %p354 = pneg %p207
      %p355 = pneg %p204
      %p356 = pneg %p235
      %p357 = pneg %p232
      %p358 = scmp.lt.s32.totalorder %s22, 1
      %s359 = scalar_select %p358, %s22, 1
      %p360 = scmp.lt.s32.totalorder %s23, 0
      %s361 = scalar_select %p360, %s23, 0
      %s362 = smul.addr %s359, 20
      %s363 = sadd.s32 %s361, %s362
      %s364 = smul.addr %s363, 4
      %s365 = scalar_lea.vmem %s7, %s364
      %p366 = scmp.lt.s32.totalorder %s22, 1
      %s367 = scalar_select %p366, %s22, 1
      %s368 = smul.addr %s367, 18
      %s369 = smul.addr %s368, 4
      %s370 = scalar_lea.vmem %s0, %s369
      %p371 = scmp.lt.s32.totalorder %s22, 1
      %s372 = scalar_select %p371, %s22, 1
      %s373 = smul.addr %s372, 18
      %s374 = smul.addr %s373, 4
      %s375 = scalar_lea.vmem %s1, %s374
      %p376 = scmp.lt.s32.totalorder %s22, 1
      %s377 = scalar_select %p376, %s22, 1
      %s378 = smul.addr %s377, 18
      %s379 = smul.addr %s378, 4
      %s380 = scalar_lea.vmem %s2, %s379
      %p381 = scmp.lt.s32.totalorder %s22, 1
      %s382 = scalar_select %p381, %s22, 1
      %s383 = smul.addr %s382, 18
      %s384 = smul.addr %s383, 4
      %s385 = scalar_lea.vmem %s3, %s384
      %p386 = scmp.lt.s32.totalorder %s23, 0
      %s387 = scalar_select %p386, %s23, 0
      %s388 = smul.addr %s387, 2
      %s389 = scalar_lea.vmem %s4, %s388
      %p390 = scmp.lt.s32.totalorder %s23, 0
      %s391 = scalar_select %p390, %s23, 0
      %s392 = scalar_lea.vmem %s5, %s391
      %p393 = scmp.lt.s32.totalorder %s23, 0
      %s394 = scalar_select %p393, %s23, 0
      %s395 = scalar_lea.vmem %s6, %s394
      %p396 = scmp.lt.s32.totalorder %s22, 1
      %s397 = scalar_select %p396, %s22, 1
      %p398 = scmp.lt.s32.totalorder %s23, 0
      %s399 = scalar_select %p398, %s23, 0
      %s400 = smul.addr %s397, 20
      %s401 = sadd.s32 %s399, %s400
      %s402 = smul.addr %s401, 4
      %s403 = scalar_lea.vmem %s7, %s402
      %v405 = vld [vmem:[%s370] sm:$0xf]
      %v406 = vld [vmem:[%s370 + $0x8] sm:$0xf]
      %v407 = vld [vmem:[%s370 + $0x10] sm:$0xf]
      %v408 = vld [vmem:[%s370 + $0x18] sm:$0xf]
      %v409 = vld [vmem:[%s370 + $0x20] sm:$0xf]
      %v410 = vld [vmem:[%s370 + $0x28] sm:$0xf]
      %v411 = vld [vmem:[%s370 + $0x30] sm:$0xf]
      %v412 = vld [vmem:[%s370 + $0x38] sm:$0xf]
      %v413 = vld [vmem:[%s389] sm:$0x3]
      %v414 = vld [vmem:[%s375] sm:$0xf]
      %v415 = vld [vmem:[%s375 + $0x8] sm:$0xf]
      %v416 = vld [vmem:[%s375 + $0x10] sm:$0xf]
      %v417 = vld [vmem:[%s375 + $0x18] sm:$0xf]
      %v418 = vld [vmem:[%s375 + $0x20] sm:$0xf]
      %v419 = vld [vmem:[%s375 + $0x28] sm:$0xf]
      %v420 = vld [vmem:[%s375 + $0x30] sm:$0xf]
      %v421 = vld [vmem:[%s375 + $0x38] sm:$0xf]
      %s422 = scalar_lea.vmem %s389, 2
      %v423 = vld [vmem:[%s422] sm:$0x3]
      %v432 = vunpack.c.l.b16 %v414
      %v433 = vunpack.c.l.b16 %v415
      %v434 = vunpack.c.l.b16 %v416
      %v435 = vunpack.c.l.b16 %v417
      %v436 = vunpack.c.l.b16 %v418
      %v437 = vunpack.c.l.b16 %v419
      %v438 = vunpack.c.l.b16 %v420
      %v439 = vunpack.c.l.b16 %v421
      %v440 = vpack.c.b16 %v433, %v432
      %v441 = vpack.c.b16 %v435, %v434
      %v442 = vpack.c.b16 %v437, %v436
      %v443 = vpack.c.b16 %v439, %v438
      %vm444 = vcmask 31744
      %v446 = vsel %vm444, %v440, 0
      %v449 = vsel %vm444, %v441, 0
      %v452 = vsel %vm444, %v442, 0
      %v455 = vsel %vm444, %v443, 0
      %vm457 = vcmask 1041408
      %v459 = vsel %vm457, %v423, 0
      %461 = vmatprep.subr.bf16.mxu0 0
      %462 = vmatpush1.bf16.msra.mxu0 %v459
      %463 = vmatprep.subr.bf16.mxu0 0
      %464 = vmatpush1.bf16.msra.mxu0 0
      %465 = vmatprep.subr.bf16.mxu0 0
      %466 = vmatpush1.bf16.msra.mxu0 0
      %467 = vmatprep.subr.bf16.mxu0 0
      %468 = vmatpush1.bf16.msra.mxu0 0
      %469 = vmatprep.subr.bf16.mxu0 0
      %470 = vmatpush1.bf16.msra.mxu0 0
      %471 = vmatprep.subr.bf16.mxu0 0
      %472 = vmatpush1.bf16.msra.mxu0 0
      %473 = vmatprep.subr.bf16.mxu0 0
      %474 = vmatpush1.bf16.msra.mxu0 0
      %475 = vmatprep.subr.bf16.mxu0 0
      %476 = vmatpush1.bf16.msra.mxu0 0
      %477 = vmatprep.subr.bf16.mxu0 0
      %478 = vmatpush1.bf16.msra.mxu0 0
      %479 = vmatprep.subr.bf16.mxu0 0
      %480 = vmatpush1.bf16.msra.mxu0 0
      %481 = vmatprep.subr.bf16.mxu0 0
      %482 = vmatpush1.bf16.msra.mxu0 0
      %483 = vmatprep.subr.bf16.mxu0 0
      %484 = vmatpush1.bf16.msra.mxu0 0
      %485 = vmatprep.subr.bf16.mxu0 0
      %486 = vmatpush1.bf16.msra.mxu0 0
      %487 = vmatprep.subr.bf16.mxu0 0
      %488 = vmatpush1.bf16.msra.mxu0 0
      %489 = vmatprep.subr.bf16.mxu0 0
      %490 = vmatpush1.bf16.msra.mxu0 0
      %491 = vmatprep.subr.bf16.mxu0 0
      %492 = vmatpush1.bf16.msra.mxu0 0
      %493 = vmatprep.mubr.bf16.mxu0 0
      %494 = vmatmul.mubr.bf16.gmra.mrb[0].mxu0 %v446
      %v495 = vpop.f32.mrb[0].mxu0
      %v496 = vadd.f32 0.0, %v495
      %v497 = vpop.f32.mrb[0].mxu0
      %v498 = vpop.f32.mrb[0].mxu0
      %v499 = vadd.f32 0.0, %v498
      %v500 = vpop.f32.mrb[0].mxu0
      %501 = vmatprep.mubr.bf16.mxu0 0
      %502 = vmatmul.mubr.bf16.gmra.mrb[0].mxu0 %v449
      %v503 = vpop.f32.mrb[0].mxu0
      %v504 = vadd.f32 0.0, %v503
      %v505 = vpop.f32.mrb[0].mxu0
      %v506 = vpop.f32.mrb[0].mxu0
      %v507 = vadd.f32 0.0, %v506
      %v508 = vpop.f32.mrb[0].mxu0
      %509 = vmatprep.mubr.bf16.mxu0 0
      %510 = vmatmul.mubr.bf16.gmra.mrb[0].mxu0 %v452
      %v511 = vpop.f32.mrb[0].mxu0
      %v512 = vadd.f32 0.0, %v511
      %v513 = vpop.f32.mrb[0].mxu0
      %v514 = vpop.f32.mrb[0].mxu0
      %v515 = vadd.f32 0.0, %v514
      %v516 = vpop.f32.mrb[0].mxu0
      %517 = vmatprep.mubr.bf16.mxu0 0
      %518 = vmatmul.mubr.bf16.gmra.mrb[0].mxu0 %v455
      %v519 = vpop.f32.mrb[0].mxu0
      %v520 = vadd.f32 0.0, %v519
      %v521 = vpop.f32.mrb[0].mxu0
      %v522 = vpop.f32.mrb[0].mxu0
      %v523 = vadd.f32 0.0, %v522
      %v524 = vpop.f32.mrb[0].mxu0
      %525 = vdwg.mxu0
      %v534 = vunpack.c.l.b16 %v405
      %v535 = vunpack.c.l.b16 %v406
      %v536 = vunpack.c.l.b16 %v407
      %v537 = vunpack.c.l.b16 %v408
      %v538 = vunpack.c.l.b16 %v409
      %v539 = vunpack.c.l.b16 %v410
      %v540 = vunpack.c.l.b16 %v411
      %v541 = vunpack.c.l.b16 %v412
      %v542 = vpack.c.b16 %v535, %v534
      %v543 = vpack.c.b16 %v537, %v536
      %v544 = vpack.c.b16 %v539, %v538
      %v545 = vpack.c.b16 %v541, %v540
      %v547 = vsel %vm444, %v542, 0
      %v550 = vsel %vm444, %v543, 0
      %v553 = vsel %vm444, %v544, 0
      %v556 = vsel %vm444, %v545, 0
      %v559 = vsel %vm457, %v413, 0
      %561 = vmatprep.subr.bf16.mxu0 0
      %562 = vmatpush1.bf16.msra.mxu0 %v559
      %563 = vmatprep.subr.bf16.mxu0 0
      %564 = vmatpush1.bf16.msra.mxu0 0
      %565 = vmatprep.subr.bf16.mxu0 0
      %566 = vmatpush1.bf16.msra.mxu0 0
      %567 = vmatprep.subr.bf16.mxu0 0
      %568 = vmatpush1.bf16.msra.mxu0 0
      %569 = vmatprep.subr.bf16.mxu0 0
      %570 = vmatpush1.bf16.msra.mxu0 0
      %571 = vmatprep.subr.bf16.mxu0 0
      %572 = vmatpush1.bf16.msra.mxu0 0
      %573 = vmatprep.subr.bf16.mxu0 0
      %574 = vmatpush1.bf16.msra.mxu0 0
      %575 = vmatprep.subr.bf16.mxu0 0
      %576 = vmatpush1.bf16.msra.mxu0 0
      %577 = vmatprep.subr.bf16.mxu0 0
      %578 = vmatpush1.bf16.msra.mxu0 0
      %579 = vmatprep.subr.bf16.mxu0 0
      %580 = vmatpush1.bf16.msra.mxu0 0
      %581 = vmatprep.subr.bf16.mxu0 0
      %582 = vmatpush1.bf16.msra.mxu0 0
      %583 = vmatprep.subr.bf16.mxu0 0
      %584 = vmatpush1.bf16.msra.mxu0 0
      %585 = vmatprep.subr.bf16.mxu0 0
      %586 = vmatpush1.bf16.msra.mxu0 0
      %587 = vmatprep.subr.bf16.mxu0 0
      %588 = vmatpush1.bf16.msra.mxu0 0
      %589 = vmatprep.subr.bf16.mxu0 0
      %590 = vmatpush1.bf16.msra.mxu0 0
      %591 = vmatprep.subr.bf16.mxu0 0
      %592 = vmatpush1.bf16.msra.mxu0 0
      %593 = vmatprep.mubr.bf16.mxu0 0
      %594 = vmatmul.mubr.bf16.gmra.mrb[0].mxu0 %v547
      %v595 = vpop.f32.mrb[0].mxu0
      %v596 = vadd.f32 %v496, %v595
      %v597 = vpop.f32.mrb[0].mxu0
      %v598 = vpop.f32.mrb[0].mxu0
      %v599 = vadd.f32 %v499, %v598
      %v600 = vpop.f32.mrb[0].mxu0
      %601 = vmatprep.mubr.bf16.mxu0 0
      %602 = vmatmul.mubr.bf16.gmra.mrb[0].mxu0 %v550
      %v603 = vpop.f32.mrb[0].mxu0
      %v604 = vadd.f32 %v504, %v603
      %v605 = vpop.f32.mrb[0].mxu0
      %v606 = vpop.f32.mrb[0].mxu0
      %v607 = vadd.f32 %v507, %v606
      %v608 = vpop.f32.mrb[0].mxu0
      %609 = vmatprep.mubr.bf16.mxu0 0
      %610 = vmatmul.mubr.bf16.gmra.mrb[0].mxu0 %v553
      %v611 = vpop.f32.mrb[0].mxu0
      %v612 = vadd.f32 %v512, %v611
      %v613 = vpop.f32.mrb[0].mxu0
      %v614 = vpop.f32.mrb[0].mxu0
      %v615 = vadd.f32 %v515, %v614
      %v616 = vpop.f32.mrb[0].mxu0
      %617 = vmatprep.mubr.bf16.mxu0 0
      %618 = vmatmul.mubr.bf16.gmra.mrb[0].mxu0 %v556
      %v619 = vpop.f32.mrb[0].mxu0
      %v620 = vadd.f32 %v520, %v619
      %v621 = vpop.f32.mrb[0].mxu0
      %v622 = vpop.f32.mrb[0].mxu0
      %v623 = vadd.f32 %v523, %v622
      %v624 = vpop.f32.mrb[0].mxu0
      %625 = vdwg.mxu0
      %v626 = vld [vmem:[%s370] sm:$0xf]
      %v627 = vld [vmem:[%s370 + $0x4] sm:$0x1]
      %v628 = vld [vmem:[%s370 + $0x8] sm:$0xf]
      %v629 = vld [vmem:[%s370 + $0xc] sm:$0x1]
      %v630 = vld [vmem:[%s370 + $0x10] sm:$0xf]
      %v631 = vld [vmem:[%s370 + $0x14] sm:$0x1]
      %v632 = vld [vmem:[%s370 + $0x18] sm:$0xf]
      %v633 = vld [vmem:[%s370 + $0x1c] sm:$0x1]
      %v634 = vld [vmem:[%s370 + $0x20] sm:$0xf]
      %v635 = vld [vmem:[%s370 + $0x24] sm:$0x1]
      %v636 = vld [vmem:[%s370 + $0x28] sm:$0xf]
      %v637 = vld [vmem:[%s370 + $0x2c] sm:$0x1]
      %v638 = vld [vmem:[%s370 + $0x30] sm:$0xf]
      %v639 = vld [vmem:[%s370 + $0x34] sm:$0x1]
      %v640 = vld [vmem:[%s370 + $0x38] sm:$0xf]
      %v641 = vld [vmem:[%s370 + $0x3c] sm:$0x1]
      %vm642 = vsmask.f32 3328
      %vm643 = vsmask.f32 7440
      %vm644 = vmor %vm642, %vm643
      %v646 = vshrl.u32 %v626, 16
      %v648 = vrot.slane %v646, 4
      %v649 = vshll.u32 %v626, 16
      %v651 = vrot.slane %v649, 5
      %v652 = vor.u32 %v648, %v651
      %v653 = vrot.slane %v652, 4
      %v655 = vshll.u32 %v627, 16
      %v657 = vrot.slane %v655, 5
      %v658 = vsel %vm644, %v653, %v657
      %v660 = vshrl.u32 %v628, 16
      %v662 = vrot.slane %v660, 4
      %v663 = vshll.u32 %v628, 16
      %v665 = vrot.slane %v663, 5
      %v666 = vor.u32 %v662, %v665
      %v667 = vrot.slane %v666, 4
      %v669 = vshll.u32 %v629, 16
      %v671 = vrot.slane %v669, 5
      %v672 = vsel %vm644, %v667, %v671
      %v674 = vshrl.u32 %v630, 16
      %v676 = vrot.slane %v674, 4
      %v677 = vshll.u32 %v630, 16
      %v679 = vrot.slane %v677, 5
      %v680 = vor.u32 %v676, %v679
      %v681 = vrot.slane %v680, 4
      %v683 = vshll.u32 %v631, 16
      %v685 = vrot.slane %v683, 5
      %v686 = vsel %vm644, %v681, %v685
      %v688 = vshrl.u32 %v632, 16
      %v690 = vrot.slane %v688, 4
      %v691 = vshll.u32 %v632, 16
      %v693 = vrot.slane %v691, 5
      %v694 = vor.u32 %v690, %v693
      %v695 = vrot.slane %v694, 4
      %v697 = vshll.u32 %v633, 16
      %v699 = vrot.slane %v697, 5
      %v700 = vsel %vm644, %v695, %v699
      %v702 = vshrl.u32 %v634, 16
      %v704 = vrot.slane %v702, 4
      %v705 = vshll.u32 %v634, 16
      %v707 = vrot.slane %v705, 5
      %v708 = vor.u32 %v704, %v707
      %v709 = vrot.slane %v708, 4
      %v711 = vshll.u32 %v635, 16
      %v713 = vrot.slane %v711, 5
      %v714 = vsel %vm644, %v709, %v713
      %v716 = vshrl.u32 %v636, 16
      %v718 = vrot.slane %v716, 4
      %v719 = vshll.u32 %v636, 16
      %v721 = vrot.slane %v719, 5
      %v722 = vor.u32 %v718, %v721
      %v723 = vrot.slane %v722, 4
      %v725 = vshll.u32 %v637, 16
      %v727 = vrot.slane %v725, 5
      %v728 = vsel %vm644, %v723, %v727
      %v730 = vshrl.u32 %v638, 16
      %v732 = vrot.slane %v730, 4
      %v733 = vshll.u32 %v638, 16
      %v735 = vrot.slane %v733, 5
      %v736 = vor.u32 %v732, %v735
      %v737 = vrot.slane %v736, 4
      %v739 = vshll.u32 %v639, 16
      %v741 = vrot.slane %v739, 5
      %v742 = vsel %vm644, %v737, %v741
      %v744 = vshrl.u32 %v640, 16
      %v746 = vrot.slane %v744, 4
      %v747 = vshll.u32 %v640, 16
      %v749 = vrot.slane %v747, 5
      %v750 = vor.u32 %v746, %v749
      %v751 = vrot.slane %v750, 4
      %v753 = vshll.u32 %v641, 16
      %v755 = vrot.slane %v753, 5
      %v756 = vsel %vm644, %v751, %v755
      %s757 = scalar_lea.vmem %s389, 4
      %v758 = vld [vmem:[%s757] sm:$0x3]
      %v759 = vunpack.c.l.b16 %v658
      %v760 = vunpack.c.l.b16 %v672
      %v761 = vunpack.c.l.b16 %v686
      %v762 = vunpack.c.l.b16 %v700
      %v763 = vunpack.c.l.b16 %v714
      %v764 = vunpack.c.l.b16 %v728
      %v765 = vunpack.c.l.b16 %v742
      %v766 = vunpack.c.l.b16 %v756
      %v767 = vpack.c.b16 %v760, %v759
      %v768 = vpack.c.b16 %v762, %v761
      %v769 = vpack.c.b16 %v764, %v763
      %v770 = vpack.c.b16 %v766, %v765
      %v772 = vsel %vm444, %v767, 0
      %v775 = vsel %vm444, %v768, 0
      %v778 = vsel %vm444, %v769, 0
      %v781 = vsel %vm444, %v770, 0
      %v784 = vsel %vm457, %v758, 0
      %786 = vmatprep.subr.bf16.mxu0 0
      %787 = vmatpush1.bf16.msra.mxu0 %v784
      %788 = vmatprep.subr.bf16.mxu0 0
      %789 = vmatpush1.bf16.msra.mxu0 0
      %790 = vmatprep.subr.bf16.mxu0 0
      %791 = vmatpush1.bf16.msra.mxu0 0
      %792 = vmatprep.subr.bf16.mxu0 0
      %793 = vmatpush1.bf16.msra.mxu0 0
      %794 = vmatprep.subr.bf16.mxu0 0
      %795 = vmatpush1.bf16.msra.mxu0 0
      %796 = vmatprep.subr.bf16.mxu0 0
      %797 = vmatpush1.bf16.msra.mxu0 0
      %798 = vmatprep.subr.bf16.mxu0 0
      %799 = vmatpush1.bf16.msra.mxu0 0
      %800 = vmatprep.subr.bf16.mxu0 0
      %801 = vmatpush1.bf16.msra.mxu0 0
      %802 = vmatprep.subr.bf16.mxu0 0
      %803 = vmatpush1.bf16.msra.mxu0 0
      %804 = vmatprep.subr.bf16.mxu0 0
      %805 = vmatpush1.bf16.msra.mxu0 0
      %806 = vmatprep.subr.bf16.mxu0 0
      %807 = vmatpush1.bf16.msra.mxu0 0
      %808 = vmatprep.subr.bf16.mxu0 0
      %809 = vmatpush1.bf16.msra.mxu0 0
      %810 = vmatprep.subr.bf16.mxu0 0
      %811 = vmatpush1.bf16.msra.mxu0 0
      %812 = vmatprep.subr.bf16.mxu0 0
      %813 = vmatpush1.bf16.msra.mxu0 0
      %814 = vmatprep.subr.bf16.mxu0 0
      %815 = vmatpush1.bf16.msra.mxu0 0
      %816 = vmatprep.subr.bf16.mxu0 0
      %817 = vmatpush1.bf16.msra.mxu0 0
      %818 = vmatprep.mubr.bf16.mxu0 0
      %819 = vmatmul.mubr.bf16.gmra.mrb[0].mxu0 %v772
      %v820 = vpop.f32.mrb[0].mxu0
      %v821 = vadd.f32 0.0, %v820
      %v822 = vpop.f32.mrb[0].mxu0
      %v823 = vpop.f32.mrb[0].mxu0
      %v824 = vadd.f32 0.0, %v823
      %v825 = vpop.f32.mrb[0].mxu0
      %826 = vmatprep.mubr.bf16.mxu0 0
      %827 = vmatmul.mubr.bf16.gmra.mrb[0].mxu0 %v775
      %v828 = vpop.f32.mrb[0].mxu0
      %v829 = vadd.f32 0.0, %v828
      %v830 = vpop.f32.mrb[0].mxu0
      %v831 = vpop.f32.mrb[0].mxu0
      %v832 = vadd.f32 0.0, %v831
      %v833 = vpop.f32.mrb[0].mxu0
      %834 = vmatprep.mubr.bf16.mxu0 0
      %835 = vmatmul.mubr.bf16.gmra.mrb[0].mxu0 %v778
      %v836 = vpop.f32.mrb[0].mxu0
      %v837 = vadd.f32 0.0, %v836
      %v838 = vpop.f32.mrb[0].mxu0
      %v839 = vpop.f32.mrb[0].mxu0
      %v840 = vadd.f32 0.0, %v839
      %v841 = vpop.f32.mrb[0].mxu0
      %842 = vmatprep.mubr.bf16.mxu0 0
      %843 = vmatmul.mubr.bf16.gmra.mrb[0].mxu0 %v781
      %v844 = vpop.f32.mrb[0].mxu0
      %v845 = vadd.f32 0.0, %v844
      %v846 = vpop.f32.mrb[0].mxu0
      %v847 = vpop.f32.mrb[0].mxu0
      %v848 = vadd.f32 0.0, %v847
      %v849 = vpop.f32.mrb[0].mxu0
      %850 = vdwg.mxu0
      %v851 = vadd.f32 %v596, %v821
      %v852 = vadd.f32 %v599, %v824
      %v853 = vadd.f32 %v604, %v829
      %v854 = vadd.f32 %v607, %v832
      %v855 = vadd.f32 %v612, %v837
      %v856 = vadd.f32 %v615, %v840
      %v857 = vadd.f32 %v620, %v845
      %v858 = vadd.f32 %v623, %v848
      %v859 = vld [vmem:[%s380] sm:$0xf]
      %v860 = vld [vmem:[%s380 + $0x8] sm:$0xf]
      %v861 = vld [vmem:[%s380 + $0x10] sm:$0xf]
      %v862 = vld [vmem:[%s380 + $0x18] sm:$0xf]
      %v863 = vld [vmem:[%s380 + $0x20] sm:$0xf]
      %v864 = vld [vmem:[%s380 + $0x28] sm:$0xf]
      %v865 = vld [vmem:[%s380 + $0x30] sm:$0xf]
      %v866 = vld [vmem:[%s380 + $0x38] sm:$0xf]
      %s867 = scalar_lea.vmem %s389, 6
      %v868 = vld [vmem:[%s867] sm:$0x3]
      %v877 = vunpack.c.l.b16 %v859
      %v878 = vunpack.c.l.b16 %v860
      %v879 = vunpack.c.l.b16 %v861
      %v880 = vunpack.c.l.b16 %v862
      %v881 = vunpack.c.l.b16 %v863
      %v882 = vunpack.c.l.b16 %v864
      %v883 = vunpack.c.l.b16 %v865
      %v884 = vunpack.c.l.b16 %v866
      %v885 = vpack.c.b16 %v878, %v877
      %v886 = vpack.c.b16 %v880, %v879
      %v887 = vpack.c.b16 %v882, %v881
      %v888 = vpack.c.b16 %v884, %v883
      %v890 = vsel %vm444, %v885, 0
      %v893 = vsel %vm444, %v886, 0
      %v896 = vsel %vm444, %v887, 0
      %v899 = vsel %vm444, %v888, 0
      %v902 = vsel %vm457, %v868, 0
      %904 = vmatprep.subr.bf16.mxu0 0
      %905 = vmatpush1.bf16.msra.mxu0 %v902
      %906 = vmatprep.subr.bf16.mxu0 0
      %907 = vmatpush1.bf16.msra.mxu0 0
      %908 = vmatprep.subr.bf16.mxu0 0
      %909 = vmatpush1.bf16.msra.mxu0 0
      %910 = vmatprep.subr.bf16.mxu0 0
      %911 = vmatpush1.bf16.msra.mxu0 0
      %912 = vmatprep.subr.bf16.mxu0 0
      %913 = vmatpush1.bf16.msra.mxu0 0
      %914 = vmatprep.subr.bf16.mxu0 0
      %915 = vmatpush1.bf16.msra.mxu0 0
      %916 = vmatprep.subr.bf16.mxu0 0
      %917 = vmatpush1.bf16.msra.mxu0 0
      %918 = vmatprep.subr.bf16.mxu0 0
      %919 = vmatpush1.bf16.msra.mxu0 0
      %920 = vmatprep.subr.bf16.mxu0 0
      %921 = vmatpush1.bf16.msra.mxu0 0
      %922 = vmatprep.subr.bf16.mxu0 0
      %923 = vmatpush1.bf16.msra.mxu0 0
      %924 = vmatprep.subr.bf16.mxu0 0
      %925 = vmatpush1.bf16.msra.mxu0 0
      %926 = vmatprep.subr.bf16.mxu0 0
      %927 = vmatpush1.bf16.msra.mxu0 0
      %928 = vmatprep.subr.bf16.mxu0 0
      %929 = vmatpush1.bf16.msra.mxu0 0
      %930 = vmatprep.subr.bf16.mxu0 0
      %931 = vmatpush1.bf16.msra.mxu0 0
      %932 = vmatprep.subr.bf16.mxu0 0
      %933 = vmatpush1.bf16.msra.mxu0 0
      %934 = vmatprep.subr.bf16.mxu0 0
      %935 = vmatpush1.bf16.msra.mxu0 0
      %936 = vmatprep.mubr.bf16.mxu0 0
      %937 = vmatmul.mubr.bf16.gmra.mrb[0].mxu0 %v890
      %v938 = vpop.f32.mrb[0].mxu0
      %v939 = vadd.f32 0.0, %v938
      %v940 = vpop.f32.mrb[0].mxu0
      %v941 = vpop.f32.mrb[0].mxu0
      %v942 = vadd.f32 0.0, %v941
      %v943 = vpop.f32.mrb[0].mxu0
      %944 = vmatprep.mubr.bf16.mxu0 0
      %945 = vmatmul.mubr.bf16.gmra.mrb[0].mxu0 %v893
      %v946 = vpop.f32.mrb[0].mxu0
      %v947 = vadd.f32 0.0, %v946
      %v948 = vpop.f32.mrb[0].mxu0
      %v949 = vpop.f32.mrb[0].mxu0
      %v950 = vadd.f32 0.0, %v949
      %v951 = vpop.f32.mrb[0].mxu0
      %952 = vmatprep.mubr.bf16.mxu0 0
      %953 = vmatmul.mubr.bf16.gmra.mrb[0].mxu0 %v896
      %v954 = vpop.f32.mrb[0].mxu0
      %v955 = vadd.f32 0.0, %v954
      %v956 = vpop.f32.mrb[0].mxu0
      %v957 = vpop.f32.mrb[0].mxu0
      %v958 = vadd.f32 0.0, %v957
      %v959 = vpop.f32.mrb[0].mxu0
      %960 = vmatprep.mubr.bf16.mxu0 0
      %961 = vmatmul.mubr.bf16.gmra.mrb[0].mxu0 %v899
      %v962 = vpop.f32.mrb[0].mxu0
      %v963 = vadd.f32 0.0, %v962
      %v964 = vpop.f32.mrb[0].mxu0
      %v965 = vpop.f32.mrb[0].mxu0
      %v966 = vadd.f32 0.0, %v965
      %v967 = vpop.f32.mrb[0].mxu0
      %968 = vdwg.mxu0
      %v969 = vadd.f32 %v851, %v939
      %v970 = vadd.f32 %v852, %v942
      %v971 = vadd.f32 %v853, %v947
      %v972 = vadd.f32 %v854, %v950
      %v973 = vadd.f32 %v855, %v955
      %v974 = vadd.f32 %v856, %v958
      %v975 = vadd.f32 %v857, %v963
      %v976 = vadd.f32 %v858, %v966
      %v977 = vld [vmem:[%s385] sm:$0xf]
      %v978 = vld [vmem:[%s385 + $0x8] sm:$0xf]
      %v979 = vld [vmem:[%s385 + $0x10] sm:$0xf]
      %v980 = vld [vmem:[%s385 + $0x18] sm:$0xf]
      %v981 = vld [vmem:[%s385 + $0x20] sm:$0xf]
      %v982 = vld [vmem:[%s385 + $0x28] sm:$0xf]
      %v983 = vld [vmem:[%s385 + $0x30] sm:$0xf]
      %v984 = vld [vmem:[%s385 + $0x38] sm:$0xf]
      %s985 = scalar_lea.vmem %s389, 8
      %v986 = vld [vmem:[%s985] sm:$0x3]
      %v995 = vunpack.c.l.b16 %v977
      %v996 = vunpack.c.l.b16 %v978
      %v997 = vunpack.c.l.b16 %v979
      %v998 = vunpack.c.l.b16 %v980
      %v999 = vunpack.c.l.b16 %v981
      %v1000 = vunpack.c.l.b16 %v982
      %v1001 = vunpack.c.l.b16 %v983
      %v1002 = vunpack.c.l.b16 %v984
      %v1003 = vpack.c.b16 %v996, %v995
      %v1004 = vpack.c.b16 %v998, %v997
      %v1005 = vpack.c.b16 %v1000, %v999
      %v1006 = vpack.c.b16 %v1002, %v1001
      %v1008 = vsel %vm444, %v1003, 0
      %v1011 = vsel %vm444, %v1004, 0
      %v1014 = vsel %vm444, %v1005, 0
      %v1017 = vsel %vm444, %v1006, 0
      %v1020 = vsel %vm457, %v986, 0
      %1022 = vmatprep.subr.bf16.mxu0 0
      %1023 = vmatpush1.bf16.msra.mxu0 %v1020
      %1024 = vmatprep.subr.bf16.mxu0 0
      %1025 = vmatpush1.bf16.msra.mxu0 0
      %1026 = vmatprep.subr.bf16.mxu0 0
      %1027 = vmatpush1.bf16.msra.mxu0 0
      %1028 = vmatprep.subr.bf16.mxu0 0
      %1029 = vmatpush1.bf16.msra.mxu0 0
      %1030 = vmatprep.subr.bf16.mxu0 0
      %1031 = vmatpush1.bf16.msra.mxu0 0
      %1032 = vmatprep.subr.bf16.mxu0 0
      %1033 = vmatpush1.bf16.msra.mxu0 0
      %1034 = vmatprep.subr.bf16.mxu0 0
      %1035 = vmatpush1.bf16.msra.mxu0 0
      %1036 = vmatprep.subr.bf16.mxu0 0
      %1037 = vmatpush1.bf16.msra.mxu0 0
      %1038 = vmatprep.subr.bf16.mxu0 0
      %1039 = vmatpush1.bf16.msra.mxu0 0
      %1040 = vmatprep.subr.bf16.mxu0 0
      %1041 = vmatpush1.bf16.msra.mxu0 0
      %1042 = vmatprep.subr.bf16.mxu0 0
      %1043 = vmatpush1.bf16.msra.mxu0 0
      %1044 = vmatprep.subr.bf16.mxu0 0
      %1045 = vmatpush1.bf16.msra.mxu0 0
      %1046 = vmatprep.subr.bf16.mxu0 0
      %1047 = vmatpush1.bf16.msra.mxu0 0
      %1048 = vmatprep.subr.bf16.mxu0 0
      %1049 = vmatpush1.bf16.msra.mxu0 0
      %1050 = vmatprep.subr.bf16.mxu0 0
      %1051 = vmatpush1.bf16.msra.mxu0 0
      %1052 = vmatprep.subr.bf16.mxu0 0
      %1053 = vmatpush1.bf16.msra.mxu0 0
      %1054 = vmatprep.mubr.bf16.mxu0 0
      %1055 = vmatmul.mubr.bf16.gmra.mrb[0].mxu0 %v1008
      %v1056 = vpop.f32.mrb[0].mxu0
      %v1057 = vadd.f32 0.0, %v1056
      %v1058 = vpop.f32.mrb[0].mxu0
      %v1059 = vpop.f32.mrb[0].mxu0
      %v1060 = vadd.f32 0.0, %v1059
      %v1061 = vpop.f32.mrb[0].mxu0
      %1062 = vmatprep.mubr.bf16.mxu0 0
      %1063 = vmatmul.mubr.bf16.gmra.mrb[0].mxu0 %v1011
      %v1064 = vpop.f32.mrb[0].mxu0
      %v1065 = vadd.f32 0.0, %v1064
      %v1066 = vpop.f32.mrb[0].mxu0
      %v1067 = vpop.f32.mrb[0].mxu0
      %v1068 = vadd.f32 0.0, %v1067
      %v1069 = vpop.f32.mrb[0].mxu0
      %1070 = vmatprep.mubr.bf16.mxu0 0
      %1071 = vmatmul.mubr.bf16.gmra.mrb[0].mxu0 %v1014
      %v1072 = vpop.f32.mrb[0].mxu0
      %v1073 = vadd.f32 0.0, %v1072
      %v1074 = vpop.f32.mrb[0].mxu0
      %v1075 = vpop.f32.mrb[0].mxu0
      %v1076 = vadd.f32 0.0, %v1075
      %v1077 = vpop.f32.mrb[0].mxu0
      %1078 = vmatprep.mubr.bf16.mxu0 0
      %1079 = vmatmul.mubr.bf16.gmra.mrb[0].mxu0 %v1017
      %v1080 = vpop.f32.mrb[0].mxu0
      %v1081 = vadd.f32 0.0, %v1080
      %v1082 = vpop.f32.mrb[0].mxu0
      %v1083 = vpop.f32.mrb[0].mxu0
      %v1084 = vadd.f32 0.0, %v1083
      %v1085 = vpop.f32.mrb[0].mxu0
      %1086 = vdwg.mxu0
      %v1087 = vadd.f32 %v969, %v1057
      %v1088 = vadd.f32 %v970, %v1060
      %v1089 = vadd.f32 %v971, %v1065
      %v1090 = vadd.f32 %v972, %v1068
      %v1091 = vadd.f32 %v973, %v1073
      %v1092 = vadd.f32 %v974, %v1076
      %v1093 = vadd.f32 %v975, %v1081
      %v1094 = vadd.f32 %v976, %v1084
      %v1095 = vld [vmem:[%s380] sm:$0xf]
      %v1096 = vld [vmem:[%s380 + $0x4] sm:$0x1]
      %v1097 = vld [vmem:[%s380 + $0x8] sm:$0xf]
      %v1098 = vld [vmem:[%s380 + $0xc] sm:$0x1]
      %v1099 = vld [vmem:[%s380 + $0x10] sm:$0xf]
      %v1100 = vld [vmem:[%s380 + $0x14] sm:$0x1]
      %v1101 = vld [vmem:[%s380 + $0x18] sm:$0xf]
      %v1102 = vld [vmem:[%s380 + $0x1c] sm:$0x1]
      %v1103 = vld [vmem:[%s380 + $0x20] sm:$0xf]
      %v1104 = vld [vmem:[%s380 + $0x24] sm:$0x1]
      %v1105 = vld [vmem:[%s380 + $0x28] sm:$0xf]
      %v1106 = vld [vmem:[%s380 + $0x2c] sm:$0x1]
      %v1107 = vld [vmem:[%s380 + $0x30] sm:$0xf]
      %v1108 = vld [vmem:[%s380 + $0x34] sm:$0x1]
      %v1109 = vld [vmem:[%s380 + $0x38] sm:$0xf]
      %v1110 = vld [vmem:[%s380 + $0x3c] sm:$0x1]
      %v1112 = vshrl.u32 %v1095, 16
      %v1114 = vrot.slane %v1112, 4
      %v1115 = vshll.u32 %v1095, 16
      %v1117 = vrot.slane %v1115, 5
      %v1118 = vor.u32 %v1114, %v1117
      %v1119 = vrot.slane %v1118, 4
      %v1121 = vshll.u32 %v1096, 16
      %v1123 = vrot.slane %v1121, 5
      %v1124 = vsel %vm644, %v1119, %v1123
      %v1126 = vshrl.u32 %v1097, 16
      %v1128 = vrot.slane %v1126, 4
      %v1129 = vshll.u32 %v1097, 16
      %v1131 = vrot.slane %v1129, 5
      %v1132 = vor.u32 %v1128, %v1131
      %v1133 = vrot.slane %v1132, 4
      %v1135 = vshll.u32 %v1098, 16
      %v1137 = vrot.slane %v1135, 5
      %v1138 = vsel %vm644, %v1133, %v1137
      %v1140 = vshrl.u32 %v1099, 16
      %v1142 = vrot.slane %v1140, 4
      %v1143 = vshll.u32 %v1099, 16
      %v1145 = vrot.slane %v1143, 5
      %v1146 = vor.u32 %v1142, %v1145
      %v1147 = vrot.slane %v1146, 4
      %v1149 = vshll.u32 %v1100, 16
      %v1151 = vrot.slane %v1149, 5
      %v1152 = vsel %vm644, %v1147, %v1151
      %v1154 = vshrl.u32 %v1101, 16
      %v1156 = vrot.slane %v1154, 4
      %v1157 = vshll.u32 %v1101, 16
      %v1159 = vrot.slane %v1157, 5
      %v1160 = vor.u32 %v1156, %v1159
      %v1161 = vrot.slane %v1160, 4
      %v1163 = vshll.u32 %v1102, 16
      %v1165 = vrot.slane %v1163, 5
      %v1166 = vsel %vm644, %v1161, %v1165
      %v1168 = vshrl.u32 %v1103, 16
      %v1170 = vrot.slane %v1168, 4
      %v1171 = vshll.u32 %v1103, 16
      %v1173 = vrot.slane %v1171, 5
      %v1174 = vor.u32 %v1170, %v1173
      %v1175 = vrot.slane %v1174, 4
      %v1177 = vshll.u32 %v1104, 16
      %v1179 = vrot.slane %v1177, 5
      %v1180 = vsel %vm644, %v1175, %v1179
      %v1182 = vshrl.u32 %v1105, 16
      %v1184 = vrot.slane %v1182, 4
      %v1185 = vshll.u32 %v1105, 16
      %v1187 = vrot.slane %v1185, 5
      %v1188 = vor.u32 %v1184, %v1187
      %v1189 = vrot.slane %v1188, 4
      %v1191 = vshll.u32 %v1106, 16
      %v1193 = vrot.slane %v1191, 5
      %v1194 = vsel %vm644, %v1189, %v1193
      %v1196 = vshrl.u32 %v1107, 16
      %v1198 = vrot.slane %v1196, 4
      %v1199 = vshll.u32 %v1107, 16
      %v1201 = vrot.slane %v1199, 5
      %v1202 = vor.u32 %v1198, %v1201
      %v1203 = vrot.slane %v1202, 4
      %v1205 = vshll.u32 %v1108, 16
      %v1207 = vrot.slane %v1205, 5
      %v1208 = vsel %vm644, %v1203, %v1207
      %v1210 = vshrl.u32 %v1109, 16
      %v1212 = vrot.slane %v1210, 4
      %v1213 = vshll.u32 %v1109, 16
      %v1215 = vrot.slane %v1213, 5
      %v1216 = vor.u32 %v1212, %v1215
      %v1217 = vrot.slane %v1216, 4
      %v1219 = vshll.u32 %v1110, 16
      %v1221 = vrot.slane %v1219, 5
      %v1222 = vsel %vm644, %v1217, %v1221
      %s1223 = scalar_lea.vmem %s389, 10
      %v1224 = vld [vmem:[%s1223] sm:$0x3]
      %v1225 = vunpack.c.l.b16 %v1124
      %v1226 = vunpack.c.l.b16 %v1138
      %v1227 = vunpack.c.l.b16 %v1152
      %v1228 = vunpack.c.l.b16 %v1166
      %v1229 = vunpack.c.l.b16 %v1180
      %v1230 = vunpack.c.l.b16 %v1194
      %v1231 = vunpack.c.l.b16 %v1208
      %v1232 = vunpack.c.l.b16 %v1222
      %v1233 = vpack.c.b16 %v1226, %v1225
      %v1234 = vpack.c.b16 %v1228, %v1227
      %v1235 = vpack.c.b16 %v1230, %v1229
      %v1236 = vpack.c.b16 %v1232, %v1231
      %v1238 = vsel %vm444, %v1233, 0
      %v1241 = vsel %vm444, %v1234, 0
      %v1244 = vsel %vm444, %v1235, 0
      %v1247 = vsel %vm444, %v1236, 0
      %v1250 = vsel %vm457, %v1224, 0
      %1252 = vmatprep.subr.bf16.mxu0 0
      %1253 = vmatpush1.bf16.msra.mxu0 %v1250
      %1254 = vmatprep.subr.bf16.mxu0 0
      %1255 = vmatpush1.bf16.msra.mxu0 0
      %1256 = vmatprep.subr.bf16.mxu0 0
      %1257 = vmatpush1.bf16.msra.mxu0 0
      %1258 = vmatprep.subr.bf16.mxu0 0
      %1259 = vmatpush1.bf16.msra.mxu0 0
      %1260 = vmatprep.subr.bf16.mxu0 0
      %1261 = vmatpush1.bf16.msra.mxu0 0
      %1262 = vmatprep.subr.bf16.mxu0 0
      %1263 = vmatpush1.bf16.msra.mxu0 0
      %1264 = vmatprep.subr.bf16.mxu0 0
      %1265 = vmatpush1.bf16.msra.mxu0 0
      %1266 = vmatprep.subr.bf16.mxu0 0
      %1267 = vmatpush1.bf16.msra.mxu0 0
      %1268 = vmatprep.subr.bf16.mxu0 0
      %1269 = vmatpush1.bf16.msra.mxu0 0
      %1270 = vmatprep.subr.bf16.mxu0 0
      %1271 = vmatpush1.bf16.msra.mxu0 0
      %1272 = vmatprep.subr.bf16.mxu0 0
      %1273 = vmatpush1.bf16.msra.mxu0 0
      %1274 = vmatprep.subr.bf16.mxu0 0
      %1275 = vmatpush1.bf16.msra.mxu0 0
      %1276 = vmatprep.subr.bf16.mxu0 0
      %1277 = vmatpush1.bf16.msra.mxu0 0
      %1278 = vmatprep.subr.bf16.mxu0 0
      %1279 = vmatpush1.bf16.msra.mxu0 0
      %1280 = vmatprep.subr.bf16.mxu0 0
      %1281 = vmatpush1.bf16.msra.mxu0 0
      %1282 = vmatprep.subr.bf16.mxu0 0
      %1283 = vmatpush1.bf16.msra.mxu0 0
      %1284 = vmatprep.mubr.bf16.mxu0 0
      %1285 = vmatmul.mubr.bf16.gmra.mrb[0].mxu0 %v1238
      %v1286 = vpop.f32.mrb[0].mxu0
      %v1287 = vadd.f32 0.0, %v1286
      %v1288 = vpop.f32.mrb[0].mxu0
      %v1289 = vpop.f32.mrb[0].mxu0
      %v1290 = vadd.f32 0.0, %v1289
      %v1291 = vpop.f32.mrb[0].mxu0
      %1292 = vmatprep.mubr.bf16.mxu0 0
      %1293 = vmatmul.mubr.bf16.gmra.mrb[0].mxu0 %v1241
      %v1294 = vpop.f32.mrb[0].mxu0
      %v1295 = vadd.f32 0.0, %v1294
      %v1296 = vpop.f32.mrb[0].mxu0
      %v1297 = vpop.f32.mrb[0].mxu0
      %v1298 = vadd.f32 0.0, %v1297
      %v1299 = vpop.f32.mrb[0].mxu0
      %1300 = vmatprep.mubr.bf16.mxu0 0
      %1301 = vmatmul.mubr.bf16.gmra.mrb[0].mxu0 %v1244
      %v1302 = vpop.f32.mrb[0].mxu0
      %v1303 = vadd.f32 0.0, %v1302
      %v1304 = vpop.f32.mrb[0].mxu0
      %v1305 = vpop.f32.mrb[0].mxu0
      %v1306 = vadd.f32 0.0, %v1305
      %v1307 = vpop.f32.mrb[0].mxu0
      %1308 = vmatprep.mubr.bf16.mxu0 0
      %1309 = vmatmul.mubr.bf16.gmra.mrb[0].mxu0 %v1247
      %v1310 = vpop.f32.mrb[0].mxu0
      %v1311 = vadd.f32 0.0, %v1310
      %v1312 = vpop.f32.mrb[0].mxu0
      %v1313 = vpop.f32.mrb[0].mxu0
      %v1314 = vadd.f32 0.0, %v1313
      %v1315 = vpop.f32.mrb[0].mxu0
      %1316 = vdwg.mxu0
      %v1317 = vadd.f32 %v1087, %v1287
      %v1318 = vadd.f32 %v1088, %v1290
      %v1319 = vadd.f32 %v1089, %v1295
      %v1320 = vadd.f32 %v1090, %v1298
      %v1321 = vadd.f32 %v1091, %v1303
      %v1322 = vadd.f32 %v1092, %v1306
      %v1323 = vadd.f32 %v1093, %v1311
      %v1324 = vadd.f32 %v1094, %v1314
      %s1325 = scalar_lea.vmem %s370, 8
      %v1326 = vld [vmem:[%s1325] sm:$0xf]
      %v1327 = vld [vmem:[%s1325 + $0x8] sm:$0xf]
      %v1328 = vld [vmem:[%s1325 + $0x10] sm:$0xf]
      %v1329 = vld [vmem:[%s1325 + $0x18] sm:$0xf]
      %v1330 = vld [vmem:[%s1325 + $0x20] sm:$0xf]
      %v1331 = vld [vmem:[%s1325 + $0x28] sm:$0xf]
      %v1332 = vld [vmem:[%s1325 + $0x30] sm:$0xf]
      %v1333 = vld [vmem:[%s1325 + $0x38] sm:$0xf]
      %s1334 = scalar_lea.vmem %s389, 12
      %v1335 = vld [vmem:[%s1334] sm:$0x3]
      %v1344 = vunpack.c.l.b16 %v1326
      %v1345 = vunpack.c.l.b16 %v1327
      %v1346 = vunpack.c.l.b16 %v1328
      %v1347 = vunpack.c.l.b16 %v1329
      %v1348 = vunpack.c.l.b16 %v1330
      %v1349 = vunpack.c.l.b16 %v1331
      %v1350 = vunpack.c.l.b16 %v1332
      %v1351 = vunpack.c.l.b16 %v1333
      %v1352 = vpack.c.b16 %v1345, %v1344
      %v1353 = vpack.c.b16 %v1347, %v1346
      %v1354 = vpack.c.b16 %v1349, %v1348
      %v1355 = vpack.c.b16 %v1351, %v1350
      %v1357 = vsel %vm444, %v1352, 0
      %v1360 = vsel %vm444, %v1353, 0
      %v1363 = vsel %vm444, %v1354, 0
      %v1366 = vsel %vm444, %v1355, 0
      %v1369 = vsel %vm457, %v1335, 0
      %1371 = vmatprep.subr.bf16.mxu0 0
      %1372 = vmatpush1.bf16.msra.mxu0 %v1369
      %1373 = vmatprep.subr.bf16.mxu0 0
      %1374 = vmatpush1.bf16.msra.mxu0 0
      %1375 = vmatprep.subr.bf16.mxu0 0
      %1376 = vmatpush1.bf16.msra.mxu0 0
      %1377 = vmatprep.subr.bf16.mxu0 0
      %1378 = vmatpush1.bf16.msra.mxu0 0
      %1379 = vmatprep.subr.bf16.mxu0 0
      %1380 = vmatpush1.bf16.msra.mxu0 0
      %1381 = vmatprep.subr.bf16.mxu0 0
      %1382 = vmatpush1.bf16.msra.mxu0 0
      %1383 = vmatprep.subr.bf16.mxu0 0
      %1384 = vmatpush1.bf16.msra.mxu0 0
      %1385 = vmatprep.subr.bf16.mxu0 0
      %1386 = vmatpush1.bf16.msra.mxu0 0
      %1387 = vmatprep.subr.bf16.mxu0 0
      %1388 = vmatpush1.bf16.msra.mxu0 0
      %1389 = vmatprep.subr.bf16.mxu0 0
      %1390 = vmatpush1.bf16.msra.mxu0 0
      %1391 = vmatprep.subr.bf16.mxu0 0
      %1392 = vmatpush1.bf16.msra.mxu0 0
      %1393 = vmatprep.subr.bf16.mxu0 0
      %1394 = vmatpush1.bf16.msra.mxu0 0
      %1395 = vmatprep.subr.bf16.mxu0 0
      %1396 = vmatpush1.bf16.msra.mxu0 0
      %1397 = vmatprep.subr.bf16.mxu0 0
      %1398 = vmatpush1.bf16.msra.mxu0 0
      %1399 = vmatprep.subr.bf16.mxu0 0
      %1400 = vmatpush1.bf16.msra.mxu0 0
      %1401 = vmatprep.subr.bf16.mxu0 0
      %1402 = vmatpush1.bf16.msra.mxu0 0
      %1403 = vmatprep.mubr.bf16.mxu0 0
      %1404 = vmatmul.mubr.bf16.gmra.mrb[0].mxu0 %v1357
      %v1405 = vpop.f32.mrb[0].mxu0
      %v1406 = vadd.f32 0.0, %v1405
      %v1407 = vpop.f32.mrb[0].mxu0
      %v1408 = vpop.f32.mrb[0].mxu0
      %v1409 = vadd.f32 0.0, %v1408
      %v1410 = vpop.f32.mrb[0].mxu0
      %1411 = vmatprep.mubr.bf16.mxu0 0
      %1412 = vmatmul.mubr.bf16.gmra.mrb[0].mxu0 %v1360
      %v1413 = vpop.f32.mrb[0].mxu0
      %v1414 = vadd.f32 0.0, %v1413
      %v1415 = vpop.f32.mrb[0].mxu0
      %v1416 = vpop.f32.mrb[0].mxu0
      %v1417 = vadd.f32 0.0, %v1416
      %v1418 = vpop.f32.mrb[0].mxu0
      %1419 = vmatprep.mubr.bf16.mxu0 0
      %1420 = vmatmul.mubr.bf16.gmra.mrb[0].mxu0 %v1363
      %v1421 = vpop.f32.mrb[0].mxu0
      %v1422 = vadd.f32 0.0, %v1421
      %v1423 = vpop.f32.mrb[0].mxu0
      %v1424 = vpop.f32.mrb[0].mxu0
      %v1425 = vadd.f32 0.0, %v1424
      %v1426 = vpop.f32.mrb[0].mxu0
      %1427 = vmatprep.mubr.bf16.mxu0 0
      %1428 = vmatmul.mubr.bf16.gmra.mrb[0].mxu0 %v1366
      %v1429 = vpop.f32.mrb[0].mxu0
      %v1430 = vadd.f32 0.0, %v1429
      %v1431 = vpop.f32.mrb[0].mxu0
      %v1432 = vpop.f32.mrb[0].mxu0
      %v1433 = vadd.f32 0.0, %v1432
      %v1434 = vpop.f32.mrb[0].mxu0
      %1435 = vdwg.mxu0
      %v1436 = vadd.f32 %v1317, %v1406
      %v1437 = vadd.f32 %v1318, %v1409
      %v1438 = vadd.f32 %v1319, %v1414
      %v1439 = vadd.f32 %v1320, %v1417
      %v1440 = vadd.f32 %v1321, %v1422
      %v1441 = vadd.f32 %v1322, %v1425
      %v1442 = vadd.f32 %v1323, %v1430
      %v1443 = vadd.f32 %v1324, %v1433
      %s1444 = scalar_lea.vmem %s375, 8
      %v1445 = vld [vmem:[%s1444] sm:$0xf]
      %v1446 = vld [vmem:[%s1444 + $0x8] sm:$0xf]
      %v1447 = vld [vmem:[%s1444 + $0x10] sm:$0xf]
      %v1448 = vld [vmem:[%s1444 + $0x18] sm:$0xf]
      %v1449 = vld [vmem:[%s1444 + $0x20] sm:$0xf]
      %v1450 = vld [vmem:[%s1444 + $0x28] sm:$0xf]
      %v1451 = vld [vmem:[%s1444 + $0x30] sm:$0xf]
      %v1452 = vld [vmem:[%s1444 + $0x38] sm:$0xf]
      %s1453 = scalar_lea.vmem %s389, 14
      %v1454 = vld [vmem:[%s1453] sm:$0x3]
      %v1463 = vunpack.c.l.b16 %v1445
      %v1464 = vunpack.c.l.b16 %v1446
      %v1465 = vunpack.c.l.b16 %v1447
      %v1466 = vunpack.c.l.b16 %v1448
      %v1467 = vunpack.c.l.b16 %v1449
      %v1468 = vunpack.c.l.b16 %v1450
      %v1469 = vunpack.c.l.b16 %v1451
      %v1470 = vunpack.c.l.b16 %v1452
      %v1471 = vpack.c.b16 %v1464, %v1463
      %v1472 = vpack.c.b16 %v1466, %v1465
      %v1473 = vpack.c.b16 %v1468, %v1467
      %v1474 = vpack.c.b16 %v1470, %v1469
      %v1476 = vsel %vm444, %v1471, 0
      %v1479 = vsel %vm444, %v1472, 0
      %v1482 = vsel %vm444, %v1473, 0
      %v1485 = vsel %vm444, %v1474, 0
      %v1488 = vsel %vm457, %v1454, 0
      %1490 = vmatprep.subr.bf16.mxu0 0
      %1491 = vmatpush1.bf16.msra.mxu0 %v1488
      %1492 = vmatprep.subr.bf16.mxu0 0
      %1493 = vmatpush1.bf16.msra.mxu0 0
      %1494 = vmatprep.subr.bf16.mxu0 0
      %1495 = vmatpush1.bf16.msra.mxu0 0
      %1496 = vmatprep.subr.bf16.mxu0 0
      %1497 = vmatpush1.bf16.msra.mxu0 0
      %1498 = vmatprep.subr.bf16.mxu0 0
      %1499 = vmatpush1.bf16.msra.mxu0 0
      %1500 = vmatprep.subr.bf16.mxu0 0
      %1501 = vmatpush1.bf16.msra.mxu0 0
      %1502 = vmatprep.subr.bf16.mxu0 0
      %1503 = vmatpush1.bf16.msra.mxu0 0
      %1504 = vmatprep.subr.bf16.mxu0 0
      %1505 = vmatpush1.bf16.msra.mxu0 0
      %1506 = vmatprep.subr.bf16.mxu0 0
      %1507 = vmatpush1.bf16.msra.mxu0 0
      %1508 = vmatprep.subr.bf16.mxu0 0
      %1509 = vmatpush1.bf16.msra.mxu0 0
      %1510 = vmatprep.subr.bf16.mxu0 0
      %1511 = vmatpush1.bf16.msra.mxu0 0
      %1512 = vmatprep.subr.bf16.mxu0 0
      %1513 = vmatpush1.bf16.msra.mxu0 0
      %1514 = vmatprep.subr.bf16.mxu0 0
      %1515 = vmatpush1.bf16.msra.mxu0 0
      %1516 = vmatprep.subr.bf16.mxu0 0
      %1517 = vmatpush1.bf16.msra.mxu0 0
      %1518 = vmatprep.subr.bf16.mxu0 0
      %1519 = vmatpush1.bf16.msra.mxu0 0
      %1520 = vmatprep.subr.bf16.mxu0 0
      %1521 = vmatpush1.bf16.msra.mxu0 0
      %1522 = vmatprep.mubr.bf16.mxu0 0
      %1523 = vmatmul.mubr.bf16.gmra.mrb[0].mxu0 %v1476
      %v1524 = vpop.f32.mrb[0].mxu0
      %v1525 = vadd.f32 0.0, %v1524
      %v1526 = vpop.f32.mrb[0].mxu0
      %v1527 = vpop.f32.mrb[0].mxu0
      %v1528 = vadd.f32 0.0, %v1527
      %v1529 = vpop.f32.mrb[0].mxu0
      %1530 = vmatprep.mubr.bf16.mxu0 0
      %1531 = vmatmul.mubr.bf16.gmra.mrb[0].mxu0 %v1479
      %v1532 = vpop.f32.mrb[0].mxu0
      %v1533 = vadd.f32 0.0, %v1532
      %v1534 = vpop.f32.mrb[0].mxu0
      %v1535 = vpop.f32.mrb[0].mxu0
      %v1536 = vadd.f32 0.0, %v1535
      %v1537 = vpop.f32.mrb[0].mxu0
      %1538 = vmatprep.mubr.bf16.mxu0 0
      %1539 = vmatmul.mubr.bf16.gmra.mrb[0].mxu0 %v1482
      %v1540 = vpop.f32.mrb[0].mxu0
      %v1541 = vadd.f32 0.0, %v1540
      %v1542 = vpop.f32.mrb[0].mxu0
      %v1543 = vpop.f32.mrb[0].mxu0
      %v1544 = vadd.f32 0.0, %v1543
      %v1545 = vpop.f32.mrb[0].mxu0
      %1546 = vmatprep.mubr.bf16.mxu0 0
      %1547 = vmatmul.mubr.bf16.gmra.mrb[0].mxu0 %v1485
      %v1548 = vpop.f32.mrb[0].mxu0
      %v1549 = vadd.f32 0.0, %v1548
      %v1550 = vpop.f32.mrb[0].mxu0
      %v1551 = vpop.f32.mrb[0].mxu0
      %v1552 = vadd.f32 0.0, %v1551
      %v1553 = vpop.f32.mrb[0].mxu0
      %1554 = vdwg.mxu0
      %v1555 = vadd.f32 %v1436, %v1525
      %v1556 = vadd.f32 %v1437, %v1528
      %v1557 = vadd.f32 %v1438, %v1533
      %v1558 = vadd.f32 %v1439, %v1536
      %v1559 = vadd.f32 %v1440, %v1541
      %v1560 = vadd.f32 %v1441, %v1544
      %v1561 = vadd.f32 %v1442, %v1549
      %v1562 = vadd.f32 %v1443, %v1552
      %v1563 = vld [vmem:[%s1325] sm:$0xf]
      %v1564 = vld [vmem:[%s1325 + $0x4] sm:$0x1]
      %v1565 = vld [vmem:[%s1325 + $0x8] sm:$0xf]
      %v1566 = vld [vmem:[%s1325 + $0xc] sm:$0x1]
      %v1567 = vld [vmem:[%s1325 + $0x10] sm:$0xf]
      %v1568 = vld [vmem:[%s1325 + $0x14] sm:$0x1]
      %v1569 = vld [vmem:[%s1325 + $0x18] sm:$0xf]
      %v1570 = vld [vmem:[%s1325 + $0x1c] sm:$0x1]
      %v1571 = vld [vmem:[%s1325 + $0x20] sm:$0xf]
      %v1572 = vld [vmem:[%s1325 + $0x24] sm:$0x1]
      %v1573 = vld [vmem:[%s1325 + $0x28] sm:$0xf]
      %v1574 = vld [vmem:[%s1325 + $0x2c] sm:$0x1]
      %v1575 = vld [vmem:[%s1325 + $0x30] sm:$0xf]
      %v1576 = vld [vmem:[%s1325 + $0x34] sm:$0x1]
      %v1577 = vld [vmem:[%s1325 + $0x38] sm:$0xf]
      %v1578 = vld [vmem:[%s1325 + $0x3c] sm:$0x1]
      %v1580 = vshrl.u32 %v1563, 16
      %v1582 = vrot.slane %v1580, 4
      %v1583 = vshll.u32 %v1563, 16
      %v1585 = vrot.slane %v1583, 5
      %v1586 = vor.u32 %v1582, %v1585
      %v1587 = vrot.slane %v1586, 4
      %v1589 = vshll.u32 %v1564, 16
      %v1591 = vrot.slane %v1589, 5
      %v1592 = vsel %vm644, %v1587, %v1591
      %v1594 = vshrl.u32 %v1565, 16
      %v1596 = vrot.slane %v1594, 4
      %v1597 = vshll.u32 %v1565, 16
      %v1599 = vrot.slane %v1597, 5
      %v1600 = vor.u32 %v1596, %v1599
      %v1601 = vrot.slane %v1600, 4
      %v1603 = vshll.u32 %v1566, 16
      %v1605 = vrot.slane %v1603, 5
      %v1606 = vsel %vm644, %v1601, %v1605
      %v1608 = vshrl.u32 %v1567, 16
      %v1610 = vrot.slane %v1608, 4
      %v1611 = vshll.u32 %v1567, 16
      %v1613 = vrot.slane %v1611, 5
      %v1614 = vor.u32 %v1610, %v1613
      %v1615 = vrot.slane %v1614, 4
      %v1617 = vshll.u32 %v1568, 16
      %v1619 = vrot.slane %v1617, 5
      %v1620 = vsel %vm644, %v1615, %v1619
      %v1622 = vshrl.u32 %v1569, 16
      %v1624 = vrot.slane %v1622, 4
      %v1625 = vshll.u32 %v1569, 16
      %v1627 = vrot.slane %v1625, 5
      %v1628 = vor.u32 %v1624, %v1627
      %v1629 = vrot.slane %v1628, 4
      %v1631 = vshll.u32 %v1570, 16
      %v1633 = vrot.slane %v1631, 5
      %v1634 = vsel %vm644, %v1629, %v1633
      %v1636 = vshrl.u32 %v1571, 16
      %v1638 = vrot.slane %v1636, 4
      %v1639 = vshll.u32 %v1571, 16
      %v1641 = vrot.slane %v1639, 5
      %v1642 = vor.u32 %v1638, %v1641
      %v1643 = vrot.slane %v1642, 4
      %v1645 = vshll.u32 %v1572, 16
      %v1647 = vrot.slane %v1645, 5
      %v1648 = vsel %vm644, %v1643, %v1647
      %v1650 = vshrl.u32 %v1573, 16
      %v1652 = vrot.slane %v1650, 4
      %v1653 = vshll.u32 %v1573, 16
      %v1655 = vrot.slane %v1653, 5
      %v1656 = vor.u32 %v1652, %v1655
      %v1657 = vrot.slane %v1656, 4
      %v1659 = vshll.u32 %v1574, 16
      %v1661 = vrot.slane %v1659, 5
      %v1662 = vsel %vm644, %v1657, %v1661
      %v1664 = vshrl.u32 %v1575, 16
      %v1666 = vrot.slane %v1664, 4
      %v1667 = vshll.u32 %v1575, 16
      %v1669 = vrot.slane %v1667, 5
      %v1670 = vor.u32 %v1666, %v1669
      %v1671 = vrot.slane %v1670, 4
      %v1673 = vshll.u32 %v1576, 16
      %v1675 = vrot.slane %v1673, 5
      %v1676 = vsel %vm644, %v1671, %v1675
      %v1678 = vshrl.u32 %v1577, 16
      %v1680 = vrot.slane %v1678, 4
      %v1681 = vshll.u32 %v1577, 16
      %v1683 = vrot.slane %v1681, 5
      %v1684 = vor.u32 %v1680, %v1683
      %v1685 = vrot.slane %v1684, 4
      %v1687 = vshll.u32 %v1578, 16
      %v1689 = vrot.slane %v1687, 5
      %v1690 = vsel %vm644, %v1685, %v1689
      %s1691 = scalar_lea.vmem %s389, 16
      %v1692 = vld [vmem:[%s1691] sm:$0x3]
      %v1693 = vunpack.c.l.b16 %v1592
      %v1694 = vunpack.c.l.b16 %v1606
      %v1695 = vunpack.c.l.b16 %v1620
      %v1696 = vunpack.c.l.b16 %v1634
      %v1697 = vunpack.c.l.b16 %v1648
      %v1698 = vunpack.c.l.b16 %v1662
      %v1699 = vunpack.c.l.b16 %v1676
      %v1700 = vunpack.c.l.b16 %v1690
      %v1701 = vpack.c.b16 %v1694, %v1693
      %v1702 = vpack.c.b16 %v1696, %v1695
      %v1703 = vpack.c.b16 %v1698, %v1697
      %v1704 = vpack.c.b16 %v1700, %v1699
      %v1706 = vsel %vm444, %v1701, 0
      %v1709 = vsel %vm444, %v1702, 0
      %v1712 = vsel %vm444, %v1703, 0
      %v1715 = vsel %vm444, %v1704, 0
      %v1718 = vsel %vm457, %v1692, 0
      %1720 = vmatprep.subr.bf16.mxu0 0
      %1721 = vmatpush1.bf16.msra.mxu0 %v1718
      %1722 = vmatprep.subr.bf16.mxu0 0
      %1723 = vmatpush1.bf16.msra.mxu0 0
      %1724 = vmatprep.subr.bf16.mxu0 0
      %1725 = vmatpush1.bf16.msra.mxu0 0
      %1726 = vmatprep.subr.bf16.mxu0 0
      %1727 = vmatpush1.bf16.msra.mxu0 0
      %1728 = vmatprep.subr.bf16.mxu0 0
      %1729 = vmatpush1.bf16.msra.mxu0 0
      %1730 = vmatprep.subr.bf16.mxu0 0
      %1731 = vmatpush1.bf16.msra.mxu0 0
      %1732 = vmatprep.subr.bf16.mxu0 0
      %1733 = vmatpush1.bf16.msra.mxu0 0
      %1734 = vmatprep.subr.bf16.mxu0 0
      %1735 = vmatpush1.bf16.msra.mxu0 0
      %1736 = vmatprep.subr.bf16.mxu0 0
      %1737 = vmatpush1.bf16.msra.mxu0 0
      %1738 = vmatprep.subr.bf16.mxu0 0
      %1739 = vmatpush1.bf16.msra.mxu0 0
      %1740 = vmatprep.subr.bf16.mxu0 0
      %1741 = vmatpush1.bf16.msra.mxu0 0
      %1742 = vmatprep.subr.bf16.mxu0 0
      %1743 = vmatpush1.bf16.msra.mxu0 0
      %1744 = vmatprep.subr.bf16.mxu0 0
      %1745 = vmatpush1.bf16.msra.mxu0 0
      %1746 = vmatprep.subr.bf16.mxu0 0
      %1747 = vmatpush1.bf16.msra.mxu0 0
      %1748 = vmatprep.subr.bf16.mxu0 0
      %1749 = vmatpush1.bf16.msra.mxu0 0
      %1750 = vmatprep.subr.bf16.mxu0 0
      %1751 = vmatpush1.bf16.msra.mxu0 0
      %1752 = vmatprep.mubr.bf16.mxu0 0
      %1753 = vmatmul.mubr.bf16.gmra.mrb[0].mxu0 %v1706
      %v1754 = vpop.f32.mrb[0].mxu0
      %v1755 = vadd.f32 0.0, %v1754
      %v1756 = vpop.f32.mrb[0].mxu0
      %v1757 = vpop.f32.mrb[0].mxu0
      %v1758 = vadd.f32 0.0, %v1757
      %v1759 = vpop.f32.mrb[0].mxu0
      %1760 = vmatprep.mubr.bf16.mxu0 0
      %1761 = vmatmul.mubr.bf16.gmra.mrb[0].mxu0 %v1709
      %v1762 = vpop.f32.mrb[0].mxu0
      %v1763 = vadd.f32 0.0, %v1762
      %v1764 = vpop.f32.mrb[0].mxu0
      %v1765 = vpop.f32.mrb[0].mxu0
      %v1766 = vadd.f32 0.0, %v1765
      %v1767 = vpop.f32.mrb[0].mxu0
      %1768 = vmatprep.mubr.bf16.mxu0 0
      %1769 = vmatmul.mubr.bf16.gmra.mrb[0].mxu0 %v1712
      %v1770 = vpop.f32.mrb[0].mxu0
      %v1771 = vadd.f32 0.0, %v1770
      %v1772 = vpop.f32.mrb[0].mxu0
      %v1773 = vpop.f32.mrb[0].mxu0
      %v1774 = vadd.f32 0.0, %v1773
      %v1775 = vpop.f32.mrb[0].mxu0
      %1776 = vmatprep.mubr.bf16.mxu0 0
      %1777 = vmatmul.mubr.bf16.gmra.mrb[0].mxu0 %v1715
      %v1778 = vpop.f32.mrb[0].mxu0
      %v1779 = vadd.f32 0.0, %v1778
      %v1780 = vpop.f32.mrb[0].mxu0
      %v1781 = vpop.f32.mrb[0].mxu0
      %v1782 = vadd.f32 0.0, %v1781
      %v1783 = vpop.f32.mrb[0].mxu0
      %1784 = vdwg.mxu0
      %v1785 = vadd.f32 %v1555, %v1755
      %v1786 = vadd.f32 %v1556, %v1758
      %v1787 = vadd.f32 %v1557, %v1763
      %v1788 = vadd.f32 %v1558, %v1766
      %v1789 = vadd.f32 %v1559, %v1771
      %v1790 = vadd.f32 %v1560, %v1774
      %v1791 = vadd.f32 %v1561, %v1779
      %v1792 = vadd.f32 %v1562, %v1782
      %v1793 = vld [vmem:[%s392] sm:$0x1]
      %v1795 = vlaneseq
      %v1796 = vshrl.u32 %v1795, 7
      %v1797 = vsub.s32 0, %v1796
      %v1798 = vrot.slane %v1793, %v1797
      %v1800 = vmul.f32 %v1785, %v1798
      %v1801 = vmul.f32 %v1786, %v1798
      %v1802 = vmul.f32 %v1787, %v1798
      %v1803 = vmul.f32 %v1788, %v1798
      %v1804 = vmul.f32 %v1789, %v1798
      %v1805 = vmul.f32 %v1790, %v1798
      %v1806 = vmul.f32 %v1791, %v1798
      %v1807 = vmul.f32 %v1792, %v1798
      %v1808 = vld [vmem:[%s395] sm:$0x1]
      %v1810 = vlaneseq
      %v1811 = vshrl.u32 %v1810, 7
      %v1812 = vsub.s32 0, %v1811
      %v1813 = vrot.slane %v1808, %v1812
      %v1815 = vadd.f32 %v1800, %v1813
      %v1816 = vadd.f32 %v1801, %v1813
      %v1817 = vadd.f32 %v1802, %v1813
      %v1818 = vadd.f32 %v1803, %v1813
      %v1819 = vadd.f32 %v1804, %v1813
      %v1820 = vadd.f32 %v1805, %v1813
      %v1821 = vadd.f32 %v1806, %v1813
      %v1822 = vadd.f32 %v1807, %v1813
      %v1823 = vmax.f32 %v1815, 0.0
      %v1824 = vmax.f32 %v1816, 0.0
      %v1825 = vmax.f32 %v1817, 0.0
      %v1826 = vmax.f32 %v1818, 0.0
      %v1827 = vmax.f32 %v1819, 0.0
      %v1828 = vmax.f32 %v1820, 0.0
      %v1829 = vmax.f32 %v1821, 0.0
      %v1830 = vmax.f32 %v1822, 0.0
      %v1831 = vpack.c.bf16 %v1823, %v1823
      %v1832 = vpack.c.bf16 %v1824, %v1824
      %v1833 = vpack.c.bf16 %v1825, %v1825
      %v1834 = vpack.c.bf16 %v1826, %v1826
      %v1835 = vpack.c.bf16 %v1827, %v1827
      %v1836 = vpack.c.bf16 %v1828, %v1828
      %v1837 = vpack.c.bf16 %v1829, %v1829
      %v1838 = vpack.c.bf16 %v1830, %v1830
      %vm1839 = vcmask 60416
      %1840 = vst.msk [vmem:[%s403] sm:$0xf] %vm1839, 0
      %vm1841 = vcmask 57344
      %1842 = vst.msk [vmem:[%s403 + $0x4] sm:$0x1] %vm1841, 0
      %1843 = vst.msk [vmem:[%s403 + $0x8] sm:$0xf] %vm1839, 0
      %1844 = vst.msk [vmem:[%s403 + $0xc] sm:$0x1] %vm1841, 0
      %1845 = vst.msk [vmem:[%s403 + $0x10] sm:$0xf] %vm1839, 0
      %1846 = vst.msk [vmem:[%s403 + $0x14] sm:$0x1] %vm1841, 0
      %1847 = vst.msk [vmem:[%s403 + $0x18] sm:$0xf] %vm1839, 0
      %1848 = vst.msk [vmem:[%s403 + $0x1c] sm:$0x1] %vm1841, 0
      %1849 = vst.msk [vmem:[%s403 + $0x20] sm:$0xf] %vm1839, 0
      %1850 = vst.msk [vmem:[%s403 + $0x24] sm:$0x1] %vm1841, 0
      %1851 = vst.msk [vmem:[%s403 + $0x28] sm:$0xf] %vm1839, 0
      %1852 = vst.msk [vmem:[%s403 + $0x2c] sm:$0x1] %vm1841, 0
      %1853 = vst.msk [vmem:[%s403 + $0x30] sm:$0xf] %vm1839, 0
      %1854 = vst.msk [vmem:[%s403 + $0x34] sm:$0x1] %vm1841, 0
      %1855 = vst.msk [vmem:[%s403 + $0x38] sm:$0xf] %vm1839, 0
      %1856 = vst.msk [vmem:[%s403 + $0x3c] sm:$0x1] %vm1841, 0
      %1857 = vst.msk [vmem:[%s403 + $0x40] sm:$0xf] %vm1839, 0
      %1858 = vst.msk [vmem:[%s403 + $0x44] sm:$0x1] %vm1841, 0
      %1859 = vst.msk [vmem:[%s403 + $0x48] sm:$0xf] %vm1839, 0
      %1860 = vst.msk [vmem:[%s403 + $0x4c] sm:$0x1] %vm1841, 0
      %v1869 = vunpack.c.l.b16 %v1831
      %v1870 = vunpack.c.l.b16 %v1832
      %v1871 = vunpack.c.l.b16 %v1833
      %v1872 = vunpack.c.l.b16 %v1834
      %v1873 = vunpack.c.l.b16 %v1835
      %v1874 = vunpack.c.l.b16 %v1836
      %v1875 = vunpack.c.l.b16 %v1837
      %v1876 = vunpack.c.l.b16 %v1838
      %v1877 = vpack.c.b16 %v1869, %v1869
      %v1878 = vpack.c.b16 %v1870, %v1870
      %v1879 = vpack.c.b16 %v1871, %v1871
      %v1880 = vpack.c.b16 %v1872, %v1872
      %v1881 = vpack.c.b16 %v1873, %v1873
      %v1882 = vpack.c.b16 %v1874, %v1874
      %v1883 = vpack.c.b16 %v1875, %v1875
      %v1884 = vpack.c.b16 %v1876, %v1876
      %v1886 = vshrl.u32 %v1877, 16
      %v1888 = vrot.slane %v1886, 7
      %v1889 = vshll.u32 %v1877, 16
      %v1891 = vor.u32 %v1888, %v1889
      %v1892 = vrot.slane %v1888, 4
      %v1894 = vshrl.u32 %v1878, 16
      %v1896 = vrot.slane %v1894, 7
      %v1897 = vshll.u32 %v1878, 16
      %v1899 = vor.u32 %v1896, %v1897
      %v1900 = vrot.slane %v1896, 4
      %v1902 = vshrl.u32 %v1879, 16
      %v1904 = vrot.slane %v1902, 7
      %v1905 = vshll.u32 %v1879, 16
      %v1907 = vor.u32 %v1904, %v1905
      %v1908 = vrot.slane %v1904, 4
      %v1910 = vshrl.u32 %v1880, 16
      %v1912 = vrot.slane %v1910, 7
      %v1913 = vshll.u32 %v1880, 16
      %v1915 = vor.u32 %v1912, %v1913
      %v1916 = vrot.slane %v1912, 4
      %v1918 = vshrl.u32 %v1881, 16
      %v1920 = vrot.slane %v1918, 7
      %v1921 = vshll.u32 %v1881, 16
      %v1923 = vor.u32 %v1920, %v1921
      %v1924 = vrot.slane %v1920, 4
      %v1926 = vshrl.u32 %v1882, 16
      %v1928 = vrot.slane %v1926, 7
      %v1929 = vshll.u32 %v1882, 16
      %v1931 = vor.u32 %v1928, %v1929
      %v1932 = vrot.slane %v1928, 4
      %v1934 = vshrl.u32 %v1883, 16
      %v1936 = vrot.slane %v1934, 7
      %v1937 = vshll.u32 %v1883, 16
      %v1939 = vor.u32 %v1936, %v1937
      %v1940 = vrot.slane %v1936, 4
      %v1942 = vshrl.u32 %v1884, 16
      %v1944 = vrot.slane %v1942, 7
      %v1945 = vshll.u32 %v1884, 16
      %v1947 = vor.u32 %v1944, %v1945
      %v1948 = vrot.slane %v1944, 4
      %s1965 = scalar_lea.vmem %s403, 8
      %vm1966 = vcmask 60416
      %vm1967 = vsmask.f32 7938
      %vm1968 = vmand %vm1966, %vm1967
      %v1969 = vld [vmem:[%s1965] sm:$0xf]
      %v1970 = vsel %vm1968, %v1891, %v1969
      %1971 = vst [vmem:[%s1965] sm:$0xf] %v1970
      %vm1972 = vcmask 57344
      %vm1973 = vsmask.f32 256
      %vm1974 = vmand %vm1972, %vm1973
      %v1975 = vld [vmem:[%s1965 + $0x4] sm:$0x1]
      %v1976 = vsel %vm1974, %v1892, %v1975
      %1977 = vst [vmem:[%s1965 + $0x4] sm:$0x1] %v1976
      %v1978 = vld [vmem:[%s1965 + $0x8] sm:$0xf]
      %v1979 = vsel %vm1968, %v1899, %v1978
      %1980 = vst [vmem:[%s1965 + $0x8] sm:$0xf] %v1979
      %v1981 = vld [vmem:[%s1965 + $0xc] sm:$0x1]
      %v1982 = vsel %vm1974, %v1900, %v1981
      %1983 = vst [vmem:[%s1965 + $0xc] sm:$0x1] %v1982
      %v1984 = vld [vmem:[%s1965 + $0x10] sm:$0xf]
      %v1985 = vsel %vm1968, %v1907, %v1984
      %1986 = vst [vmem:[%s1965 + $0x10] sm:$0xf] %v1985
      %v1987 = vld [vmem:[%s1965 + $0x14] sm:$0x1]
      %v1988 = vsel %vm1974, %v1908, %v1987
      %1989 = vst [vmem:[%s1965 + $0x14] sm:$0x1] %v1988
      %v1990 = vld [vmem:[%s1965 + $0x18] sm:$0xf]
      %v1991 = vsel %vm1968, %v1915, %v1990
      %1992 = vst [vmem:[%s1965 + $0x18] sm:$0xf] %v1991
      %v1993 = vld [vmem:[%s1965 + $0x1c] sm:$0x1]
      %v1994 = vsel %vm1974, %v1916, %v1993
      %1995 = vst [vmem:[%s1965 + $0x1c] sm:$0x1] %v1994
      %v1996 = vld [vmem:[%s1965 + $0x20] sm:$0xf]
      %v1997 = vsel %vm1968, %v1923, %v1996
      %1998 = vst [vmem:[%s1965 + $0x20] sm:$0xf] %v1997
      %v1999 = vld [vmem:[%s1965 + $0x24] sm:$0x1]
      %v2000 = vsel %vm1974, %v1924, %v1999
      %2001 = vst [vmem:[%s1965 + $0x24] sm:$0x1] %v2000
      %v2002 = vld [vmem:[%s1965 + $0x28] sm:$0xf]
      %v2003 = vsel %vm1968, %v1931, %v2002
      %2004 = vst [vmem:[%s1965 + $0x28] sm:$0xf] %v2003
      %v2005 = vld [vmem:[%s1965 + $0x2c] sm:$0x1]
      %v2006 = vsel %vm1974, %v1932, %v2005
      %2007 = vst [vmem:[%s1965 + $0x2c] sm:$0x1] %v2006
      %v2008 = vld [vmem:[%s1965 + $0x30] sm:$0xf]
      %v2009 = vsel %vm1968, %v1939, %v2008
      %2010 = vst [vmem:[%s1965 + $0x30] sm:$0xf] %v2009
      %v2011 = vld [vmem:[%s1965 + $0x34] sm:$0x1]
      %v2012 = vsel %vm1974, %v1940, %v2011
      %2013 = vst [vmem:[%s1965 + $0x34] sm:$0x1] %v2012
      %v2014 = vld [vmem:[%s1965 + $0x38] sm:$0xf]
      %v2015 = vsel %vm1968, %v1947, %v2014
      %2016 = vst [vmem:[%s1965 + $0x38] sm:$0xf] %v2015
      %v2017 = vld [vmem:[%s1965 + $0x3c] sm:$0x1]
      %v2018 = vsel %vm1974, %v1948, %v2017
      %2019 = vst [vmem:[%s1965 + $0x3c] sm:$0x1] %v2018
      %p2020 = scmp.lt.s32.totalorder %s22, 1
      %s2021 = scalar_select %p2020, %s22, 1
      %p2022 = scmp.lt.s32.totalorder %s23, 0
      %s2023 = scalar_select %p2022, %s23, 0
      %s2024 = smul.addr %s2021, 20
      %s2025 = sadd.s32 %s2023, %s2024
      %s2026 = smul.addr %s2025, 4
      %s2027 = scalar_lea.vmem %s7, %s2026
      // Predicated region
      $region49: #{basic_block_forward.2} parent=47 // pred_check
        %p2028 = pneg %p232
      $region50: #{basic_block_forward.2} parent=47 // pred_check_branch
        %2030 = sbr.rel (%p2028) target = $region52
      $region51: #{basic_block_forward.2} parent=47 // pred_region
        _
      $region52: #{basic_block_forward.2} parent=47 // pred_fallthru
        _
    $region48: #{basic_block_forward.2} parent=5 // pred_fallthru
      _
    %p2031 = scmp.le.s32.totalorder 2, %s13
    // Predicated region
    $region53: #{basic_block_forward.2} parent=5 // pred_check
      %p2032 = pneg %p2031
    $region54: #{basic_block_forward.2} parent=5 // pred_check_branch
      %2034 = sbr.rel (%p2032) target = $region56
    $region55: #{basic_block_forward.2} parent=5 // pred_region
      %s2035 = ssub.s32 %s13, 2
      // Predicated region
      $region57: #{basic_block_forward.2} parent=55 // pred_check
        %p2036 = pneg %p238
      $region58: #{basic_block_forward.2} parent=55 // pred_check_branch
        %2038 = sbr.rel (%p2036) target = $region60
      $region59: #{basic_block_forward.2} parent=55 // pred_region
        %p2039 = scmp.lt.s32.totalorder %s24, 1
        %s2040 = scalar_select %p2039, %s24, 1
        %p2041 = scmp.lt.s32.totalorder %s25, 0
        %s2042 = scalar_select %p2041, %s25, 0
        %s2043 = smul.addr %s2040, 20
        %s2044 = sadd.s32 %s2042, %s2043
        %s2045 = smul.addr %s2044, 4
        %s2046 = scalar_lea.vmem %s7, %s2045
      $region60: #{basic_block_forward.2} parent=55 // pred_fallthru
        _
    $region56: #{basic_block_forward.2} parent=5 // pred_fallthru
      _
  $region6: #{basic_block_forward.2} parent=0 // loop_footer
    %s17 = sadd.s32 1, %s13
  $region7: #{basic_block_forward.2} parent=0 // loop_footer_branch
    %12 = sbr.rel target = $region3
  $region8: #{basic_block_forward.2} parent=0 // loop_exit
    _

// kernel: basic_block_forward.3
$region0: #{basic_block_forward.3}
  #allocation0 [shape = 'u32[]', space=smem, size = 0x4, offset = 0x4, fixed_abs, tag = 'smem constant byte address 0x4 - core index']
  #allocation1 [shape = 'u32[144,128]{1,0:T(1,128)}', space=vmem, size = 0x12000, scoped, tag = 'internal scratch']
  %s0 = inlined_call_operand.vmem [shape: bf16[2,10,10,8], index: 0, kind: input, shape index: {}]
  %s1 = inlined_call_operand.vmem [shape: bf16[9,8,8], index: 1, kind: input, shape index: {}]
  %s2 = inlined_call_operand.vmem [shape: f32[1,8], index: 2, kind: input, shape index: {}]
  %s3 = inlined_call_operand.vmem [shape: f32[1,8], index: 3, kind: input, shape index: {}]
  %s4 = inlined_call_operand.vmem [shape: bf16[2,9,9,4], index: 4, kind: input, shape index: {}]
  %s5 = inlined_call_operand.vmem [shape: bf16[4,8], index: 5, kind: input, shape index: {}]
  %s6 = inlined_call_operand.vmem [shape: f32[1,8], index: 6, kind: input, shape index: {}]
  %s7 = inlined_call_operand.vmem [shape: f32[1,8], index: 7, kind: input, shape index: {}]
  %s8 = inlined_call_operand.vmem [shape: f32[2,8,8,8], index: 8, kind: output, shape index: {}]
  %s9 = sld [smem:[#allocation0]]
  $region65: #{basic_block_forward.3} parent=0
    _
  %s11 = ssub.s32 1, %s9
  %s12 = scalar_select 0, %s11, %s9
  loop: start=0, step=1, limit=4
  $region2: #{basic_block_forward.3} parent=0 // loop_pre_header
    _
  $region3: #{basic_block_forward.3} parent=0 // loop_header
    %s14 = sphi 0, %s18
    %p15 = scmp.ge.s32.totalorder %s14, 4
    %s21 = sphi 0, %s33
    %s22 = sphi 0, %s29
    %s23 = sphi 0, %s21
    %s24 = sphi 0, %s22
    %s25 = sphi 0, %s23
    %s26 = sphi 0, %s24
    %s36 = sphi 0, %s38
    %s39 = sphi 0, %s36
    %s40 = sphi 0, %s39
    %s56 = sphi 0, %s40
    %s62 = sphi 0, %s64
    %s65 = sphi 0, %s62
    %s66 = sphi 0, %s65
    %s82 = sphi 0, %s66
    %s88 = sphi 0, %s90
    %s91 = sphi 0, %s88
    %s92 = sphi 0, %s91
    %s108 = sphi 0, %s92
    %s114 = sphi 0, %s116
    %s117 = sphi 0, %s114
    %s118 = sphi 0, %s117
    %s134 = sphi 0, %s118
    %s140 = sphi 0, %s142
    %s143 = sphi 0, %s140
    %s144 = sphi 0, %s143
    %s160 = sphi 0, %s144
    %s166 = sphi 0, %s168
    %s169 = sphi 0, %s166
    %s170 = sphi 0, %s169
    %s186 = sphi 0, %s170
    %s192 = sphi 0, %s194
    %s195 = sphi 0, %s192
    %s196 = sphi 0, %s195
    %s212 = sphi 0, %s196
    %s218 = sphi 0, %s220
    %s221 = sphi 0, %s218
    %s222 = sphi 0, %s221
    %s238 = sphi 0, %s222
    %s246 = sphi 0, %s248
    %s249 = sphi 0, %s246
    %s250 = sphi 0, %s249
    %s266 = sphi 0, %s250
  $region4: #{basic_block_forward.3} parent=0 // loop_header_branch
    %17 = sbr.rel (%p15) target = $region8
  $region5: #{basic_block_forward.3} parent=0 // loop_body
    %s19 = ssub.s32 %s14, 1
    %s20 = ssub.s32 %s14, 2
    %s27 = sadd.s32 1, %s22
    %p28 = scmp.ge.s32.totalorder %s27, 1
    %s29 = scalar_select %p28, 0, %s27
    %s30 = sadd.s32 1, %s21
    %s31 = scalar_select %p28, %s30, %s21
    %p32 = scmp.ge.s32.totalorder %s31, 2
    %s33 = scalar_select %p32, 0, %s31
    %s34 = ssub.s32 %s21, %s33
    %p35 = scmp.eq.s32.totalorder %s34, 0
    %s37 = sadd.s32 %s36, 1
    %s38 = scalar_select %p35, %s36, %s37
    %p41 = pneg %p35
    %p42 = scmp.eq.s32.totalorder %s14, 1
    %p43 = por %p41, %p42
    %p44 = scmp.ne.s32.totalorder %s36, %s39
    %p45 = scmp.eq.s32.totalorder %s14, 0
    %p46 = por %p44, %p45
    %p47 = scmp.ne.s32.totalorder %s36, %s39
    %p48 = scmp.eq.s32.totalorder %s19, 1
    %p49 = por %p47, %p48
    %p50 = scmp.ne.s32.totalorder %s39, %s40
    %p51 = scmp.eq.s32.totalorder %s19, 0
    %p52 = por %p50, %p51
    %p53 = scmp.ne.s32.totalorder %s39, %s40
    %p54 = scmp.eq.s32.totalorder %s20, 1
    %p55 = por %p53, %p54
    %p57 = scmp.ne.s32.totalorder %s40, %s56
    %p58 = scmp.eq.s32.totalorder %s20, 0
    %p59 = por %p57, %p58
    %s60 = ssub.s32 %s22, %s29
    %p61 = scmp.eq.s32.totalorder %s60, 0
    %s63 = sadd.s32 %s62, 1
    %s64 = scalar_select %p61, %s62, %s63
    %p67 = pneg %p61
    %p68 = scmp.eq.s32.totalorder %s14, 1
    %p69 = por %p67, %p68
    %p70 = scmp.ne.s32.totalorder %s62, %s65
    %p71 = scmp.eq.s32.totalorder %s14, 0
    %p72 = por %p70, %p71
    %p73 = scmp.ne.s32.totalorder %s62, %s65
    %p74 = scmp.eq.s32.totalorder %s19, 1
    %p75 = por %p73, %p74
    %p76 = scmp.ne.s32.totalorder %s65, %s66
    %p77 = scmp.eq.s32.totalorder %s19, 0
    %p78 = por %p76, %p77
    %p79 = scmp.ne.s32.totalorder %s65, %s66
    %p80 = scmp.eq.s32.totalorder %s20, 1
    %p81 = por %p79, %p80
    %p83 = scmp.ne.s32.totalorder %s66, %s82
    %p84 = scmp.eq.s32.totalorder %s20, 0
    %p85 = por %p83, %p84
    %s86 = ssub.s32 %s22, %s29
    %p87 = scmp.eq.s32.totalorder %s86, 0
    %s89 = sadd.s32 %s88, 1
    %s90 = scalar_select %p87, %s88, %s89
    %p93 = pneg %p87
    %p94 = scmp.eq.s32.totalorder %s14, 1
    %p95 = por %p93, %p94
    %p96 = scmp.ne.s32.totalorder %s88, %s91
    %p97 = scmp.eq.s32.totalorder %s14, 0
    %p98 = por %p96, %p97
    %p99 = scmp.ne.s32.totalorder %s88, %s91
    %p100 = scmp.eq.s32.totalorder %s19, 1
    %p101 = por %p99, %p100
    %p102 = scmp.ne.s32.totalorder %s91, %s92
    %p103 = scmp.eq.s32.totalorder %s19, 0
    %p104 = por %p102, %p103
    %p105 = scmp.ne.s32.totalorder %s91, %s92
    %p106 = scmp.eq.s32.totalorder %s20, 1
    %p107 = por %p105, %p106
    %p109 = scmp.ne.s32.totalorder %s92, %s108
    %p110 = scmp.eq.s32.totalorder %s20, 0
    %p111 = por %p109, %p110
    %s112 = ssub.s32 %s22, %s29
    %p113 = scmp.eq.s32.totalorder %s112, 0
    %s115 = sadd.s32 %s114, 1
    %s116 = scalar_select %p113, %s114, %s115
    %p119 = pneg %p113
    %p120 = scmp.eq.s32.totalorder %s14, 1
    %p121 = por %p119, %p120
    %p122 = scmp.ne.s32.totalorder %s114, %s117
    %p123 = scmp.eq.s32.totalorder %s14, 0
    %p124 = por %p122, %p123
    %p125 = scmp.ne.s32.totalorder %s114, %s117
    %p126 = scmp.eq.s32.totalorder %s19, 1
    %p127 = por %p125, %p126
    %p128 = scmp.ne.s32.totalorder %s117, %s118
    %p129 = scmp.eq.s32.totalorder %s19, 0
    %p130 = por %p128, %p129
    %p131 = scmp.ne.s32.totalorder %s117, %s118
    %p132 = scmp.eq.s32.totalorder %s20, 1
    %p133 = por %p131, %p132
    %p135 = scmp.ne.s32.totalorder %s118, %s134
    %p136 = scmp.eq.s32.totalorder %s20, 0
    %p137 = por %p135, %p136
    %s138 = ssub.s32 %s21, %s33
    %p139 = scmp.eq.s32.totalorder %s138, 0
    %s141 = sadd.s32 %s140, 1
    %s142 = scalar_select %p139, %s140, %s141
    %p145 = pneg %p139
    %p146 = scmp.eq.s32.totalorder %s14, 1
    %p147 = por %p145, %p146
    %p148 = scmp.ne.s32.totalorder %s140, %s143
    %p149 = scmp.eq.s32.totalorder %s14, 0
    %p150 = por %p148, %p149
    %p151 = scmp.ne.s32.totalorder %s140, %s143
    %p152 = scmp.eq.s32.totalorder %s19, 1
    %p153 = por %p151, %p152
    %p154 = scmp.ne.s32.totalorder %s143, %s144
    %p155 = scmp.eq.s32.totalorder %s19, 0
    %p156 = por %p154, %p155
    %p157 = scmp.ne.s32.totalorder %s143, %s144
    %p158 = scmp.eq.s32.totalorder %s20, 1
    %p159 = por %p157, %p158
    %p161 = scmp.ne.s32.totalorder %s144, %s160
    %p162 = scmp.eq.s32.totalorder %s20, 0
    %p163 = por %p161, %p162
    %s164 = ssub.s32 %s22, %s29
    %p165 = scmp.eq.s32.totalorder %s164, 0
    %s167 = sadd.s32 %s166, 1
    %s168 = scalar_select %p165, %s166, %s167
    %p171 = pneg %p165
    %p172 = scmp.eq.s32.totalorder %s14, 1
    %p173 = por %p171, %p172
    %p174 = scmp.ne.s32.totalorder %s166, %s169
    %p175 = scmp.eq.s32.totalorder %s14, 0
    %p176 = por %p174, %p175
    %p177 = scmp.ne.s32.totalorder %s166, %s169
    %p178 = scmp.eq.s32.totalorder %s19, 1
    %p179 = por %p177, %p178
    %p180 = scmp.ne.s32.totalorder %s169, %s170
    %p181 = scmp.eq.s32.totalorder %s19, 0
    %p182 = por %p180, %p181
    %p183 = scmp.ne.s32.totalorder %s169, %s170
    %p184 = scmp.eq.s32.totalorder %s20, 1
    %p185 = por %p183, %p184
    %p187 = scmp.ne.s32.totalorder %s170, %s186
    %p188 = scmp.eq.s32.totalorder %s20, 0
    %p189 = por %p187, %p188
    %s190 = ssub.s32 %s22, %s29
    %p191 = scmp.eq.s32.totalorder %s190, 0
    %s193 = sadd.s32 %s192, 1
    %s194 = scalar_select %p191, %s192, %s193
    %p197 = pneg %p191
    %p198 = scmp.eq.s32.totalorder %s14, 1
    %p199 = por %p197, %p198
    %p200 = scmp.ne.s32.totalorder %s192, %s195
    %p201 = scmp.eq.s32.totalorder %s14, 0
    %p202 = por %p200, %p201
    %p203 = scmp.ne.s32.totalorder %s192, %s195
    %p204 = scmp.eq.s32.totalorder %s19, 1
    %p205 = por %p203, %p204
    %p206 = scmp.ne.s32.totalorder %s195, %s196
    %p207 = scmp.eq.s32.totalorder %s19, 0
    %p208 = por %p206, %p207
    %p209 = scmp.ne.s32.totalorder %s195, %s196
    %p210 = scmp.eq.s32.totalorder %s20, 1
    %p211 = por %p209, %p210
    %p213 = scmp.ne.s32.totalorder %s196, %s212
    %p214 = scmp.eq.s32.totalorder %s20, 0
    %p215 = por %p213, %p214
    %s216 = ssub.s32 %s22, %s29
    %p217 = scmp.eq.s32.totalorder %s216, 0
    %s219 = sadd.s32 %s218, 1
    %s220 = scalar_select %p217, %s218, %s219
    %p223 = pneg %p217
    %p224 = scmp.eq.s32.totalorder %s14, 1
    %p225 = por %p223, %p224
    %p226 = scmp.ne.s32.totalorder %s218, %s221
    %p227 = scmp.eq.s32.totalorder %s14, 0
    %p228 = por %p226, %p227
    %p229 = scmp.ne.s32.totalorder %s218, %s221
    %p230 = scmp.eq.s32.totalorder %s19, 1
    %p231 = por %p229, %p230
    %p232 = scmp.ne.s32.totalorder %s221, %s222
    %p233 = scmp.eq.s32.totalorder %s19, 0
    %p234 = por %p232, %p233
    %p235 = scmp.ne.s32.totalorder %s221, %s222
    %p236 = scmp.eq.s32.totalorder %s20, 1
    %p237 = por %p235, %p236
    %p239 = scmp.ne.s32.totalorder %s222, %s238
    %p240 = scmp.eq.s32.totalorder %s20, 0
    %p241 = por %p239, %p240
    %s242 = ssub.s32 %s21, %s33
    %s243 = ssub.s32 %s22, %s29
    %s244 = sor.u32 %s242, %s243
    %p245 = scmp.eq.s32.totalorder %s244, 0
    %s247 = sadd.s32 %s246, 1
    %s248 = scalar_select %p245, %s246, %s247
    %p251 = pneg %p245
    %p252 = scmp.eq.s32.totalorder %s14, 1
    %p253 = por %p251, %p252
    %p254 = scmp.ne.s32.totalorder %s246, %s249
    %p255 = scmp.eq.s32.totalorder %s14, 0
    %p256 = por %p254, %p255
    %p257 = scmp.ne.s32.totalorder %s246, %s249
    %p258 = scmp.eq.s32.totalorder %s19, 1
    %p259 = por %p257, %p258
    %p260 = scmp.ne.s32.totalorder %s249, %s250
    %p261 = scmp.eq.s32.totalorder %s19, 0
    %p262 = por %p260, %p261
    %p263 = scmp.ne.s32.totalorder %s249, %s250
    %p264 = scmp.eq.s32.totalorder %s20, 1
    %p265 = por %p263, %p264
    %p267 = scmp.ne.s32.totalorder %s250, %s266
    %p268 = scmp.eq.s32.totalorder %s20, 0
    %p269 = por %p267, %p268
    %p270 = scmp.le.s32.totalorder 1, %s14
    %p271 = scmp.lt.s32.totalorder %s14, 3
    %p272 = pnand %p270, %p271
    %p273 = pneg %p272
    // Predicated region
    $region9: #{basic_block_forward.3} parent=5 // pred_check
      _
    $region10: #{basic_block_forward.3} parent=5 // pred_check_branch
      %275 = sbr.rel (%p272) target = $region12
    $region11: #{basic_block_forward.3} parent=5 // pred_region
      %s276 = ssub.s32 %s14, 1
      // Predicated region
      $region13: #{basic_block_forward.3} parent=11 // pred_check
        %p277 = pneg %p78
      $region14: #{basic_block_forward.3} parent=11 // pred_check_branch
        %279 = sbr.rel (%p277) target = $region16
      $region15: #{basic_block_forward.3} parent=11 // pred_region
        %p280 = scmp.lt.s32.totalorder %s24, 0
        %s281 = scalar_select %p280, %s24, 0
        %s282 = smul.addr %s281, 4
        %s283 = scalar_lea.vmem %s1, %s282
      $region16: #{basic_block_forward.3} parent=11 // pred_fallthru
        _
      // Predicated region
      $region17: #{basic_block_forward.3} parent=11 // pred_check
        %p284 = pneg %p104
      $region18: #{basic_block_forward.3} parent=11 // pred_check_branch
        %286 = sbr.rel (%p284) target = $region20
      $region19: #{basic_block_forward.3} parent=11 // pred_region
        %p287 = scmp.lt.s32.totalorder %s24, 0
        %s288 = scalar_select %p287, %s24, 0
        %s289 = scalar_lea.vmem %s2, %s288
      $region20: #{basic_block_forward.3} parent=11 // pred_fallthru
        _
      // Predicated region
      $region21: #{basic_block_forward.3} parent=11 // pred_check
        %p290 = pneg %p130
      $region22: #{basic_block_forward.3} parent=11 // pred_check_branch
        %292 = sbr.rel (%p290) target = $region24
      $region23: #{basic_block_forward.3} parent=11 // pred_region
        %p293 = scmp.lt.s32.totalorder %s24, 0
        %s294 = scalar_select %p293, %s24, 0
        %s295 = scalar_lea.vmem %s3, %s294
      $region24: #{basic_block_forward.3} parent=11 // pred_fallthru
        _
      // Predicated region
      $region25: #{basic_block_forward.3} parent=11 // pred_check
        %p296 = pneg %p182
      $region26: #{basic_block_forward.3} parent=11 // pred_check_branch
        %298 = sbr.rel (%p296) target = $region28
      $region27: #{basic_block_forward.3} parent=11 // pred_region
        %p299 = scmp.lt.s32.totalorder %s24, 0
        %s300 = scalar_select %p299, %s24, 0
        %s301 = smul.addr %s300, 2
        %s302 = scalar_lea.vmem %s5, %s301
      $region28: #{basic_block_forward.3} parent=11 // pred_fallthru
        _
      // Predicated region
      $region29: #{basic_block_forward.3} parent=11 // pred_check
        %p303 = pneg %p208
      $region30: #{basic_block_forward.3} parent=11 // pred_check_branch
        %305 = sbr.rel (%p303) target = $region32
      $region31: #{basic_block_forward.3} parent=11 // pred_region
        %p306 = scmp.lt.s32.totalorder %s24, 0
        %s307 = scalar_select %p306, %s24, 0
        %s308 = scalar_lea.vmem %s6, %s307
      $region32: #{basic_block_forward.3} parent=11 // pred_fallthru
        _
      // Predicated region
      $region33: #{basic_block_forward.3} parent=11 // pred_check
        %p309 = pneg %p234
      $region34: #{basic_block_forward.3} parent=11 // pred_check_branch
        %311 = sbr.rel (%p309) target = $region36
      $region35: #{basic_block_forward.3} parent=11 // pred_region
        %p312 = scmp.lt.s32.totalorder %s24, 0
        %s313 = scalar_select %p312, %s24, 0
        %s314 = scalar_lea.vmem %s7, %s313
      $region36: #{basic_block_forward.3} parent=11 // pred_fallthru
        _
    $region12: #{basic_block_forward.3} parent=5 // pred_fallthru
      _
    %p315 = scmp.lt.s32.totalorder %s14, 2
    // Predicated region
    $region37: #{basic_block_forward.3} parent=5 // pred_check
      %p316 = pneg %p315
    $region38: #{basic_block_forward.3} parent=5 // pred_check_branch
      %318 = sbr.rel (%p316) target = $region40
    $region39: #{basic_block_forward.3} parent=5 // pred_region
      // Predicated region
      $region41: #{basic_block_forward.3} parent=39 // pred_check
        %p319 = pneg %p46
      $region42: #{basic_block_forward.3} parent=39 // pred_check_branch
        %321 = sbr.rel (%p319) target = $region44
      $region43: #{basic_block_forward.3} parent=39 // pred_region
        %p322 = scmp.lt.s32.totalorder %s21, 1
        %s323 = scalar_select %p322, %s21, 1
        %s324 = smul.addr %s323, 20
        %s325 = smul.addr %s324, 4
        %s326 = scalar_lea.vmem %s0, %s325
      $region44: #{basic_block_forward.3} parent=39 // pred_fallthru
        _
      // Predicated region
      $region45: #{basic_block_forward.3} parent=39 // pred_check
        %p327 = pneg %p150
      $region46: #{basic_block_forward.3} parent=39 // pred_check_branch
        %329 = sbr.rel (%p327) target = $region48
      $region47: #{basic_block_forward.3} parent=39 // pred_region
        %p330 = scmp.lt.s32.totalorder %s21, 1
        %s331 = scalar_select %p330, %s21, 1
        %s332 = smul.addr %s331, 18
        %s333 = smul.addr %s332, 4
        %s334 = scalar_lea.vmem %s4, %s333
      $region48: #{basic_block_forward.3} parent=39 // pred_fallthru
        _
    $region40: #{basic_block_forward.3} parent=5 // pred_fallthru
      _
    %p335 = scmp.le.s32.totalorder 1, %s14
    %p336 = scmp.lt.s32.totalorder %s14, 3
    %p337 = pnand %p335, %p336
    %p338 = pneg %p337
    // Predicated region
    $region49: #{basic_block_forward.3} parent=5 // pred_check
      _
    $region50: #{basic_block_forward.3} parent=5 // pred_check_branch
      %340 = sbr.rel (%p337) target = $region52
    $region51: #{basic_block_forward.3} parent=5 // pred_region
      %s341 = ssub.s32 %s14, 1
      %p342 = scmp.lt.s32.totalorder %s23, 1
      %s343 = scalar_select %p342, %s23, 1
      %s344 = smul.addr %s343, 20
      %s345 = smul.addr %s344, 4
      %s346 = scalar_lea.vmem %s0, %s345
      %p347 = pneg %p52
      %p348 = pneg %p49
      %p349 = scmp.lt.s32.totalorder %s24, 0
      %s350 = scalar_select %p349, %s24, 0
      %s351 = smul.addr %s350, 4
      %s352 = scalar_lea.vmem %s1, %s351
      %p353 = pneg %p78
      %p354 = pneg %p75
      %p355 = scmp.lt.s32.totalorder %s24, 0
      %s356 = scalar_select %p355, %s24, 0
      %s357 = scalar_lea.vmem %s2, %s356
      %p358 = pneg %p104
      %p359 = pneg %p101
      %p360 = scmp.lt.s32.totalorder %s24, 0
      %s361 = scalar_select %p360, %s24, 0
      %s362 = scalar_lea.vmem %s3, %s361
      %p363 = pneg %p130
      %p364 = pneg %p127
      %p365 = scmp.lt.s32.totalorder %s23, 1
      %s366 = scalar_select %p365, %s23, 1
      %s367 = smul.addr %s366, 18
      %s368 = smul.addr %s367, 4
      %s369 = scalar_lea.vmem %s4, %s368
      %p370 = pneg %p156
      %p371 = pneg %p153
      %p372 = scmp.lt.s32.totalorder %s24, 0
      %s373 = scalar_select %p372, %s24, 0
      %s374 = smul.addr %s373, 2
      %s375 = scalar_lea.vmem %s5, %s374
      %p376 = pneg %p182
      %p377 = pneg %p179
      %p378 = scmp.lt.s32.totalorder %s24, 0
      %s379 = scalar_select %p378, %s24, 0
      %s380 = scalar_lea.vmem %s6, %s379
      %p381 = pneg %p208
      %p382 = pneg %p205
      %p383 = scmp.lt.s32.totalorder %s24, 0
      %s384 = scalar_select %p383, %s24, 0
      %s385 = scalar_lea.vmem %s7, %s384
      %p386 = pneg %p234
      %p387 = pneg %p231
      %p388 = pneg %p262
      %p389 = pneg %p259
      %p390 = scmp.lt.s32.totalorder %s23, 1
      %s391 = scalar_select %p390, %s23, 1
      %p392 = scmp.lt.s32.totalorder %s24, 0
      %s393 = scalar_select %p392, %s24, 0
      %s394 = smul.addr %s391, 8
      %s395 = sadd.s32 %s393, %s394
      %s396 = smul.addr %s395, 8
      %s397 = scalar_lea.vmem %s8, %s396
      %p398 = scmp.lt.s32.totalorder %s23, 1
      %s399 = scalar_select %p398, %s23, 1
      %s400 = smul.addr %s399, 20
      %s401 = smul.addr %s400, 4
      %s402 = scalar_lea.vmem %s0, %s401
      %p403 = scmp.lt.s32.totalorder %s24, 0
      %s404 = scalar_select %p403, %s24, 0
      %s405 = smul.addr %s404, 4
      %s406 = scalar_lea.vmem %s1, %s405
      %p407 = scmp.lt.s32.totalorder %s24, 0
      %s408 = scalar_select %p407, %s24, 0
      %s409 = scalar_lea.vmem %s2, %s408
      %p410 = scmp.lt.s32.totalorder %s24, 0
      %s411 = scalar_select %p410, %s24, 0
      %s412 = scalar_lea.vmem %s3, %s411
      %p413 = scmp.lt.s32.totalorder %s23, 1
      %s414 = scalar_select %p413, %s23, 1
      %s415 = smul.addr %s414, 18
      %s416 = smul.addr %s415, 4
      %s417 = scalar_lea.vmem %s4, %s416
      %p418 = scmp.lt.s32.totalorder %s24, 0
      %s419 = scalar_select %p418, %s24, 0
      %s420 = smul.addr %s419, 2
      %s421 = scalar_lea.vmem %s5, %s420
      %p422 = scmp.lt.s32.totalorder %s24, 0
      %s423 = scalar_select %p422, %s24, 0
      %s424 = scalar_lea.vmem %s6, %s423
      %p425 = scmp.lt.s32.totalorder %s24, 0
      %s426 = scalar_select %p425, %s24, 0
      %s427 = scalar_lea.vmem %s7, %s426
      %p428 = scmp.lt.s32.totalorder %s23, 1
      %s429 = scalar_select %p428, %s23, 1
      %p430 = scmp.lt.s32.totalorder %s24, 0
      %s431 = scalar_select %p430, %s24, 0
      %s432 = smul.addr %s429, 8
      %s433 = sadd.s32 %s431, %s432
      %s434 = smul.addr %s433, 8
      %s435 = scalar_lea.vmem %s8, %s434
      %v437 = vld [vmem:[%s402] sm:$0xf]
      %v438 = vld [vmem:[%s402 + $0x8] sm:$0xf]
      %v439 = vld [vmem:[%s402 + $0x10] sm:$0xf]
      %v440 = vld [vmem:[%s402 + $0x18] sm:$0xf]
      %v441 = vld [vmem:[%s402 + $0x20] sm:$0xf]
      %v442 = vld [vmem:[%s402 + $0x28] sm:$0xf]
      %v443 = vld [vmem:[%s402 + $0x30] sm:$0xf]
      %v444 = vld [vmem:[%s402 + $0x38] sm:$0xf]
      %v445 = vld [vmem:[%s406] sm:$0xf]
      %v446 = vld [vmem:[%s402 + $0x4] sm:$0x1]
      %v447 = vld [vmem:[%s402 + $0xc] sm:$0x1]
      %v448 = vld [vmem:[%s402 + $0x14] sm:$0x1]
      %v449 = vld [vmem:[%s402 + $0x1c] sm:$0x1]
      %v450 = vld [vmem:[%s402 + $0x24] sm:$0x1]
      %v451 = vld [vmem:[%s402 + $0x2c] sm:$0x1]
      %v452 = vld [vmem:[%s402 + $0x34] sm:$0x1]
      %v453 = vld [vmem:[%s402 + $0x3c] sm:$0x1]
      %vm454 = vsmask.f32 3328
      %vm455 = vsmask.f32 7440
      %vm456 = vmor %vm454, %vm455
      %v458 = vshrl.u32 %v437, 16
      %v460 = vrot.slane %v458, 4
      %v461 = vshll.u32 %v437, 16
      %v463 = vrot.slane %v461, 5
      %v464 = vor.u32 %v460, %v463
      %v465 = vrot.slane %v464, 4
      %v467 = vshll.u32 %v446, 16
      %v469 = vrot.slane %v467, 5
      %v470 = vsel %vm456, %v465, %v469
      %v472 = vshrl.u32 %v438, 16
      %v474 = vrot.slane %v472, 4
      %v475 = vshll.u32 %v438, 16
      %v477 = vrot.slane %v475, 5
      %v478 = vor.u32 %v474, %v477
      %v479 = vrot.slane %v478, 4
      %v481 = vshll.u32 %v447, 16
      %v483 = vrot.slane %v481, 5
      %v484 = vsel %vm456, %v479, %v483
      %v486 = vshrl.u32 %v439, 16
      %v488 = vrot.slane %v486, 4
      %v489 = vshll.u32 %v439, 16
      %v491 = vrot.slane %v489, 5
      %v492 = vor.u32 %v488, %v491
      %v493 = vrot.slane %v492, 4
      %v495 = vshll.u32 %v448, 16
      %v497 = vrot.slane %v495, 5
      %v498 = vsel %vm456, %v493, %v497
      %v500 = vshrl.u32 %v440, 16
      %v502 = vrot.slane %v500, 4
      %v503 = vshll.u32 %v440, 16
      %v505 = vrot.slane %v503, 5
      %v506 = vor.u32 %v502, %v505
      %v507 = vrot.slane %v506, 4
      %v509 = vshll.u32 %v449, 16
      %v511 = vrot.slane %v509, 5
      %v512 = vsel %vm456, %v507, %v511
      %v514 = vshrl.u32 %v441, 16
      %v516 = vrot.slane %v514, 4
      %v517 = vshll.u32 %v441, 16
      %v519 = vrot.slane %v517, 5
      %v520 = vor.u32 %v516, %v519
      %v521 = vrot.slane %v520, 4
      %v523 = vshll.u32 %v450, 16
      %v525 = vrot.slane %v523, 5
      %v526 = vsel %vm456, %v521, %v525
      %v528 = vshrl.u32 %v442, 16
      %v530 = vrot.slane %v528, 4
      %v531 = vshll.u32 %v442, 16
      %v533 = vrot.slane %v531, 5
      %v534 = vor.u32 %v530, %v533
      %v535 = vrot.slane %v534, 4
      %v537 = vshll.u32 %v451, 16
      %v539 = vrot.slane %v537, 5
      %v540 = vsel %vm456, %v535, %v539
      %v542 = vshrl.u32 %v443, 16
      %v544 = vrot.slane %v542, 4
      %v545 = vshll.u32 %v443, 16
      %v547 = vrot.slane %v545, 5
      %v548 = vor.u32 %v544, %v547
      %v549 = vrot.slane %v548, 4
      %v551 = vshll.u32 %v452, 16
      %v553 = vrot.slane %v551, 5
      %v554 = vsel %vm456, %v549, %v553
      %v556 = vshrl.u32 %v444, 16
      %v558 = vrot.slane %v556, 4
      %v559 = vshll.u32 %v444, 16
      %v561 = vrot.slane %v559, 5
      %v562 = vor.u32 %v558, %v561
      %v563 = vrot.slane %v562, 4
      %v565 = vshll.u32 %v453, 16
      %v567 = vrot.slane %v565, 5
      %v568 = vsel %vm456, %v563, %v567
      %s569 = scalar_lea.vmem %s406, 4
      %v570 = vld [vmem:[%s569] sm:$0xf]
      %v571 = vunpack.c.l.b16 %v470
      %v572 = vunpack.c.l.b16 %v484
      %v573 = vunpack.c.l.b16 %v498
      %v574 = vunpack.c.l.b16 %v512
      %v575 = vunpack.c.l.b16 %v526
      %v576 = vunpack.c.l.b16 %v540
      %v577 = vunpack.c.l.b16 %v554
      %v578 = vunpack.c.l.b16 %v568
      %v579 = vpack.c.b16 %v572, %v571
      %v580 = vpack.c.b16 %v574, %v573
      %v581 = vpack.c.b16 %v576, %v575
      %v582 = vpack.c.b16 %v578, %v577
      %vm583 = vcmask 64512
      %v585 = vsel %vm583, %v579, 0
      %v588 = vsel %vm583, %v580, 0
      %v591 = vsel %vm583, %v581, 0
      %v594 = vsel %vm583, %v582, 0
      %vm596 = vcmask 1043456
      %v598 = vsel %vm596, %v570, 0
      %600 = vmatprep.subr.bf16.mxu0 0
      %601 = vmatpush1.bf16.msra.mxu0 %v598
      %602 = vmatprep.subr.bf16.mxu0 0
      %603 = vmatpush1.bf16.msra.mxu0 0
      %604 = vmatprep.subr.bf16.mxu0 0
      %605 = vmatpush1.bf16.msra.mxu0 0
      %606 = vmatprep.subr.bf16.mxu0 0
      %607 = vmatpush1.bf16.msra.mxu0 0
      %608 = vmatprep.subr.bf16.mxu0 0
      %609 = vmatpush1.bf16.msra.mxu0 0
      %610 = vmatprep.subr.bf16.mxu0 0
      %611 = vmatpush1.bf16.msra.mxu0 0
      %612 = vmatprep.subr.bf16.mxu0 0
      %613 = vmatpush1.bf16.msra.mxu0 0
      %614 = vmatprep.subr.bf16.mxu0 0
      %615 = vmatpush1.bf16.msra.mxu0 0
      %616 = vmatprep.subr.bf16.mxu0 0
      %617 = vmatpush1.bf16.msra.mxu0 0
      %618 = vmatprep.subr.bf16.mxu0 0
      %619 = vmatpush1.bf16.msra.mxu0 0
      %620 = vmatprep.subr.bf16.mxu0 0
      %621 = vmatpush1.bf16.msra.mxu0 0
      %622 = vmatprep.subr.bf16.mxu0 0
      %623 = vmatpush1.bf16.msra.mxu0 0
      %624 = vmatprep.subr.bf16.mxu0 0
      %625 = vmatpush1.bf16.msra.mxu0 0
      %626 = vmatprep.subr.bf16.mxu0 0
      %627 = vmatpush1.bf16.msra.mxu0 0
      %628 = vmatprep.subr.bf16.mxu0 0
      %629 = vmatpush1.bf16.msra.mxu0 0
      %630 = vmatprep.subr.bf16.mxu0 0
      %631 = vmatpush1.bf16.msra.mxu0 0
      %632 = vmatprep.mubr.bf16.mxu0 0
      %633 = vmatmul.mubr.bf16.gmra.mrb[0].mxu0 %v585
      %v634 = vpop.f32.mrb[0].mxu0
      %v635 = vadd.f32 0.0, %v634
      %v636 = vpop.f32.mrb[0].mxu0
      %v637 = vpop.f32.mrb[0].mxu0
      %v638 = vadd.f32 0.0, %v637
      %v639 = vpop.f32.mrb[0].mxu0
      %640 = vmatprep.mubr.bf16.mxu0 0
      %641 = vmatmul.mubr.bf16.gmra.mrb[0].mxu0 %v588
      %v642 = vpop.f32.mrb[0].mxu0
      %v643 = vadd.f32 0.0, %v642
      %v644 = vpop.f32.mrb[0].mxu0
      %v645 = vpop.f32.mrb[0].mxu0
      %v646 = vadd.f32 0.0, %v645
      %v647 = vpop.f32.mrb[0].mxu0
      %648 = vmatprep.mubr.bf16.mxu0 0
      %649 = vmatmul.mubr.bf16.gmra.mrb[0].mxu0 %v591
      %v650 = vpop.f32.mrb[0].mxu0
      %v651 = vadd.f32 0.0, %v650
      %v652 = vpop.f32.mrb[0].mxu0
      %v653 = vpop.f32.mrb[0].mxu0
      %v654 = vadd.f32 0.0, %v653
      %v655 = vpop.f32.mrb[0].mxu0
      %656 = vmatprep.mubr.bf16.mxu0 0
      %657 = vmatmul.mubr.bf16.gmra.mrb[0].mxu0 %v594
      %v658 = vpop.f32.mrb[0].mxu0
      %v659 = vadd.f32 0.0, %v658
      %v660 = vpop.f32.mrb[0].mxu0
      %v661 = vpop.f32.mrb[0].mxu0
      %v662 = vadd.f32 0.0, %v661
      %v663 = vpop.f32.mrb[0].mxu0
      %664 = vdwg.mxu0
      %v673 = vunpack.c.l.b16 %v437
      %v674 = vunpack.c.l.b16 %v438
      %v675 = vunpack.c.l.b16 %v439
      %v676 = vunpack.c.l.b16 %v440
      %v677 = vunpack.c.l.b16 %v441
      %v678 = vunpack.c.l.b16 %v442
      %v679 = vunpack.c.l.b16 %v443
      %v680 = vunpack.c.l.b16 %v444
      %v681 = vpack.c.b16 %v674, %v673
      %v682 = vpack.c.b16 %v676, %v675
      %v683 = vpack.c.b16 %v678, %v677
      %v684 = vpack.c.b16 %v680, %v679
      %v686 = vsel %vm583, %v681, 0
      %v689 = vsel %vm583, %v682, 0
      %v692 = vsel %vm583, %v683, 0
      %v695 = vsel %vm583, %v684, 0
      %v698 = vsel %vm596, %v445, 0
      %700 = vmatprep.subr.bf16.mxu0 0
      %701 = vmatpush1.bf16.msra.mxu0 %v698
      %702 = vmatprep.subr.bf16.mxu0 0
      %703 = vmatpush1.bf16.msra.mxu0 0
      %704 = vmatprep.subr.bf16.mxu0 0
      %705 = vmatpush1.bf16.msra.mxu0 0
      %706 = vmatprep.subr.bf16.mxu0 0
      %707 = vmatpush1.bf16.msra.mxu0 0
      %708 = vmatprep.subr.bf16.mxu0 0
      %709 = vmatpush1.bf16.msra.mxu0 0
      %710 = vmatprep.subr.bf16.mxu0 0
      %711 = vmatpush1.bf16.msra.mxu0 0
      %712 = vmatprep.subr.bf16.mxu0 0
      %713 = vmatpush1.bf16.msra.mxu0 0
      %714 = vmatprep.subr.bf16.mxu0 0
      %715 = vmatpush1.bf16.msra.mxu0 0
      %716 = vmatprep.subr.bf16.mxu0 0
      %717 = vmatpush1.bf16.msra.mxu0 0
      %718 = vmatprep.subr.bf16.mxu0 0
      %719 = vmatpush1.bf16.msra.mxu0 0
      %720 = vmatprep.subr.bf16.mxu0 0
      %721 = vmatpush1.bf16.msra.mxu0 0
      %722 = vmatprep.subr.bf16.mxu0 0
      %723 = vmatpush1.bf16.msra.mxu0 0
      %724 = vmatprep.subr.bf16.mxu0 0
      %725 = vmatpush1.bf16.msra.mxu0 0
      %726 = vmatprep.subr.bf16.mxu0 0
      %727 = vmatpush1.bf16.msra.mxu0 0
      %728 = vmatprep.subr.bf16.mxu0 0
      %729 = vmatpush1.bf16.msra.mxu0 0
      %730 = vmatprep.subr.bf16.mxu0 0
      %731 = vmatpush1.bf16.msra.mxu0 0
      %732 = vmatprep.mubr.bf16.mxu0 0
      %733 = vmatmul.mubr.bf16.gmra.mrb[0].mxu0 %v686
      %v734 = vpop.f32.mrb[0].mxu0
      %v735 = vadd.f32 %v635, %v734
      %v736 = vpop.f32.mrb[0].mxu0
      %v737 = vpop.f32.mrb[0].mxu0
      %v738 = vadd.f32 %v638, %v737
      %v739 = vpop.f32.mrb[0].mxu0
      %740 = vmatprep.mubr.bf16.mxu0 0
      %741 = vmatmul.mubr.bf16.gmra.mrb[0].mxu0 %v689
      %v742 = vpop.f32.mrb[0].mxu0
      %v743 = vadd.f32 %v643, %v742
      %v744 = vpop.f32.mrb[0].mxu0
      %v745 = vpop.f32.mrb[0].mxu0
      %v746 = vadd.f32 %v646, %v745
      %v747 = vpop.f32.mrb[0].mxu0
      %748 = vmatprep.mubr.bf16.mxu0 0
      %749 = vmatmul.mubr.bf16.gmra.mrb[0].mxu0 %v692
      %v750 = vpop.f32.mrb[0].mxu0
      %v751 = vadd.f32 %v651, %v750
      %v752 = vpop.f32.mrb[0].mxu0
      %v753 = vpop.f32.mrb[0].mxu0
      %v754 = vadd.f32 %v654, %v753
      %v755 = vpop.f32.mrb[0].mxu0
      %756 = vmatprep.mubr.bf16.mxu0 0
      %757 = vmatmul.mubr.bf16.gmra.mrb[0].mxu0 %v695
      %v758 = vpop.f32.mrb[0].mxu0
      %v759 = vadd.f32 %v659, %v758
      %v760 = vpop.f32.mrb[0].mxu0
      %v761 = vpop.f32.mrb[0].mxu0
      %v762 = vadd.f32 %v662, %v761
      %v763 = vpop.f32.mrb[0].mxu0
      %764 = vdwg.mxu0
      %v765 = vld [vmem:[%s402] sm:$0xe]
      %v766 = vld [vmem:[%s402 + $0x8] sm:$0xe]
      %v767 = vld [vmem:[%s402 + $0x10] sm:$0xe]
      %v768 = vld [vmem:[%s402 + $0x18] sm:$0xe]
      %v769 = vld [vmem:[%s402 + $0x20] sm:$0xe]
      %v770 = vld [vmem:[%s402 + $0x28] sm:$0xe]
      %v771 = vld [vmem:[%s402 + $0x30] sm:$0xe]
      %v772 = vld [vmem:[%s402 + $0x38] sm:$0xe]
      %vm789 = vcmask 1042432
      %vm790 = vcmask 1046532
      %vm791 = vmor %vm789, %vm790
      %v792 = vrot.slane %v765, 5
      %v793 = vrot.slane %v792, 4
      %v794 = vrot.slane %v446, 5
      %v795 = vsel %vm791, %v793, %v794
      %v796 = vrot.slane %v766, 5
      %v797 = vrot.slane %v796, 4
      %v798 = vrot.slane %v447, 5
      %v799 = vsel %vm791, %v797, %v798
      %v800 = vrot.slane %v767, 5
      %v801 = vrot.slane %v800, 4
      %v802 = vrot.slane %v448, 5
      %v803 = vsel %vm791, %v801, %v802
      %v804 = vrot.slane %v768, 5
      %v805 = vrot.slane %v804, 4
      %v806 = vrot.slane %v449, 5
      %v807 = vsel %vm791, %v805, %v806
      %v808 = vrot.slane %v769, 5
      %v809 = vrot.slane %v808, 4
      %v810 = vrot.slane %v450, 5
      %v811 = vsel %vm791, %v809, %v810
      %v812 = vrot.slane %v770, 5
      %v813 = vrot.slane %v812, 4
      %v814 = vrot.slane %v451, 5
      %v815 = vsel %vm791, %v813, %v814
      %v816 = vrot.slane %v771, 5
      %v817 = vrot.slane %v816, 4
      %v818 = vrot.slane %v452, 5
      %v819 = vsel %vm791, %v817, %v818
      %v820 = vrot.slane %v772, 5
      %v821 = vrot.slane %v820, 4
      %v822 = vrot.slane %v453, 5
      %v823 = vsel %vm791, %v821, %v822
      %s824 = scalar_lea.vmem %s406, 8
      %v825 = vld [vmem:[%s824] sm:$0xf]
      %v826 = vunpack.c.l.b16 %v795
      %v827 = vunpack.c.l.b16 %v799
      %v828 = vunpack.c.l.b16 %v803
      %v829 = vunpack.c.l.b16 %v807
      %v830 = vunpack.c.l.b16 %v811
      %v831 = vunpack.c.l.b16 %v815
      %v832 = vunpack.c.l.b16 %v819
      %v833 = vunpack.c.l.b16 %v823
      %v834 = vpack.c.b16 %v827, %v826
      %v835 = vpack.c.b16 %v829, %v828
      %v836 = vpack.c.b16 %v831, %v830
      %v837 = vpack.c.b16 %v833, %v832
      %v839 = vsel %vm583, %v834, 0
      %v842 = vsel %vm583, %v835, 0
      %v845 = vsel %vm583, %v836, 0
      %v848 = vsel %vm583, %v837, 0
      %v851 = vsel %vm596, %v825, 0
      %853 = vmatprep.subr.bf16.mxu0 0
      %854 = vmatpush1.bf16.msra.mxu0 %v851
      %855 = vmatprep.subr.bf16.mxu0 0
      %856 = vmatpush1.bf16.msra.mxu0 0
      %857 = vmatprep.subr.bf16.mxu0 0
      %858 = vmatpush1.bf16.msra.mxu0 0
      %859 = vmatprep.subr.bf16.mxu0 0
      %860 = vmatpush1.bf16.msra.mxu0 0
      %861 = vmatprep.subr.bf16.mxu0 0
      %862 = vmatpush1.bf16.msra.mxu0 0
      %863 = vmatprep.subr.bf16.mxu0 0
      %864 = vmatpush1.bf16.msra.mxu0 0
      %865 = vmatprep.subr.bf16.mxu0 0
      %866 = vmatpush1.bf16.msra.mxu0 0
      %867 = vmatprep.subr.bf16.mxu0 0
      %868 = vmatpush1.bf16.msra.mxu0 0
      %869 = vmatprep.subr.bf16.mxu0 0
      %870 = vmatpush1.bf16.msra.mxu0 0
      %871 = vmatprep.subr.bf16.mxu0 0
      %872 = vmatpush1.bf16.msra.mxu0 0
      %873 = vmatprep.subr.bf16.mxu0 0
      %874 = vmatpush1.bf16.msra.mxu0 0
      %875 = vmatprep.subr.bf16.mxu0 0
      %876 = vmatpush1.bf16.msra.mxu0 0
      %877 = vmatprep.subr.bf16.mxu0 0
      %878 = vmatpush1.bf16.msra.mxu0 0
      %879 = vmatprep.subr.bf16.mxu0 0
      %880 = vmatpush1.bf16.msra.mxu0 0
      %881 = vmatprep.subr.bf16.mxu0 0
      %882 = vmatpush1.bf16.msra.mxu0 0
      %883 = vmatprep.subr.bf16.mxu0 0
      %884 = vmatpush1.bf16.msra.mxu0 0
      %885 = vmatprep.mubr.bf16.mxu0 0
      %886 = vmatmul.mubr.bf16.gmra.mrb[0].mxu0 %v839
      %v887 = vpop.f32.mrb[0].mxu0
      %v888 = vadd.f32 0.0, %v887
      %v889 = vpop.f32.mrb[0].mxu0
      %v890 = vpop.f32.mrb[0].mxu0
      %v891 = vadd.f32 0.0, %v890
      %v892 = vpop.f32.mrb[0].mxu0
      %893 = vmatprep.mubr.bf16.mxu0 0
      %894 = vmatmul.mubr.bf16.gmra.mrb[0].mxu0 %v842
      %v895 = vpop.f32.mrb[0].mxu0
      %v896 = vadd.f32 0.0, %v895
      %v897 = vpop.f32.mrb[0].mxu0
      %v898 = vpop.f32.mrb[0].mxu0
      %v899 = vadd.f32 0.0, %v898
      %v900 = vpop.f32.mrb[0].mxu0
      %901 = vmatprep.mubr.bf16.mxu0 0
      %902 = vmatmul.mubr.bf16.gmra.mrb[0].mxu0 %v845
      %v903 = vpop.f32.mrb[0].mxu0
      %v904 = vadd.f32 0.0, %v903
      %v905 = vpop.f32.mrb[0].mxu0
      %v906 = vpop.f32.mrb[0].mxu0
      %v907 = vadd.f32 0.0, %v906
      %v908 = vpop.f32.mrb[0].mxu0
      %909 = vmatprep.mubr.bf16.mxu0 0
      %910 = vmatmul.mubr.bf16.gmra.mrb[0].mxu0 %v848
      %v911 = vpop.f32.mrb[0].mxu0
      %v912 = vadd.f32 0.0, %v911
      %v913 = vpop.f32.mrb[0].mxu0
      %v914 = vpop.f32.mrb[0].mxu0
      %v915 = vadd.f32 0.0, %v914
      %v916 = vpop.f32.mrb[0].mxu0
      %917 = vdwg.mxu0
      %v918 = vadd.f32 %v735, %v888
      %v919 = vadd.f32 %v738, %v891
      %v920 = vadd.f32 %v743, %v896
      %v921 = vadd.f32 %v746, %v899
      %v922 = vadd.f32 %v751, %v904
      %v923 = vadd.f32 %v754, %v907
      %v924 = vadd.f32 %v759, %v912
      %v925 = vadd.f32 %v762, %v915
      %s926 = scalar_lea.vmem %s402, 8
      %v927 = vld [vmem:[%s926] sm:$0xf]
      %v928 = vld [vmem:[%s926 + $0x8] sm:$0xf]
      %v929 = vld [vmem:[%s926 + $0x10] sm:$0xf]
      %v930 = vld [vmem:[%s926 + $0x18] sm:$0xf]
      %v931 = vld [vmem:[%s926 + $0x20] sm:$0xf]
      %v932 = vld [vmem:[%s926 + $0x28] sm:$0xf]
      %v933 = vld [vmem:[%s926 + $0x30] sm:$0xf]
      %v934 = vld [vmem:[%s926 + $0x38] sm:$0xf]
      %s935 = scalar_lea.vmem %s406, 12
      %v936 = vld [vmem:[%s935] sm:$0xf]
      %v945 = vunpack.c.l.b16 %v927
      %v946 = vunpack.c.l.b16 %v928
      %v947 = vunpack.c.l.b16 %v929
      %v948 = vunpack.c.l.b16 %v930
      %v949 = vunpack.c.l.b16 %v931
      %v950 = vunpack.c.l.b16 %v932
      %v951 = vunpack.c.l.b16 %v933
      %v952 = vunpack.c.l.b16 %v934
      %v953 = vpack.c.b16 %v946, %v945
      %v954 = vpack.c.b16 %v948, %v947
      %v955 = vpack.c.b16 %v950, %v949
      %v956 = vpack.c.b16 %v952, %v951
      %v958 = vsel %vm583, %v953, 0
      %v961 = vsel %vm583, %v954, 0
      %v964 = vsel %vm583, %v955, 0
      %v967 = vsel %vm583, %v956, 0
      %v970 = vsel %vm596, %v936, 0
      %972 = vmatprep.subr.bf16.mxu0 0
      %973 = vmatpush1.bf16.msra.mxu0 %v970
      %974 = vmatprep.subr.bf16.mxu0 0
      %975 = vmatpush1.bf16.msra.mxu0 0
      %976 = vmatprep.subr.bf16.mxu0 0
      %977 = vmatpush1.bf16.msra.mxu0 0
      %978 = vmatprep.subr.bf16.mxu0 0
      %979 = vmatpush1.bf16.msra.mxu0 0
      %980 = vmatprep.subr.bf16.mxu0 0
      %981 = vmatpush1.bf16.msra.mxu0 0
      %982 = vmatprep.subr.bf16.mxu0 0
      %983 = vmatpush1.bf16.msra.mxu0 0
      %984 = vmatprep.subr.bf16.mxu0 0
      %985 = vmatpush1.bf16.msra.mxu0 0
      %986 = vmatprep.subr.bf16.mxu0 0
      %987 = vmatpush1.bf16.msra.mxu0 0
      %988 = vmatprep.subr.bf16.mxu0 0
      %989 = vmatpush1.bf16.msra.mxu0 0
      %990 = vmatprep.subr.bf16.mxu0 0
      %991 = vmatpush1.bf16.msra.mxu0 0
      %992 = vmatprep.subr.bf16.mxu0 0
      %993 = vmatpush1.bf16.msra.mxu0 0
      %994 = vmatprep.subr.bf16.mxu0 0
      %995 = vmatpush1.bf16.msra.mxu0 0
      %996 = vmatprep.subr.bf16.mxu0 0
      %997 = vmatpush1.bf16.msra.mxu0 0
      %998 = vmatprep.subr.bf16.mxu0 0
      %999 = vmatpush1.bf16.msra.mxu0 0
      %1000 = vmatprep.subr.bf16.mxu0 0
      %1001 = vmatpush1.bf16.msra.mxu0 0
      %1002 = vmatprep.subr.bf16.mxu0 0
      %1003 = vmatpush1.bf16.msra.mxu0 0
      %1004 = vmatprep.mubr.bf16.mxu0 0
      %1005 = vmatmul.mubr.bf16.gmra.mrb[0].mxu0 %v958
      %v1006 = vpop.f32.mrb[0].mxu0
      %v1007 = vadd.f32 0.0, %v1006
      %v1008 = vpop.f32.mrb[0].mxu0
      %v1009 = vpop.f32.mrb[0].mxu0
      %v1010 = vadd.f32 0.0, %v1009
      %v1011 = vpop.f32.mrb[0].mxu0
      %1012 = vmatprep.mubr.bf16.mxu0 0
      %1013 = vmatmul.mubr.bf16.gmra.mrb[0].mxu0 %v961
      %v1014 = vpop.f32.mrb[0].mxu0
      %v1015 = vadd.f32 0.0, %v1014
      %v1016 = vpop.f32.mrb[0].mxu0
      %v1017 = vpop.f32.mrb[0].mxu0
      %v1018 = vadd.f32 0.0, %v1017
      %v1019 = vpop.f32.mrb[0].mxu0
      %1020 = vmatprep.mubr.bf16.mxu0 0
      %1021 = vmatmul.mubr.bf16.gmra.mrb[0].mxu0 %v964
      %v1022 = vpop.f32.mrb[0].mxu0
      %v1023 = vadd.f32 0.0, %v1022
      %v1024 = vpop.f32.mrb[0].mxu0
      %v1025 = vpop.f32.mrb[0].mxu0
      %v1026 = vadd.f32 0.0, %v1025
      %v1027 = vpop.f32.mrb[0].mxu0
      %1028 = vmatprep.mubr.bf16.mxu0 0
      %1029 = vmatmul.mubr.bf16.gmra.mrb[0].mxu0 %v967
      %v1030 = vpop.f32.mrb[0].mxu0
      %v1031 = vadd.f32 0.0, %v1030
      %v1032 = vpop.f32.mrb[0].mxu0
      %v1033 = vpop.f32.mrb[0].mxu0
      %v1034 = vadd.f32 0.0, %v1033
      %v1035 = vpop.f32.mrb[0].mxu0
      %1036 = vdwg.mxu0
      %v1037 = vadd.f32 %v918, %v1007
      %v1038 = vadd.f32 %v919, %v1010
      %v1039 = vadd.f32 %v920, %v1015
      %v1040 = vadd.f32 %v921, %v1018
      %v1041 = vadd.f32 %v922, %v1023
      %v1042 = vadd.f32 %v923, %v1026
      %v1043 = vadd.f32 %v924, %v1031
      %v1044 = vadd.f32 %v925, %v1034
      %v1045 = vld [vmem:[%s926] sm:$0xf]
      %v1046 = vld [vmem:[%s926 + $0x4] sm:$0x1]
      %v1047 = vld [vmem:[%s926 + $0x8] sm:$0xf]
      %v1048 = vld [vmem:[%s926 + $0xc] sm:$0x1]
      %v1049 = vld [vmem:[%s926 + $0x10] sm:$0xf]
      %v1050 = vld [vmem:[%s926 + $0x14] sm:$0x1]
      %v1051 = vld [vmem:[%s926 + $0x18] sm:$0xf]
      %v1052 = vld [vmem:[%s926 + $0x1c] sm:$0x1]
      %v1053 = vld [vmem:[%s926 + $0x20] sm:$0xf]
      %v1054 = vld [vmem:[%s926 + $0x24] sm:$0x1]
      %v1055 = vld [vmem:[%s926 + $0x28] sm:$0xf]
      %v1056 = vld [vmem:[%s926 + $0x2c] sm:$0x1]
      %v1057 = vld [vmem:[%s926 + $0x30] sm:$0xf]
      %v1058 = vld [vmem:[%s926 + $0x34] sm:$0x1]
      %v1059 = vld [vmem:[%s926 + $0x38] sm:$0xf]
      %v1060 = vld [vmem:[%s926 + $0x3c] sm:$0x1]
      %v1062 = vshrl.u32 %v1045, 16
      %v1064 = vrot.slane %v1062, 4
      %v1065 = vshll.u32 %v1045, 16
      %v1067 = vrot.slane %v1065, 5
      %v1068 = vor.u32 %v1064, %v1067
      %v1069 = vrot.slane %v1068, 4
      %v1071 = vshll.u32 %v1046, 16
      %v1073 = vrot.slane %v1071, 5
      %v1074 = vsel %vm456, %v1069, %v1073
      %v1076 = vshrl.u32 %v1047, 16
      %v1078 = vrot.slane %v1076, 4
      %v1079 = vshll.u32 %v1047, 16
      %v1081 = vrot.slane %v1079, 5
      %v1082 = vor.u32 %v1078, %v1081
      %v1083 = vrot.slane %v1082, 4
      %v1085 = vshll.u32 %v1048, 16
      %v1087 = vrot.slane %v1085, 5
      %v1088 = vsel %vm456, %v1083, %v1087
      %v1090 = vshrl.u32 %v1049, 16
      %v1092 = vrot.slane %v1090, 4
      %v1093 = vshll.u32 %v1049, 16
      %v1095 = vrot.slane %v1093, 5
      %v1096 = vor.u32 %v1092, %v1095
      %v1097 = vrot.slane %v1096, 4
      %v1099 = vshll.u32 %v1050, 16
      %v1101 = vrot.slane %v1099, 5
      %v1102 = vsel %vm456, %v1097, %v1101
      %v1104 = vshrl.u32 %v1051, 16
      %v1106 = vrot.slane %v1104, 4
      %v1107 = vshll.u32 %v1051, 16
      %v1109 = vrot.slane %v1107, 5
      %v1110 = vor.u32 %v1106, %v1109
      %v1111 = vrot.slane %v1110, 4
      %v1113 = vshll.u32 %v1052, 16
      %v1115 = vrot.slane %v1113, 5
      %v1116 = vsel %vm456, %v1111, %v1115
      %v1118 = vshrl.u32 %v1053, 16
      %v1120 = vrot.slane %v1118, 4
      %v1121 = vshll.u32 %v1053, 16
      %v1123 = vrot.slane %v1121, 5
      %v1124 = vor.u32 %v1120, %v1123
      %v1125 = vrot.slane %v1124, 4
      %v1127 = vshll.u32 %v1054, 16
      %v1129 = vrot.slane %v1127, 5
      %v1130 = vsel %vm456, %v1125, %v1129
      %v1132 = vshrl.u32 %v1055, 16
      %v1134 = vrot.slane %v1132, 4
      %v1135 = vshll.u32 %v1055, 16
      %v1137 = vrot.slane %v1135, 5
      %v1138 = vor.u32 %v1134, %v1137
      %v1139 = vrot.slane %v1138, 4
      %v1141 = vshll.u32 %v1056, 16
      %v1143 = vrot.slane %v1141, 5
      %v1144 = vsel %vm456, %v1139, %v1143
      %v1146 = vshrl.u32 %v1057, 16
      %v1148 = vrot.slane %v1146, 4
      %v1149 = vshll.u32 %v1057, 16
      %v1151 = vrot.slane %v1149, 5
      %v1152 = vor.u32 %v1148, %v1151
      %v1153 = vrot.slane %v1152, 4
      %v1155 = vshll.u32 %v1058, 16
      %v1157 = vrot.slane %v1155, 5
      %v1158 = vsel %vm456, %v1153, %v1157
      %v1160 = vshrl.u32 %v1059, 16
      %v1162 = vrot.slane %v1160, 4
      %v1163 = vshll.u32 %v1059, 16
      %v1165 = vrot.slane %v1163, 5
      %v1166 = vor.u32 %v1162, %v1165
      %v1167 = vrot.slane %v1166, 4
      %v1169 = vshll.u32 %v1060, 16
      %v1171 = vrot.slane %v1169, 5
      %v1172 = vsel %vm456, %v1167, %v1171
      %s1173 = scalar_lea.vmem %s406, 16
      %v1174 = vld [vmem:[%s1173] sm:$0xf]
      %v1175 = vunpack.c.l.b16 %v1074
      %v1176 = vunpack.c.l.b16 %v1088
      %v1177 = vunpack.c.l.b16 %v1102
      %v1178 = vunpack.c.l.b16 %v1116
      %v1179 = vunpack.c.l.b16 %v1130
      %v1180 = vunpack.c.l.b16 %v1144
      %v1181 = vunpack.c.l.b16 %v1158
      %v1182 = vunpack.c.l.b16 %v1172
      %v1183 = vpack.c.b16 %v1176, %v1175
      %v1184 = vpack.c.b16 %v1178, %v1177
      %v1185 = vpack.c.b16 %v1180, %v1179
      %v1186 = vpack.c.b16 %v1182, %v1181
      %v1188 = vsel %vm583, %v1183, 0
      %v1191 = vsel %vm583, %v1184, 0
      %v1194 = vsel %vm583, %v1185, 0
      %v1197 = vsel %vm583, %v1186, 0
      %v1200 = vsel %vm596, %v1174, 0
      %1202 = vmatprep.subr.bf16.mxu0 0
      %1203 = vmatpush1.bf16.msra.mxu0 %v1200
      %1204 = vmatprep.subr.bf16.mxu0 0
      %1205 = vmatpush1.bf16.msra.mxu0 0
      %1206 = vmatprep.subr.bf16.mxu0 0
      %1207 = vmatpush1.bf16.msra.mxu0 0
      %1208 = vmatprep.subr.bf16.mxu0 0
      %1209 = vmatpush1.bf16.msra.mxu0 0
      %1210 = vmatprep.subr.bf16.mxu0 0
      %1211 = vmatpush1.bf16.msra.mxu0 0
      %1212 = vmatprep.subr.bf16.mxu0 0
      %1213 = vmatpush1.bf16.msra.mxu0 0
      %1214 = vmatprep.subr.bf16.mxu0 0
      %1215 = vmatpush1.bf16.msra.mxu0 0
      %1216 = vmatprep.subr.bf16.mxu0 0
      %1217 = vmatpush1.bf16.msra.mxu0 0
      %1218 = vmatprep.subr.bf16.mxu0 0
      %1219 = vmatpush1.bf16.msra.mxu0 0
      %1220 = vmatprep.subr.bf16.mxu0 0
      %1221 = vmatpush1.bf16.msra.mxu0 0
      %1222 = vmatprep.subr.bf16.mxu0 0
      %1223 = vmatpush1.bf16.msra.mxu0 0
      %1224 = vmatprep.subr.bf16.mxu0 0
      %1225 = vmatpush1.bf16.msra.mxu0 0
      %1226 = vmatprep.subr.bf16.mxu0 0
      %1227 = vmatpush1.bf16.msra.mxu0 0
      %1228 = vmatprep.subr.bf16.mxu0 0
      %1229 = vmatpush1.bf16.msra.mxu0 0
      %1230 = vmatprep.subr.bf16.mxu0 0
      %1231 = vmatpush1.bf16.msra.mxu0 0
      %1232 = vmatprep.subr.bf16.mxu0 0
      %1233 = vmatpush1.bf16.msra.mxu0 0
      %1234 = vmatprep.mubr.bf16.mxu0 0
      %1235 = vmatmul.mubr.bf16.gmra.mrb[0].mxu0 %v1188
      %v1236 = vpop.f32.mrb[0].mxu0
      %v1237 = vadd.f32 0.0, %v1236
      %v1238 = vpop.f32.mrb[0].mxu0
      %v1239 = vpop.f32.mrb[0].mxu0
      %v1240 = vadd.f32 0.0, %v1239
      %v1241 = vpop.f32.mrb[0].mxu0
      %1242 = vmatprep.mubr.bf16.mxu0 0
      %1243 = vmatmul.mubr.bf16.gmra.mrb[0].mxu0 %v1191
      %v1244 = vpop.f32.mrb[0].mxu0
      %v1245 = vadd.f32 0.0, %v1244
      %v1246 = vpop.f32.mrb[0].mxu0
      %v1247 = vpop.f32.mrb[0].mxu0
      %v1248 = vadd.f32 0.0, %v1247
      %v1249 = vpop.f32.mrb[0].mxu0
      %1250 = vmatprep.mubr.bf16.mxu0 0
      %1251 = vmatmul.mubr.bf16.gmra.mrb[0].mxu0 %v1194
      %v1252 = vpop.f32.mrb[0].mxu0
      %v1253 = vadd.f32 0.0, %v1252
      %v1254 = vpop.f32.mrb[0].mxu0
      %v1255 = vpop.f32.mrb[0].mxu0
      %v1256 = vadd.f32 0.0, %v1255
      %v1257 = vpop.f32.mrb[0].mxu0
      %1258 = vmatprep.mubr.bf16.mxu0 0
      %1259 = vmatmul.mubr.bf16.gmra.mrb[0].mxu0 %v1197
      %v1260 = vpop.f32.mrb[0].mxu0
      %v1261 = vadd.f32 0.0, %v1260
      %v1262 = vpop.f32.mrb[0].mxu0
      %v1263 = vpop.f32.mrb[0].mxu0
      %v1264 = vadd.f32 0.0, %v1263
      %v1265 = vpop.f32.mrb[0].mxu0
      %1266 = vdwg.mxu0
      %v1267 = vadd.f32 %v1037, %v1237
      %v1268 = vadd.f32 %v1038, %v1240
      %v1269 = vadd.f32 %v1039, %v1245
      %v1270 = vadd.f32 %v1040, %v1248
      %v1271 = vadd.f32 %v1041, %v1253
      %v1272 = vadd.f32 %v1042, %v1256
      %v1273 = vadd.f32 %v1043, %v1261
      %v1274 = vadd.f32 %v1044, %v1264
      %v1275 = vld [vmem:[%s926] sm:$0xe]
      %v1276 = vld [vmem:[%s926 + $0x8] sm:$0xe]
      %v1277 = vld [vmem:[%s926 + $0x10] sm:$0xe]
      %v1278 = vld [vmem:[%s926 + $0x18] sm:$0xe]
      %v1279 = vld [vmem:[%s926 + $0x20] sm:$0xe]
      %v1280 = vld [vmem:[%s926 + $0x28] sm:$0xe]
      %v1281 = vld [vmem:[%s926 + $0x30] sm:$0xe]
      %v1282 = vld [vmem:[%s926 + $0x38] sm:$0xe]
      %v1299 = vrot.slane %v1275, 5
      %v1300 = vrot.slane %v1299, 4
      %v1301 = vrot.slane %v1046, 5
      %v1302 = vsel %vm791, %v1300, %v1301
      %v1303 = vrot.slane %v1276, 5
      %v1304 = vrot.slane %v1303, 4
      %v1305 = vrot.slane %v1048, 5
      %v1306 = vsel %vm791, %v1304, %v1305
      %v1307 = vrot.slane %v1277, 5
      %v1308 = vrot.slane %v1307, 4
      %v1309 = vrot.slane %v1050, 5
      %v1310 = vsel %vm791, %v1308, %v1309
      %v1311 = vrot.slane %v1278, 5
      %v1312 = vrot.slane %v1311, 4
      %v1313 = vrot.slane %v1052, 5
      %v1314 = vsel %vm791, %v1312, %v1313
      %v1315 = vrot.slane %v1279, 5
      %v1316 = vrot.slane %v1315, 4
      %v1317 = vrot.slane %v1054, 5
      %v1318 = vsel %vm791, %v1316, %v1317
      %v1319 = vrot.slane %v1280, 5
      %v1320 = vrot.slane %v1319, 4
      %v1321 = vrot.slane %v1056, 5
      %v1322 = vsel %vm791, %v1320, %v1321
      %v1323 = vrot.slane %v1281, 5
      %v1324 = vrot.slane %v1323, 4
      %v1325 = vrot.slane %v1058, 5
      %v1326 = vsel %vm791, %v1324, %v1325
      %v1327 = vrot.slane %v1282, 5
      %v1328 = vrot.slane %v1327, 4
      %v1329 = vrot.slane %v1060, 5
      %v1330 = vsel %vm791, %v1328, %v1329
      %s1331 = scalar_lea.vmem %s406, 20
      %v1332 = vld [vmem:[%s1331] sm:$0xf]
      %v1333 = vunpack.c.l.b16 %v1302
      %v1334 = vunpack.c.l.b16 %v1306
      %v1335 = vunpack.c.l.b16 %v1310
      %v1336 = vunpack.c.l.b16 %v1314
      %v1337 = vunpack.c.l.b16 %v1318
      %v1338 = vunpack.c.l.b16 %v1322
      %v1339 = vunpack.c.l.b16 %v1326
      %v1340 = vunpack.c.l.b16 %v1330
      %v1341 = vpack.c.b16 %v1334, %v1333
      %v1342 = vpack.c.b16 %v1336, %v1335
      %v1343 = vpack.c.b16 %v1338, %v1337
      %v1344 = vpack.c.b16 %v1340, %v1339
      %v1346 = vsel %vm583, %v1341, 0
      %v1349 = vsel %vm583, %v1342, 0
      %v1352 = vsel %vm583, %v1343, 0
      %v1355 = vsel %vm583, %v1344, 0
      %v1358 = vsel %vm596, %v1332, 0
      %1360 = vmatprep.subr.bf16.mxu0 0
      %1361 = vmatpush1.bf16.msra.mxu0 %v1358
      %1362 = vmatprep.subr.bf16.mxu0 0
      %1363 = vmatpush1.bf16.msra.mxu0 0
      %1364 = vmatprep.subr.bf16.mxu0 0
      %1365 = vmatpush1.bf16.msra.mxu0 0
      %1366 = vmatprep.subr.bf16.mxu0 0
      %1367 = vmatpush1.bf16.msra.mxu0 0
      %1368 = vmatprep.subr.bf16.mxu0 0
      %1369 = vmatpush1.bf16.msra.mxu0 0
      %1370 = vmatprep.subr.bf16.mxu0 0
      %1371 = vmatpush1.bf16.msra.mxu0 0
      %1372 = vmatprep.subr.bf16.mxu0 0
      %1373 = vmatpush1.bf16.msra.mxu0 0
      %1374 = vmatprep.subr.bf16.mxu0 0
      %1375 = vmatpush1.bf16.msra.mxu0 0
      %1376 = vmatprep.subr.bf16.mxu0 0
      %1377 = vmatpush1.bf16.msra.mxu0 0
      %1378 = vmatprep.subr.bf16.mxu0 0
      %1379 = vmatpush1.bf16.msra.mxu0 0
      %1380 = vmatprep.subr.bf16.mxu0 0
      %1381 = vmatpush1.bf16.msra.mxu0 0
      %1382 = vmatprep.subr.bf16.mxu0 0
      %1383 = vmatpush1.bf16.msra.mxu0 0
      %1384 = vmatprep.subr.bf16.mxu0 0
      %1385 = vmatpush1.bf16.msra.mxu0 0
      %1386 = vmatprep.subr.bf16.mxu0 0
      %1387 = vmatpush1.bf16.msra.mxu0 0
      %1388 = vmatprep.subr.bf16.mxu0 0
      %1389 = vmatpush1.bf16.msra.mxu0 0
      %1390 = vmatprep.subr.bf16.mxu0 0
      %1391 = vmatpush1.bf16.msra.mxu0 0
      %1392 = vmatprep.mubr.bf16.mxu0 0
      %1393 = vmatmul.mubr.bf16.gmra.mrb[0].mxu0 %v1346
      %v1394 = vpop.f32.mrb[0].mxu0
      %v1395 = vadd.f32 0.0, %v1394
      %v1396 = vpop.f32.mrb[0].mxu0
      %v1397 = vpop.f32.mrb[0].mxu0
      %v1398 = vadd.f32 0.0, %v1397
      %v1399 = vpop.f32.mrb[0].mxu0
      %1400 = vmatprep.mubr.bf16.mxu0 0
      %1401 = vmatmul.mubr.bf16.gmra.mrb[0].mxu0 %v1349
      %v1402 = vpop.f32.mrb[0].mxu0
      %v1403 = vadd.f32 0.0, %v1402
      %v1404 = vpop.f32.mrb[0].mxu0
      %v1405 = vpop.f32.mrb[0].mxu0
      %v1406 = vadd.f32 0.0, %v1405
      %v1407 = vpop.f32.mrb[0].mxu0
      %1408 = vmatprep.mubr.bf16.mxu0 0
      %1409 = vmatmul.mubr.bf16.gmra.mrb[0].mxu0 %v1352
      %v1410 = vpop.f32.mrb[0].mxu0
      %v1411 = vadd.f32 0.0, %v1410
      %v1412 = vpop.f32.mrb[0].mxu0
      %v1413 = vpop.f32.mrb[0].mxu0
      %v1414 = vadd.f32 0.0, %v1413
      %v1415 = vpop.f32.mrb[0].mxu0
      %1416 = vmatprep.mubr.bf16.mxu0 0
      %1417 = vmatmul.mubr.bf16.gmra.mrb[0].mxu0 %v1355
      %v1418 = vpop.f32.mrb[0].mxu0
      %v1419 = vadd.f32 0.0, %v1418
      %v1420 = vpop.f32.mrb[0].mxu0
      %v1421 = vpop.f32.mrb[0].mxu0
      %v1422 = vadd.f32 0.0, %v1421
      %v1423 = vpop.f32.mrb[0].mxu0
      %1424 = vdwg.mxu0
      %v1425 = vadd.f32 %v1267, %v1395
      %v1426 = vadd.f32 %v1268, %v1398
      %v1427 = vadd.f32 %v1269, %v1403
      %v1428 = vadd.f32 %v1270, %v1406
      %v1429 = vadd.f32 %v1271, %v1411
      %v1430 = vadd.f32 %v1272, %v1414
      %v1431 = vadd.f32 %v1273, %v1419
      %v1432 = vadd.f32 %v1274, %v1422
      %s1433 = scalar_lea.vmem %s402, 16
      %v1434 = vld [vmem:[%s1433] sm:$0xf]
      %v1435 = vld [vmem:[%s1433 + $0x8] sm:$0xf]
      %v1436 = vld [vmem:[%s1433 + $0x10] sm:$0xf]
      %v1437 = vld [vmem:[%s1433 + $0x18] sm:$0xf]
      %v1438 = vld [vmem:[%s1433 + $0x20] sm:$0xf]
      %v1439 = vld [vmem:[%s1433 + $0x28] sm:$0xf]
      %v1440 = vld [vmem:[%s1433 + $0x30] sm:$0xf]
      %v1441 = vld [vmem:[%s1433 + $0x38] sm:$0xf]
      %s1442 = scalar_lea.vmem %s406, 24
      %v1443 = vld [vmem:[%s1442] sm:$0xf]
      %v1452 = vunpack.c.l.b16 %v1434
      %v1453 = vunpack.c.l.b16 %v1435
      %v1454 = vunpack.c.l.b16 %v1436
      %v1455 = vunpack.c.l.b16 %v1437
      %v1456 = vunpack.c.l.b16 %v1438
      %v1457 = vunpack.c.l.b16 %v1439
      %v1458 = vunpack.c.l.b16 %v1440
      %v1459 = vunpack.c.l.b16 %v1441
      %v1460 = vpack.c.b16 %v1453, %v1452
      %v1461 = vpack.c.b16 %v1455, %v1454
      %v1462 = vpack.c.b16 %v1457, %v1456
      %v1463 = vpack.c.b16 %v1459, %v1458
      %v1465 = vsel %vm583, %v1460, 0
      %v1468 = vsel %vm583, %v1461, 0
      %v1471 = vsel %vm583, %v1462, 0
      %v1474 = vsel %vm583, %v1463, 0
      %v1477 = vsel %vm596, %v1443, 0
      %1479 = vmatprep.subr.bf16.mxu0 0
      %1480 = vmatpush1.bf16.msra.mxu0 %v1477
      %1481 = vmatprep.subr.bf16.mxu0 0
      %1482 = vmatpush1.bf16.msra.mxu0 0
      %1483 = vmatprep.subr.bf16.mxu0 0
      %1484 = vmatpush1.bf16.msra.mxu0 0
      %1485 = vmatprep.subr.bf16.mxu0 0
      %1486 = vmatpush1.bf16.msra.mxu0 0
      %1487 = vmatprep.subr.bf16.mxu0 0
      %1488 = vmatpush1.bf16.msra.mxu0 0
      %1489 = vmatprep.subr.bf16.mxu0 0
      %1490 = vmatpush1.bf16.msra.mxu0 0
      %1491 = vmatprep.subr.bf16.mxu0 0
      %1492 = vmatpush1.bf16.msra.mxu0 0
      %1493 = vmatprep.subr.bf16.mxu0 0
      %1494 = vmatpush1.bf16.msra.mxu0 0
      %1495 = vmatprep.subr.bf16.mxu0 0
      %1496 = vmatpush1.bf16.msra.mxu0 0
      %1497 = vmatprep.subr.bf16.mxu0 0
      %1498 = vmatpush1.bf16.msra.mxu0 0
      %1499 = vmatprep.subr.bf16.mxu0 0
      %1500 = vmatpush1.bf16.msra.mxu0 0
      %1501 = vmatprep.subr.bf16.mxu0 0
      %1502 = vmatpush1.bf16.msra.mxu0 0
      %1503 = vmatprep.subr.bf16.mxu0 0
      %1504 = vmatpush1.bf16.msra.mxu0 0
      %1505 = vmatprep.subr.bf16.mxu0 0
      %1506 = vmatpush1.bf16.msra.mxu0 0
      %1507 = vmatprep.subr.bf16.mxu0 0
      %1508 = vmatpush1.bf16.msra.mxu0 0
      %1509 = vmatprep.subr.bf16.mxu0 0
      %1510 = vmatpush1.bf16.msra.mxu0 0
      %1511 = vmatprep.mubr.bf16.mxu0 0
      %1512 = vmatmul.mubr.bf16.gmra.mrb[0].mxu0 %v1465
      %v1513 = vpop.f32.mrb[0].mxu0
      %v1514 = vadd.f32 0.0, %v1513
      %v1515 = vpop.f32.mrb[0].mxu0
      %v1516 = vpop.f32.mrb[0].mxu0
      %v1517 = vadd.f32 0.0, %v1516
      %v1518 = vpop.f32.mrb[0].mxu0
      %1519 = vmatprep.mubr.bf16.mxu0 0
      %1520 = vmatmul.mubr.bf16.gmra.mrb[0].mxu0 %v1468
      %v1521 = vpop.f32.mrb[0].mxu0
      %v1522 = vadd.f32 0.0, %v1521
      %v1523 = vpop.f32.mrb[0].mxu0
      %v1524 = vpop.f32.mrb[0].mxu0
      %v1525 = vadd.f32 0.0, %v1524
      %v1526 = vpop.f32.mrb[0].mxu0
      %1527 = vmatprep.mubr.bf16.mxu0 0
      %1528 = vmatmul.mubr.bf16.gmra.mrb[0].mxu0 %v1471
      %v1529 = vpop.f32.mrb[0].mxu0
      %v1530 = vadd.f32 0.0, %v1529
      %v1531 = vpop.f32.mrb[0].mxu0
      %v1532 = vpop.f32.mrb[0].mxu0
      %v1533 = vadd.f32 0.0, %v1532
      %v1534 = vpop.f32.mrb[0].mxu0
      %1535 = vmatprep.mubr.bf16.mxu0 0
      %1536 = vmatmul.mubr.bf16.gmra.mrb[0].mxu0 %v1474
      %v1537 = vpop.f32.mrb[0].mxu0
      %v1538 = vadd.f32 0.0, %v1537
      %v1539 = vpop.f32.mrb[0].mxu0
      %v1540 = vpop.f32.mrb[0].mxu0
      %v1541 = vadd.f32 0.0, %v1540
      %v1542 = vpop.f32.mrb[0].mxu0
      %1543 = vdwg.mxu0
      %v1544 = vadd.f32 %v1425, %v1514
      %v1545 = vadd.f32 %v1426, %v1517
      %v1546 = vadd.f32 %v1427, %v1522
      %v1547 = vadd.f32 %v1428, %v1525
      %v1548 = vadd.f32 %v1429, %v1530
      %v1549 = vadd.f32 %v1430, %v1533
      %v1550 = vadd.f32 %v1431, %v1538
      %v1551 = vadd.f32 %v1432, %v1541
      %v1552 = vld [vmem:[%s1433] sm:$0xf]
      %v1553 = vld [vmem:[%s1433 + $0x4] sm:$0x1]
      %v1554 = vld [vmem:[%s1433 + $0x8] sm:$0xf]
      %v1555 = vld [vmem:[%s1433 + $0xc] sm:$0x1]
      %v1556 = vld [vmem:[%s1433 + $0x10] sm:$0xf]
      %v1557 = vld [vmem:[%s1433 + $0x14] sm:$0x1]
      %v1558 = vld [vmem:[%s1433 + $0x18] sm:$0xf]
      %v1559 = vld [vmem:[%s1433 + $0x1c] sm:$0x1]
      %v1560 = vld [vmem:[%s1433 + $0x20] sm:$0xf]
      %v1561 = vld [vmem:[%s1433 + $0x24] sm:$0x1]
      %v1562 = vld [vmem:[%s1433 + $0x28] sm:$0xf]
      %v1563 = vld [vmem:[%s1433 + $0x2c] sm:$0x1]
      %v1564 = vld [vmem:[%s1433 + $0x30] sm:$0xf]
      %v1565 = vld [vmem:[%s1433 + $0x34] sm:$0x1]
      %v1566 = vld [vmem:[%s1433 + $0x38] sm:$0xf]
      %v1567 = vld [vmem:[%s1433 + $0x3c] sm:$0x1]
      %v1569 = vshrl.u32 %v1552, 16
      %v1571 = vrot.slane %v1569, 4
      %v1572 = vshll.u32 %v1552, 16
      %v1574 = vrot.slane %v1572, 5
      %v1575 = vor.u32 %v1571, %v1574
      %v1576 = vrot.slane %v1575, 4
      %v1578 = vshll.u32 %v1553, 16
      %v1580 = vrot.slane %v1578, 5
      %v1581 = vsel %vm456, %v1576, %v1580
      %v1583 = vshrl.u32 %v1554, 16
      %v1585 = vrot.slane %v1583, 4
      %v1586 = vshll.u32 %v1554, 16
      %v1588 = vrot.slane %v1586, 5
      %v1589 = vor.u32 %v1585, %v1588
      %v1590 = vrot.slane %v1589, 4
      %v1592 = vshll.u32 %v1555, 16
      %v1594 = vrot.slane %v1592, 5
      %v1595 = vsel %vm456, %v1590, %v1594
      %v1597 = vshrl.u32 %v1556, 16
      %v1599 = vrot.slane %v1597, 4
      %v1600 = vshll.u32 %v1556, 16
      %v1602 = vrot.slane %v1600, 5
      %v1603 = vor.u32 %v1599, %v1602
      %v1604 = vrot.slane %v1603, 4
      %v1606 = vshll.u32 %v1557, 16
      %v1608 = vrot.slane %v1606, 5
      %v1609 = vsel %vm456, %v1604, %v1608
      %v1611 = vshrl.u32 %v1558, 16
      %v1613 = vrot.slane %v1611, 4
      %v1614 = vshll.u32 %v1558, 16
      %v1616 = vrot.slane %v1614, 5
      %v1617 = vor.u32 %v1613, %v1616
      %v1618 = vrot.slane %v1617, 4
      %v1620 = vshll.u32 %v1559, 16
      %v1622 = vrot.slane %v1620, 5
      %v1623 = vsel %vm456, %v1618, %v1622
      %v1625 = vshrl.u32 %v1560, 16
      %v1627 = vrot.slane %v1625, 4
      %v1628 = vshll.u32 %v1560, 16
      %v1630 = vrot.slane %v1628, 5
      %v1631 = vor.u32 %v1627, %v1630
      %v1632 = vrot.slane %v1631, 4
      %v1634 = vshll.u32 %v1561, 16
      %v1636 = vrot.slane %v1634, 5
      %v1637 = vsel %vm456, %v1632, %v1636
      %v1639 = vshrl.u32 %v1562, 16
      %v1641 = vrot.slane %v1639, 4
      %v1642 = vshll.u32 %v1562, 16
      %v1644 = vrot.slane %v1642, 5
      %v1645 = vor.u32 %v1641, %v1644
      %v1646 = vrot.slane %v1645, 4
      %v1648 = vshll.u32 %v1563, 16
      %v1650 = vrot.slane %v1648, 5
      %v1651 = vsel %vm456, %v1646, %v1650
      %v1653 = vshrl.u32 %v1564, 16
      %v1655 = vrot.slane %v1653, 4
      %v1656 = vshll.u32 %v1564, 16
      %v1658 = vrot.slane %v1656, 5
      %v1659 = vor.u32 %v1655, %v1658
      %v1660 = vrot.slane %v1659, 4
      %v1662 = vshll.u32 %v1565, 16
      %v1664 = vrot.slane %v1662, 5
      %v1665 = vsel %vm456, %v1660, %v1664
      %v1667 = vshrl.u32 %v1566, 16
      %v1669 = vrot.slane %v1667, 4
      %v1670 = vshll.u32 %v1566, 16
      %v1672 = vrot.slane %v1670, 5
      %v1673 = vor.u32 %v1669, %v1672
      %v1674 = vrot.slane %v1673, 4
      %v1676 = vshll.u32 %v1567, 16
      %v1678 = vrot.slane %v1676, 5
      %v1679 = vsel %vm456, %v1674, %v1678
      %s1680 = scalar_lea.vmem %s406, 28
      %v1681 = vld [vmem:[%s1680] sm:$0xf]
      %v1682 = vunpack.c.l.b16 %v1581
      %v1683 = vunpack.c.l.b16 %v1595
      %v1684 = vunpack.c.l.b16 %v1609
      %v1685 = vunpack.c.l.b16 %v1623
      %v1686 = vunpack.c.l.b16 %v1637
      %v1687 = vunpack.c.l.b16 %v1651
      %v1688 = vunpack.c.l.b16 %v1665
      %v1689 = vunpack.c.l.b16 %v1679
      %v1690 = vpack.c.b16 %v1683, %v1682
      %v1691 = vpack.c.b16 %v1685, %v1684
      %v1692 = vpack.c.b16 %v1687, %v1686
      %v1693 = vpack.c.b16 %v1689, %v1688
      %v1695 = vsel %vm583, %v1690, 0
      %v1698 = vsel %vm583, %v1691, 0
      %v1701 = vsel %vm583, %v1692, 0
      %v1704 = vsel %vm583, %v1693, 0
      %v1707 = vsel %vm596, %v1681, 0
      %1709 = vmatprep.subr.bf16.mxu0 0
      %1710 = vmatpush1.bf16.msra.mxu0 %v1707
      %1711 = vmatprep.subr.bf16.mxu0 0
      %1712 = vmatpush1.bf16.msra.mxu0 0
      %1713 = vmatprep.subr.bf16.mxu0 0
      %1714 = vmatpush1.bf16.msra.mxu0 0
      %1715 = vmatprep.subr.bf16.mxu0 0
      %1716 = vmatpush1.bf16.msra.mxu0 0
      %1717 = vmatprep.subr.bf16.mxu0 0
      %1718 = vmatpush1.bf16.msra.mxu0 0
      %1719 = vmatprep.subr.bf16.mxu0 0
      %1720 = vmatpush1.bf16.msra.mxu0 0
      %1721 = vmatprep.subr.bf16.mxu0 0
      %1722 = vmatpush1.bf16.msra.mxu0 0
      %1723 = vmatprep.subr.bf16.mxu0 0
      %1724 = vmatpush1.bf16.msra.mxu0 0
      %1725 = vmatprep.subr.bf16.mxu0 0
      %1726 = vmatpush1.bf16.msra.mxu0 0
      %1727 = vmatprep.subr.bf16.mxu0 0
      %1728 = vmatpush1.bf16.msra.mxu0 0
      %1729 = vmatprep.subr.bf16.mxu0 0
      %1730 = vmatpush1.bf16.msra.mxu0 0
      %1731 = vmatprep.subr.bf16.mxu0 0
      %1732 = vmatpush1.bf16.msra.mxu0 0
      %1733 = vmatprep.subr.bf16.mxu0 0
      %1734 = vmatpush1.bf16.msra.mxu0 0
      %1735 = vmatprep.subr.bf16.mxu0 0
      %1736 = vmatpush1.bf16.msra.mxu0 0
      %1737 = vmatprep.subr.bf16.mxu0 0
      %1738 = vmatpush1.bf16.msra.mxu0 0
      %1739 = vmatprep.subr.bf16.mxu0 0
      %1740 = vmatpush1.bf16.msra.mxu0 0
      %1741 = vmatprep.mubr.bf16.mxu0 0
      %1742 = vmatmul.mubr.bf16.gmra.mrb[0].mxu0 %v1695
      %v1743 = vpop.f32.mrb[0].mxu0
      %v1744 = vadd.f32 0.0, %v1743
      %v1745 = vpop.f32.mrb[0].mxu0
      %v1746 = vpop.f32.mrb[0].mxu0
      %v1747 = vadd.f32 0.0, %v1746
      %v1748 = vpop.f32.mrb[0].mxu0
      %1749 = vmatprep.mubr.bf16.mxu0 0
      %1750 = vmatmul.mubr.bf16.gmra.mrb[0].mxu0 %v1698
      %v1751 = vpop.f32.mrb[0].mxu0
      %v1752 = vadd.f32 0.0, %v1751
      %v1753 = vpop.f32.mrb[0].mxu0
      %v1754 = vpop.f32.mrb[0].mxu0
      %v1755 = vadd.f32 0.0, %v1754
      %v1756 = vpop.f32.mrb[0].mxu0
      %1757 = vmatprep.mubr.bf16.mxu0 0
      %1758 = vmatmul.mubr.bf16.gmra.mrb[0].mxu0 %v1701
      %v1759 = vpop.f32.mrb[0].mxu0
      %v1760 = vadd.f32 0.0, %v1759
      %v1761 = vpop.f32.mrb[0].mxu0
      %v1762 = vpop.f32.mrb[0].mxu0
      %v1763 = vadd.f32 0.0, %v1762
      %v1764 = vpop.f32.mrb[0].mxu0
      %1765 = vmatprep.mubr.bf16.mxu0 0
      %1766 = vmatmul.mubr.bf16.gmra.mrb[0].mxu0 %v1704
      %v1767 = vpop.f32.mrb[0].mxu0
      %v1768 = vadd.f32 0.0, %v1767
      %v1769 = vpop.f32.mrb[0].mxu0
      %v1770 = vpop.f32.mrb[0].mxu0
      %v1771 = vadd.f32 0.0, %v1770
      %v1772 = vpop.f32.mrb[0].mxu0
      %1773 = vdwg.mxu0
      %v1774 = vadd.f32 %v1544, %v1744
      %v1775 = vadd.f32 %v1545, %v1747
      %v1776 = vadd.f32 %v1546, %v1752
      %v1777 = vadd.f32 %v1547, %v1755
      %v1778 = vadd.f32 %v1548, %v1760
      %v1779 = vadd.f32 %v1549, %v1763
      %v1780 = vadd.f32 %v1550, %v1768
      %v1781 = vadd.f32 %v1551, %v1771
      %v1782 = vld [vmem:[%s1433] sm:$0xe]
      %v1783 = vld [vmem:[%s1433 + $0x8] sm:$0xe]
      %v1784 = vld [vmem:[%s1433 + $0x10] sm:$0xe]
      %v1785 = vld [vmem:[%s1433 + $0x18] sm:$0xe]
      %v1786 = vld [vmem:[%s1433 + $0x20] sm:$0xe]
      %v1787 = vld [vmem:[%s1433 + $0x28] sm:$0xe]
      %v1788 = vld [vmem:[%s1433 + $0x30] sm:$0xe]
      %v1789 = vld [vmem:[%s1433 + $0x38] sm:$0xe]
      %v1806 = vrot.slane %v1782, 5
      %v1807 = vrot.slane %v1806, 4
      %v1808 = vrot.slane %v1553, 5
      %v1809 = vsel %vm791, %v1807, %v1808
      %v1810 = vrot.slane %v1783, 5
      %v1811 = vrot.slane %v1810, 4
      %v1812 = vrot.slane %v1555, 5
      %v1813 = vsel %vm791, %v1811, %v1812
      %v1814 = vrot.slane %v1784, 5
      %v1815 = vrot.slane %v1814, 4
      %v1816 = vrot.slane %v1557, 5
      %v1817 = vsel %vm791, %v1815, %v1816
      %v1818 = vrot.slane %v1785, 5
      %v1819 = vrot.slane %v1818, 4
      %v1820 = vrot.slane %v1559, 5
      %v1821 = vsel %vm791, %v1819, %v1820
      %v1822 = vrot.slane %v1786, 5
      %v1823 = vrot.slane %v1822, 4
      %v1824 = vrot.slane %v1561, 5
      %v1825 = vsel %vm791, %v1823, %v1824
      %v1826 = vrot.slane %v1787, 5
      %v1827 = vrot.slane %v1826, 4
      %v1828 = vrot.slane %v1563, 5
      %v1829 = vsel %vm791, %v1827, %v1828
      %v1830 = vrot.slane %v1788, 5
      %v1831 = vrot.slane %v1830, 4
      %v1832 = vrot.slane %v1565, 5
      %v1833 = vsel %vm791, %v1831, %v1832
      %v1834 = vrot.slane %v1789, 5
      %v1835 = vrot.slane %v1834, 4
      %v1836 = vrot.slane %v1567, 5
      %v1837 = vsel %vm791, %v1835, %v1836
      %s1838 = scalar_lea.vmem %s406, 32
      %v1839 = vld [vmem:[%s1838] sm:$0xf]
      %v1840 = vunpack.c.l.b16 %v1809
      %v1841 = vunpack.c.l.b16 %v1813
      %v1842 = vunpack.c.l.b16 %v1817
      %v1843 = vunpack.c.l.b16 %v1821
      %v1844 = vunpack.c.l.b16 %v1825
      %v1845 = vunpack.c.l.b16 %v1829
      %v1846 = vunpack.c.l.b16 %v1833
      %v1847 = vunpack.c.l.b16 %v1837
      %v1848 = vpack.c.b16 %v1841, %v1840
      %v1849 = vpack.c.b16 %v1843, %v1842
      %v1850 = vpack.c.b16 %v1845, %v1844
      %v1851 = vpack.c.b16 %v1847, %v1846
      %v1853 = vsel %vm583, %v1848, 0
      %v1856 = vsel %vm583, %v1849, 0
      %v1859 = vsel %vm583, %v1850, 0
      %v1862 = vsel %vm583, %v1851, 0
      %v1865 = vsel %vm596, %v1839, 0
      %1867 = vmatprep.subr.bf16.mxu0 0
      %1868 = vmatpush1.bf16.msra.mxu0 %v1865
      %1869 = vmatprep.subr.bf16.mxu0 0
      %1870 = vmatpush1.bf16.msra.mxu0 0
      %1871 = vmatprep.subr.bf16.mxu0 0
      %1872 = vmatpush1.bf16.msra.mxu0 0
      %1873 = vmatprep.subr.bf16.mxu0 0
      %1874 = vmatpush1.bf16.msra.mxu0 0
      %1875 = vmatprep.subr.bf16.mxu0 0
      %1876 = vmatpush1.bf16.msra.mxu0 0
      %1877 = vmatprep.subr.bf16.mxu0 0
      %1878 = vmatpush1.bf16.msra.mxu0 0
      %1879 = vmatprep.subr.bf16.mxu0 0
      %1880 = vmatpush1.bf16.msra.mxu0 0
      %1881 = vmatprep.subr.bf16.mxu0 0
      %1882 = vmatpush1.bf16.msra.mxu0 0
      %1883 = vmatprep.subr.bf16.mxu0 0
      %1884 = vmatpush1.bf16.msra.mxu0 0
      %1885 = vmatprep.subr.bf16.mxu0 0
      %1886 = vmatpush1.bf16.msra.mxu0 0
      %1887 = vmatprep.subr.bf16.mxu0 0
      %1888 = vmatpush1.bf16.msra.mxu0 0
      %1889 = vmatprep.subr.bf16.mxu0 0
      %1890 = vmatpush1.bf16.msra.mxu0 0
      %1891 = vmatprep.subr.bf16.mxu0 0
      %1892 = vmatpush1.bf16.msra.mxu0 0
      %1893 = vmatprep.subr.bf16.mxu0 0
      %1894 = vmatpush1.bf16.msra.mxu0 0
      %1895 = vmatprep.subr.bf16.mxu0 0
      %1896 = vmatpush1.bf16.msra.mxu0 0
      %1897 = vmatprep.subr.bf16.mxu0 0
      %1898 = vmatpush1.bf16.msra.mxu0 0
      %1899 = vmatprep.mubr.bf16.mxu0 0
      %1900 = vmatmul.mubr.bf16.gmra.mrb[0].mxu0 %v1853
      %v1901 = vpop.f32.mrb[0].mxu0
      %v1902 = vadd.f32 0.0, %v1901
      %v1903 = vpop.f32.mrb[0].mxu0
      %v1904 = vpop.f32.mrb[0].mxu0
      %v1905 = vadd.f32 0.0, %v1904
      %v1906 = vpop.f32.mrb[0].mxu0
      %1907 = vmatprep.mubr.bf16.mxu0 0
      %1908 = vmatmul.mubr.bf16.gmra.mrb[0].mxu0 %v1856
      %v1909 = vpop.f32.mrb[0].mxu0
      %v1910 = vadd.f32 0.0, %v1909
      %v1911 = vpop.f32.mrb[0].mxu0
      %v1912 = vpop.f32.mrb[0].mxu0
      %v1913 = vadd.f32 0.0, %v1912
      %v1914 = vpop.f32.mrb[0].mxu0
      %1915 = vmatprep.mubr.bf16.mxu0 0
      %1916 = vmatmul.mubr.bf16.gmra.mrb[0].mxu0 %v1859
      %v1917 = vpop.f32.mrb[0].mxu0
      %v1918 = vadd.f32 0.0, %v1917
      %v1919 = vpop.f32.mrb[0].mxu0
      %v1920 = vpop.f32.mrb[0].mxu0
      %v1921 = vadd.f32 0.0, %v1920
      %v1922 = vpop.f32.mrb[0].mxu0
      %1923 = vmatprep.mubr.bf16.mxu0 0
      %1924 = vmatmul.mubr.bf16.gmra.mrb[0].mxu0 %v1862
      %v1925 = vpop.f32.mrb[0].mxu0
      %v1926 = vadd.f32 0.0, %v1925
      %v1927 = vpop.f32.mrb[0].mxu0
      %v1928 = vpop.f32.mrb[0].mxu0
      %v1929 = vadd.f32 0.0, %v1928
      %v1930 = vpop.f32.mrb[0].mxu0
      %1931 = vdwg.mxu0
      %v1932 = vadd.f32 %v1774, %v1902
      %v1933 = vadd.f32 %v1775, %v1905
      %v1934 = vadd.f32 %v1776, %v1910
      %v1935 = vadd.f32 %v1777, %v1913
      %v1936 = vadd.f32 %v1778, %v1918
      %v1937 = vadd.f32 %v1779, %v1921
      %v1938 = vadd.f32 %v1780, %v1926
      %v1939 = vadd.f32 %v1781, %v1929
      %v1940 = vld [vmem:[%s409] sm:$0x1]
      %v1942 = vlaneseq
      %v1943 = vshrl.u32 %v1942, 7
      %v1944 = vsub.s32 0, %v1943
      %v1945 = vrot.slane %v1940, %v1944
      %v1947 = vmul.f32 %v1932, %v1945
      %v1948 = vmul.f32 %v1933, %v1945
      %v1949 = vmul.f32 %v1934, %v1945
      %v1950 = vmul.f32 %v1935, %v1945
      %v1951 = vmul.f32 %v1936, %v1945
      %v1952 = vmul.f32 %v1937, %v1945
      %v1953 = vmul.f32 %v1938, %v1945
      %v1954 = vmul.f32 %v1939, %v1945
      %v1955 = vld [vmem:[%s412] sm:$0x1]
      %v1957 = vlaneseq
      %v1958 = vshrl.u32 %v1957, 7
      %v1959 = vsub.s32 0, %v1958
      %v1960 = vrot.slane %v1955, %v1959
      %v1962 = vadd.f32 %v1947, %v1960
      %v1963 = vadd.f32 %v1948, %v1960
      %v1964 = vadd.f32 %v1949, %v1960
      %v1965 = vadd.f32 %v1950, %v1960
      %v1966 = vadd.f32 %v1951, %v1960
      %v1967 = vadd.f32 %v1952, %v1960
      %v1968 = vadd.f32 %v1953, %v1960
      %v1969 = vadd.f32 %v1954, %v1960
      %v1970 = vld [vmem:[%s417] sm:$0xf]
      %v1971 = vld [vmem:[%s417 + $0x8] sm:$0xf]
      %v1972 = vld [vmem:[%s417 + $0x10] sm:$0xf]
      %v1973 = vld [vmem:[%s417 + $0x18] sm:$0xf]
      %v1974 = vld [vmem:[%s417 + $0x20] sm:$0xf]
      %v1975 = vld [vmem:[%s417 + $0x28] sm:$0xf]
      %v1976 = vld [vmem:[%s417 + $0x30] sm:$0xf]
      %v1977 = vld [vmem:[%s417 + $0x38] sm:$0xf]
      %v1978 = vld [vmem:[%s421] sm:$0x3]
      %v1987 = vunpack.c.l.b16 %v1970
      %v1988 = vunpack.c.l.b16 %v1971
      %v1989 = vunpack.c.l.b16 %v1972
      %v1990 = vunpack.c.l.b16 %v1973
      %v1991 = vunpack.c.l.b16 %v1974
      %v1992 = vunpack.c.l.b16 %v1975
      %v1993 = vunpack.c.l.b16 %v1976
      %v1994 = vunpack.c.l.b16 %v1977
      %v1995 = vpack.c.b16 %v1988, %v1987
      %v1996 = vpack.c.b16 %v1990, %v1989
      %v1997 = vpack.c.b16 %v1992, %v1991
      %v1998 = vpack.c.b16 %v1994, %v1993
      %vm1999 = vcmask 31744
      %v2001 = vsel %vm1999, %v1995, 0
      %v2004 = vsel %vm1999, %v1996, 0
      %v2007 = vsel %vm1999, %v1997, 0
      %v2010 = vsel %vm1999, %v1998, 0
      %vm2012 = vcmask 1041408
      %v2014 = vsel %vm2012, %v1978, 0
      %2016 = vmatprep.subr.bf16.mxu0 0
      %2017 = vmatpush1.bf16.msra.mxu0 %v2014
      %2018 = vmatprep.subr.bf16.mxu0 0
      %2019 = vmatpush1.bf16.msra.mxu0 0
      %2020 = vmatprep.subr.bf16.mxu0 0
      %2021 = vmatpush1.bf16.msra.mxu0 0
      %2022 = vmatprep.subr.bf16.mxu0 0
      %2023 = vmatpush1.bf16.msra.mxu0 0
      %2024 = vmatprep.subr.bf16.mxu0 0
      %2025 = vmatpush1.bf16.msra.mxu0 0
      %2026 = vmatprep.subr.bf16.mxu0 0
      %2027 = vmatpush1.bf16.msra.mxu0 0
      %2028 = vmatprep.subr.bf16.mxu0 0
      %2029 = vmatpush1.bf16.msra.mxu0 0
      %2030 = vmatprep.subr.bf16.mxu0 0
      %2031 = vmatpush1.bf16.msra.mxu0 0
      %2032 = vmatprep.subr.bf16.mxu0 0
      %2033 = vmatpush1.bf16.msra.mxu0 0
      %2034 = vmatprep.subr.bf16.mxu0 0
      %2035 = vmatpush1.bf16.msra.mxu0 0
      %2036 = vmatprep.subr.bf16.mxu0 0
      %2037 = vmatpush1.bf16.msra.mxu0 0
      %2038 = vmatprep.subr.bf16.mxu0 0
      %2039 = vmatpush1.bf16.msra.mxu0 0
      %2040 = vmatprep.subr.bf16.mxu0 0
      %2041 = vmatpush1.bf16.msra.mxu0 0
      %2042 = vmatprep.subr.bf16.mxu0 0
      %2043 = vmatpush1.bf16.msra.mxu0 0
      %2044 = vmatprep.subr.bf16.mxu0 0
      %2045 = vmatpush1.bf16.msra.mxu0 0
      %2046 = vmatprep.subr.bf16.mxu0 0
      %2047 = vmatpush1.bf16.msra.mxu0 0
      %2048 = vmatprep.mubr.bf16.mxu0 0
      %2049 = vmatmul.mubr.bf16.gmra.mrb[0].mxu0 %v2001
      %v2050 = vpop.f32.mrb[0].mxu0
      %v2051 = vadd.f32 0.0, %v2050
      %v2052 = vpop.f32.mrb[0].mxu0
      %v2053 = vpop.f32.mrb[0].mxu0
      %v2054 = vadd.f32 0.0, %v2053
      %v2055 = vpop.f32.mrb[0].mxu0
      %2056 = vmatprep.mubr.bf16.mxu0 0
      %2057 = vmatmul.mubr.bf16.gmra.mrb[0].mxu0 %v2004
      %v2058 = vpop.f32.mrb[0].mxu0
      %v2059 = vadd.f32 0.0, %v2058
      %v2060 = vpop.f32.mrb[0].mxu0
      %v2061 = vpop.f32.mrb[0].mxu0
      %v2062 = vadd.f32 0.0, %v2061
      %v2063 = vpop.f32.mrb[0].mxu0
      %2064 = vmatprep.mubr.bf16.mxu0 0
      %2065 = vmatmul.mubr.bf16.gmra.mrb[0].mxu0 %v2007
      %v2066 = vpop.f32.mrb[0].mxu0
      %v2067 = vadd.f32 0.0, %v2066
      %v2068 = vpop.f32.mrb[0].mxu0
      %v2069 = vpop.f32.mrb[0].mxu0
      %v2070 = vadd.f32 0.0, %v2069
      %v2071 = vpop.f32.mrb[0].mxu0
      %2072 = vmatprep.mubr.bf16.mxu0 0
      %2073 = vmatmul.mubr.bf16.gmra.mrb[0].mxu0 %v2010
      %v2074 = vpop.f32.mrb[0].mxu0
      %v2075 = vadd.f32 0.0, %v2074
      %v2076 = vpop.f32.mrb[0].mxu0
      %v2077 = vpop.f32.mrb[0].mxu0
      %v2078 = vadd.f32 0.0, %v2077
      %v2079 = vpop.f32.mrb[0].mxu0
      %2080 = vdwg.mxu0
      %v2081 = vld [vmem:[%s424] sm:$0x1]
      %v2083 = vlaneseq
      %v2084 = vshrl.u32 %v2083, 7
      %v2085 = vsub.s32 0, %v2084
      %v2086 = vrot.slane %v2081, %v2085
      %v2088 = vmul.f32 %v2051, %v2086
      %v2089 = vmul.f32 %v2054, %v2086
      %v2090 = vmul.f32 %v2059, %v2086
      %v2091 = vmul.f32 %v2062, %v2086
      %v2092 = vmul.f32 %v2067, %v2086
      %v2093 = vmul.f32 %v2070, %v2086
      %v2094 = vmul.f32 %v2075, %v2086
      %v2095 = vmul.f32 %v2078, %v2086
      %v2096 = vld [vmem:[%s427] sm:$0x1]
      %v2098 = vlaneseq
      %v2099 = vshrl.u32 %v2098, 7
      %v2100 = vsub.s32 0, %v2099
      %v2101 = vrot.slane %v2096, %v2100
      %v2103 = vadd.f32 %v2088, %v2101
      %v2104 = vadd.f32 %v2089, %v2101
      %v2105 = vadd.f32 %v2090, %v2101
      %v2106 = vadd.f32 %v2091, %v2101
      %v2107 = vadd.f32 %v2092, %v2101
      %v2108 = vadd.f32 %v2093, %v2101
      %v2109 = vadd.f32 %v2094, %v2101
      %v2110 = vadd.f32 %v2095, %v2101
      %v2111 = vadd.f32 %v1962, %v2103
      %v2112 = vadd.f32 %v1963, %v2104
      %v2113 = vadd.f32 %v1964, %v2105
      %v2114 = vadd.f32 %v1965, %v2106
      %v2115 = vadd.f32 %v1966, %v2107
      %v2116 = vadd.f32 %v1967, %v2108
      %v2117 = vadd.f32 %v1968, %v2109
      %v2118 = vadd.f32 %v1969, %v2110
      %v2119 = vmax.f32 %v2111, 0.0
      %v2120 = vmax.f32 %v2112, 0.0
      %v2121 = vmax.f32 %v2113, 0.0
      %v2122 = vmax.f32 %v2114, 0.0
      %v2123 = vmax.f32 %v2115, 0.0
      %v2124 = vmax.f32 %v2116, 0.0
      %v2125 = vmax.f32 %v2117, 0.0
      %v2126 = vmax.f32 %v2118, 0.0
      %2127 = vst.msk [vmem:[%s435] sm:$0xff] %vm583, %v2119
      %2128 = vst.msk [vmem:[%s435 + $0x8] sm:$0xff] %vm583, %v2120
      %2129 = vst.msk [vmem:[%s435 + $0x10] sm:$0xff] %vm583, %v2121
      %2130 = vst.msk [vmem:[%s435 + $0x18] sm:$0xff] %vm583, %v2122
      %2131 = vst.msk [vmem:[%s435 + $0x20] sm:$0xff] %vm583, %v2123
      %2132 = vst.msk [vmem:[%s435 + $0x28] sm:$0xff] %vm583, %v2124
      %2133 = vst.msk [vmem:[%s435 + $0x30] sm:$0xff] %vm583, %v2125
      %2134 = vst.msk [vmem:[%s435 + $0x38] sm:$0xff] %vm583, %v2126
      %p2135 = scmp.lt.s32.totalorder %s23, 1
      %s2136 = scalar_select %p2135, %s23, 1
      %p2137 = scmp.lt.s32.totalorder %s24, 0
      %s2138 = scalar_select %p2137, %s24, 0
      %s2139 = smul.addr %s2136, 8
      %s2140 = sadd.s32 %s2138, %s2139
      %s2141 = smul.addr %s2140, 8
      %s2142 = scalar_lea.vmem %s8, %s2141
      // Predicated region
      $region53: #{basic_block_forward.3} parent=51 // pred_check
        %p2143 = pneg %p259
      $region54: #{basic_block_forward.3} parent=51 // pred_check_branch
        %2145 = sbr.rel (%p2143) target = $region56
      $region55: #{basic_block_forward.3} parent=51 // pred_region
        _
      $region56: #{basic_block_forward.3} parent=51 // pred_fallthru
        _
    $region52: #{basic_block_forward.3} parent=5 // pred_fallthru
      _
    %p2146 = scmp.le.s32.totalorder 2, %s14
    // Predicated region
    $region57: #{basic_block_forward.3} parent=5 // pred_check
      %p2147 = pneg %p2146
    $region58: #{basic_block_forward.3} parent=5 // pred_check_branch
      %2149 = sbr.rel (%p2147) target = $region60
    $region59: #{basic_block_forward.3} parent=5 // pred_region
      %s2150 = ssub.s32 %s14, 2
      // Predicated region
      $region61: #{basic_block_forward.3} parent=59 // pred_check
        %p2151 = pneg %p265
      $region62: #{basic_block_forward.3} parent=59 // pred_check_branch
        %2153 = sbr.rel (%p2151) target = $region64
      $region63: #{basic_block_forward.3} parent=59 // pred_region
        %p2154 = scmp.lt.s32.totalorder %s25, 1
        %s2155 = scalar_select %p2154, %s25, 1
        %p2156 = scmp.lt.s32.totalorder %s26, 0
        %s2157 = scalar_select %p2156, %s26, 0
        %s2158 = smul.addr %s2155, 8
        %s2159 = sadd.s32 %s2157, %s2158
        %s2160 = smul.addr %s2159, 8
        %s2161 = scalar_lea.vmem %s8, %s2160
      $region64: #{basic_block_forward.3} parent=59 // pred_fallthru
        _
    $region60: #{basic_block_forward.3} parent=5 // pred_fallthru
      _
  $region6: #{basic_block_forward.3} parent=0 // loop_footer
    %s18 = sadd.s32 1, %s14
  $region7: #{basic_block_forward.3} parent=0 // loop_footer_branch
    %13 = sbr.rel target = $region3
  $region8: #{basic_block_forward.3} parent=0 // loop_exit
    _

</llo_original>
